<compile_context>
chip_gen: v7x
topology: tpu7x:2x2x1
jax: 0.10.0
libtpu: 0.0.40
codegen_flags: <defaults>
</compile_context>

<pallas_src>
import math
import functools

import jax
import jax.numpy as jnp
from jax.experimental import pallas as pl
from jax.experimental.pallas import tpu as pltpu


MLP_ROW_TILE = 512   # rows of (B*T) processed per MLP chunk inside the kernel


# ----------------------------------------------------------------------------
# In-kernel helpers
# ----------------------------------------------------------------------------
def _layernorm(x, w, b, eps=1e-5):
    mu = jnp.mean(x, axis=-1, keepdims=True)
    var = jnp.mean((x - mu) ** 2, axis=-1, keepdims=True)
    return (x - mu) * jax.lax.rsqrt(var + eps) * w + b


def _gelu_exact(x):
    # nn.GELU() default (erf-based, not tanh approximation)
    return 0.5 * x * (1.0 + jax.lax.erf(x / jnp.sqrt(2.0).astype(x.dtype)))


# ----------------------------------------------------------------------------
# Kernel 1: stacked transformer blocks + final LayerNorm
#   grid = (n_layer,); residual stream carried in the VMEM-resident output block
# ----------------------------------------------------------------------------
def gpt_blocks_kernel(n_head,
                      x_ref, lnfw_ref, lnfb_ref,
                      ln1w_ref, ln1b_ref,
                      wqkv_ref, bqkv_ref,
                      wp_ref, bp_ref,
                      ln2w_ref, ln2b_ref,
                      w1_ref, b1_ref, w2_ref, b2_ref,
                      out_ref):
    layer = pl.program_id(0)
    n_layer = pl.num_programs(0)

    @pl.when(layer == 0)
    def _():
        out_ref[...] = x_ref[...].astype(jnp.float32)

    h = out_ref[...]                                  # residual stream (f32)
    B, T, C = h.shape
    H = n_head
    hd = C // H
    cdt = wqkv_ref.dtype                              # compute dtype (f32 or bf16)
    scale = jnp.float32(1.0 / math.sqrt(hd))

    # ---------------- causal self-attention ----------------
    xn = _layernorm(h, ln1w_ref[0], ln1b_ref[0]).reshape(B * T, C)
    qkv = jnp.dot(xn.astype(cdt), wqkv_ref[0],
                  preferred_element_type=jnp.float32) + bqkv_ref[0]      # (B*T, 3C)
    q = qkv[:, :C].reshape(B, T, C)
    k = qkv[:, C:2 * C].reshape(B, T, C)
    v = qkv[:, 2 * C:].reshape(B, T, C)

    row = jax.lax.broadcasted_iota(jnp.int32, (T, T), 0)
    col = jax.lax.broadcasted_iota(jnp.int32, (T, T), 1)
    causal = (row >= col)[None]                        # (1, T, T)

    # TODO(synk): for long T, tile the KV axis with an online-softmax (flash-style)
    # inner loop instead of materializing the full (T, T) score matrix per head.
    y_heads = []
    for hh in range(H):                                # short static head loop
        sl = slice(hh * hd, (hh + 1) * hd)
        qh = (q[:, :, sl] * scale).astype(cdt)
        kh = k[:, :, sl].astype(cdt)
        vh = v[:, :, sl].astype(cdt)
        att = jnp.einsum('bqd,bkd->bqk', qh, kh,
                         preferred_element_type=jnp.float32)             # (B, T, T)
        att = jnp.where(causal, att, -1e30)
        att = att - jnp.max(att, axis=-1, keepdims=True)
        p = jnp.exp(att)
        p = p * pl.reciprocal(jnp.sum(p, axis=-1, keepdims=True), approx=True)
        y_heads.append(jnp.einsum('bqk,bkd->bqd', p.astype(cdt), vh,
                                  preferred_element_type=jnp.float32))   # (B, T, hd)
    y = jnp.concatenate(y_heads, axis=-1).reshape(B * T, C)
    y = jnp.dot(y.astype(cdt), wp_ref[0],
                preferred_element_type=jnp.float32) + bp_ref[0]
    h = h + y.reshape(B, T, C)

    # ---------------- MLP (row-chunked) ----------------
    xn2 = _layernorm(h, ln2w_ref[0], ln2b_ref[0]).reshape(B * T, C)
    rows = B * T
    tile = rows if rows <= MLP_ROW_TILE else MLP_ROW_TILE
    pieces = []
    for r0 in range(0, rows, tile):
        r1 = min(r0 + tile, rows)
        blk = xn2[r0:r1].astype(cdt)
        hid = _gelu_exact(jnp.dot(blk, w1_ref[0],
                                  preferred_element_type=jnp.float32) + b1_ref[0])
        pieces.append(jnp.dot(hid.astype(cdt), w2_ref[0],
                              preferred_element_type=jnp.float32) + b2_ref[0])
    mlp = pieces[0] if len(pieces) == 1 else jnp.concatenate(pieces, axis=0)
    h = h + mlp.reshape(B, T, C)

    out_ref[...] = h

    @pl.when(layer == n_layer - 1)
    def _():
        out_ref[...] = _layernorm(h, lnfw_ref[...], lnfb_ref[...])


def prepare_block_params(layers, compute_dtype):
    """Fuse Q/K/V and cast matmul weights to the compute dtype (biases/LN in f32)."""
    wqkv = jnp.concatenate([layers["wq"], layers["wk"], layers["wv"]], axis=-1)
    bqkv = jnp.concatenate([layers["bq"], layers["bk"], layers["bv"]], axis=-1)
    return {
        "ln1_w": layers["ln1_w"], "ln1_b": layers["ln1_b"],
        "wqkv": wqkv.astype(compute_dtype), "bqkv": bqkv,
        "wp": layers["wp"].astype(compute_dtype), "bp": layers["bp"],
        "ln2_w": layers["ln2_w"], "ln2_b": layers["ln2_b"],
        "w1": layers["w1"].astype(compute_dtype), "b1": layers["b1"],
        "w2": layers["w2"].astype(compute_dtype), "b2": layers["b2"],
    }


_BLOCK_PARAM_ORDER = ["ln1_w", "ln1_b", "wqkv", "bqkv", "wp", "bp",
                      "ln2_w", "ln2_b", "w1", "b1", "w2", "b2"]


def run_gpt_blocks(x, lnf_w, lnf_b, stacked, n_head):
    """x: (B,T,C) f32; stacked: dict of per-layer params stacked on axis 0."""
    B, T, C = x.shape
    L = stacked["ln1_w"].shape[0]
    rows = B * T

    def stacked_spec(a):
        nd = a.ndim
        return pl.BlockSpec((1,) + a.shape[1:], lambda l, nd=nd: (l,) + (0,) * (nd - 1))

    in_specs = [pl.BlockSpec((B, T, C), lambda l: (0, 0, 0)),          # x (resident)
                pl.BlockSpec((1, C), lambda l: (0, 0)),                # ln_f weight
                pl.BlockSpec((1, C), lambda l: (0, 0))]                # ln_f bias
    in_specs += [stacked_spec(stacked[name]) for name in _BLOCK_PARAM_ORDER]

    # VMEM budget: double-buffered per-layer weights + resident residual/output
    # + attention & MLP intermediates, with headroom; clamped for v7x (64 MiB).
    per_layer_w = sum(int(math.prod(a.shape[1:])) * a.dtype.itemsize
                      for a in stacked.values())
    act = rows * C * 4
    inter = rows * 3 * C * 4 + 2 * B * T * T * 4 + min(rows, MLP_ROW_TILE) * 4 * C * 4
    est = 2 * per_layer_w + 4 * act + inter
    vmem_limit = int(min(max(2 * est, 32 << 20), 112 << 20))

    return pl.pallas_call(
        functools.partial(gpt_blocks_kernel, n_head),
        out_shape=jax.ShapeDtypeStruct((B, T, C), jnp.float32),
        grid_spec=pltpu.PrefetchScalarGridSpec(
            num_scalar_prefetch=0,
            grid=(L,),
            in_specs=in_specs,
            out_specs=pl.BlockSpec((B, T, C), lambda l: (0, 0, 0)),
        ),
        compiler_params=pltpu.CompilerParams(
            dimension_semantics=("arbitrary",),       # layers are sequential
            vmem_limit_bytes=vmem_limit),
    )(x, lnf_w, lnf_b, *[stacked[name] for name in _BLOCK_PARAM_ORDER])


# ----------------------------------------------------------------------------
# Kernel 2: EinLinear head (einsum 'eoi,bei->beo', no bias)
#   grid over groups of d-positions; output written directly as (B, D, V1p)
#   with a lane-dense (128-multiple) last dim; no wrapper transposes.
# ----------------------------------------------------------------------------
def ein_head_kernel(x_ref, w_ref, o_ref):
    # x_ref: (B, G, C)   w_ref: (G, C, V1p)   o_ref: (B, G, V1p)
    G = w_ref.shape[0]
    cdt = w_ref.dtype
    for g in range(G):                                 # static unroll, G <= 16
        o_ref[:, g, :] = jnp.dot(x_ref[:, g, :].astype(cdt), w_ref[g],
                                 preferred_element_type=jnp.float32)


def run_ein_head(x_pad, head_w_t, compute_dtype=jnp.float32):
    """x_pad: (B, D, C); head_w_t: (D, C, V1). Returns (B, D, V1p) f32."""
    B, D, C = x_pad.shape
    V1 = head_w_t.shape[-1]
    V1p = ((V1 + 127) // 128) * 128                    # lane-dense output
    if V1p != V1:
        head_w_t = jnp.pad(head_w_t, ((0, 0), (0, 0), (0, V1p - V1)))
    head_w_t = head_w_t.astype(compute_dtype)

    # group several d positions per grid step (must divide D; mult of 8 or == D)
    G = D
    for g in (16, 8):
        if D % g == 0:
            G = g
            break

    wblk = G * C * V1p * head_w_t.dtype.itemsize
    est = 2 * wblk + 2 * B * G * C * 4 + 2 * B * G * V1p * 4
    vmem_limit = int(min(max(2 * est, 32 << 20), 112 << 20))

    return pl.pallas_call(
        ein_head_kernel,
        out_shape=jax.ShapeDtypeStruct((B, D, V1p), jnp.float32),
        grid_spec=pltpu.PrefetchScalarGridSpec(
            num_scalar_prefetch=0,
            grid=(D // G,),
            in_specs=[pl.BlockSpec((B, G, C), lambda i: (0, i, 0)),
                      pl.BlockSpec((G, C, V1p), lambda i: (i, 0, 0))],
            out_specs=pl.BlockSpec((B, G, V1p), lambda i: (0, i, 0)),
        ),
        compiler_params=pltpu.CompilerParams(
            dimension_semantics=("parallel",),         # d-groups are independent
            vmem_limit_bytes=vmem_limit),
    )(x_pad, head_w_t)


# ----------------------------------------------------------------------------
# Full GPT forward (inference path, targets=None -> loss=None)
# ----------------------------------------------------------------------------
def gpt_forward(idx, params, cfg, compute_dtype=jnp.float32):
    V, D, C = cfg["vocab_size"], cfg["discrete_dim"], cfg["n_embd"]
    b, t = idx.shape
    assert t <= cfg["block_size"] and t <= D
    # TODO(synk): training path (targets / cross-entropy loss) not implemented.

    # offset_tokens
    offsets = jnp.arange(D, dtype=idx.dtype) * V
    offset_idx = jnp.where(idx == V, V * D, idx + offsets[:t])

    # embeddings (+ dropout == identity in eval)
    tok = params["tok_emb"][offset_idx]                 # (b, t, C)
    pos = params["pos_emb"][:, :t, :]                   # (1, t, C)
    x = (tok + pos).astype(jnp.float32)

    # transformer blocks + ln_f  (Pallas kernel 1)
    stacked = prepare_block_params(params["layers"], compute_dtype)
    x = run_gpt_blocks(x, params["lnf_w"], params["lnf_b"], stacked, cfg["n_head"])

    # pad_to_full
    n_pad = D - t
    if n_pad > 0:
        x = jnp.concatenate([x, jnp.zeros((b, n_pad, C), x.dtype)], axis=1)

    # EinLinear head (Pallas kernel 2) -- output already (B, D, V1p)
    logits = run_ein_head(x, params["head_w_t"], compute_dtype)
    logits = logits[:, :t, :V + 1]
    return logits, None


# ----------------------------------------------------------------------------
# Pure-JAX reference (mirrors the PyTorch math) for a correctness check
# ----------------------------------------------------------------------------
def gpt_forward_ref(idx, params, cfg):
    V, D, C = cfg["vocab_size"], cfg["discrete_dim"], cfg["n_embd"]
    H = cfg["n_head"]
    hd = C // H
    b, t = idx.shape

    offsets = jnp.arange(D, dtype=idx.dtype) * V
    offset_idx = jnp.where(idx == V, V * D, idx + offsets[:t])
    x = (params["tok_emb"][offset_idx] + params["pos_emb"][:, :t, :]).astype(jnp.float32)

    P = params["layers"]
    causal = jnp.tril(jnp.ones((t, t), bool))
    for l in range(P["ln1_w"].shape[0]):
        xn = _layernorm(x, P["ln1_w"][l], P["ln1_b"][l])
        q = xn @ P["wq"][l] + P["bq"][l]
        k = xn @ P["wk"][l] + P["bk"][l]
        v = xn @ P["wv"][l] + P["bv"][l]
        q = q.reshape(b, t, H, hd).transpose(0, 2, 1, 3)
        k = k.reshape(b, t, H, hd).transpose(0, 2, 1, 3)
        v = v.reshape(b, t, H, hd).transpose(0, 2, 1, 3)
        att = jnp.einsum("bhqd,bhkd->bhqk", q, k) / math.sqrt(hd)
        att = jnp.where(causal, att, -1e30)
        att = jax.nn.softmax(att, axis=-1)
        y = jnp.einsum("bhqk,bhkd->bhqd", att, v).transpose(0, 2, 1, 3).reshape(b, t, C)
        x = x + (y @ P["wp"][l] + P["bp"][l])
        xn2 = _layernorm(x, P["ln2_w"][l], P["ln2_b"][l])
        hid = _gelu_exact(xn2 @ P["w1"][l] + P["b1"][l])
        x = x + (hid @ P["w2"][l] + P["b2"][l])
    x = _layernorm(x, params["lnf_w"], params["lnf_b"])
    n_pad = D - t
    if n_pad > 0:
        x = jnp.concatenate([x, jnp.zeros((b, n_pad, C), x.dtype)], axis=1)
    logits = jnp.einsum("bdc,dcv->bdv", x, params["head_w_t"])
    return logits[:, :t]


# ----------------------------------------------------------------------------
# Deterministic parameter initialization (shapes from GPT.__init__)
# ----------------------------------------------------------------------------
def init_params(key, cfg):
    V, D, C, L = cfg["vocab_size"], cfg["discrete_dim"], cfg["n_embd"], cfg["n_layer"]
    BS = cfg["block_size"]
    ks = iter(jax.random.split(key, 64))

    def nrm(shape):
        return 0.02 * jax.random.normal(next(ks), shape, jnp.float32)

    layers = {
        "ln1_w": jnp.ones((L, 1, C), jnp.float32),
        "ln1_b": jnp.zeros((L, 1, C), jnp.float32),
        "wq": nrm((L, C, C)), "bq": jnp.zeros((L, 1, C), jnp.float32),
        "wk": nrm((L, C, C)), "bk": jnp.zeros((L, 1, C), jnp.float32),
        "wv": nrm((L, C, C)), "bv": jnp.zeros((L, 1, C), jnp.float32),
        "wp": nrm((L, C, C)), "bp": jnp.zeros((L, 1, C), jnp.float32),
        "ln2_w": jnp.ones((L, 1, C), jnp.float32),
        "ln2_b": jnp.zeros((L, 1, C), jnp.float32),
        "w1": nrm((L, C, 4 * C)), "b1": jnp.zeros((L, 1, 4 * C), jnp.float32),
        "w2": nrm((L, 4 * C, C)), "b2": jnp.zeros((L, 1, C), jnp.float32),
    }
    params = {
        "tok_emb": nrm((V * D + 1, C)),
        "pos_emb": jnp.zeros((1, BS, C), jnp.float32),   # matches nn.Parameter(zeros)
        "lnf_w": jnp.ones((1, C), jnp.float32),
        "lnf_b": jnp.zeros((1, C), jnp.float32),
        # EinLinear weight (D, V+1, C) pre-transposed to (D, C, V+1); synthetic init
        "head_w_t": nrm((D, C, V + 1)),
        "layers": layers,
    }
    return params


if __name__ == "__main__":
    cfg = dict(vocab_size=10, discrete_dim=8, block_size=8,
               n_embd=32, n_head=4, n_layer=2)

    key = jax.random.PRNGKey(0)
    pkey, ikey = jax.random.split(key)
    params = init_params(pkey, cfg)

    B, T = 2, 8
    # tokens in [0, vocab_size]; value == vocab_size maps to the stop token
    idx = jax.random.randint(ikey, (B, T), 0, cfg["vocab_size"] + 1, dtype=jnp.int32)

    # f32-weight run: exactness check against the pure-JAX reference
    logits, loss = gpt_forward(idx, params, cfg, compute_dtype=jnp.float32)
    logits = jax.block_until_ready(logits)
    assert logits.shape == (B, T, cfg["vocab_size"] + 1)
    assert loss is None

    ref = jax.block_until_ready(gpt_forward_ref(idx, params, cfg))
    err = jnp.max(jnp.abs(logits - ref))
    assert jnp.allclose(logits, ref, rtol=2e-3, atol=2e-3), f"f32 mismatch: {err}"

    # bf16-weight run (production/perf configuration): looser tolerance
    logits_bf16, _ = gpt_forward(idx, params, cfg, compute_dtype=jnp.bfloat16)
    logits_bf16 = jax.block_until_ready(logits_bf16)
    err_bf16 = jnp.max(jnp.abs(logits_bf16 - ref))
    assert jnp.allclose(logits_bf16, ref, rtol=5e-2, atol=5e-2), \
        f"bf16 mismatch: {err_bf16}"

    print("KERNEL_OK")
</pallas_src>

<mosaic_0001>
module attributes {stable_mosaic.version = 11 : i64} {
  func.func @gpt_blocks_kernel(%arg0: i32, %arg1: memref<2x8x32xf32, #tpu.memory_space<vmem>>, %arg2: memref<1x32xf32, #tpu.memory_space<vmem>>, %arg3: memref<1x32xf32, #tpu.memory_space<vmem>>, %arg4: memref<1x1x32xf32, #tpu.memory_space<vmem>>, %arg5: memref<1x1x32xf32, #tpu.memory_space<vmem>>, %arg6: memref<1x32x96xf32, #tpu.memory_space<vmem>>, %arg7: memref<1x1x96xf32, #tpu.memory_space<vmem>>, %arg8: memref<1x32x32xf32, #tpu.memory_space<vmem>>, %arg9: memref<1x1x32xf32, #tpu.memory_space<vmem>>, %arg10: memref<1x1x32xf32, #tpu.memory_space<vmem>>, %arg11: memref<1x1x32xf32, #tpu.memory_space<vmem>>, %arg12: memref<1x32x128xf32, #tpu.memory_space<vmem>>, %arg13: memref<1x1x128xf32, #tpu.memory_space<vmem>>, %arg14: memref<1x128x32xf32, #tpu.memory_space<vmem>>, %arg15: memref<1x1x32xf32, #tpu.memory_space<vmem>>, %arg16: memref<2x8x32xf32, #tpu.memory_space<vmem>>) attributes {dimension_semantics = [#tpu.dimension_semantics<arbitrary>], iteration_bounds = array<i64: 2>, scalar_prefetch = 0 : i64, scratch_operands = 0 : i64, tpu.core_type = #tpu.core_type<tc>, window_params = [{pipeline_mode = #tpu.pipeline_mode<synchronous>, transform_indices = @transform_0, window_bounds = array<i64: 2, 8, 32>}, {pipeline_mode = #tpu.pipeline_mode<synchronous>, transform_indices = @transform_1, window_bounds = array<i64: 1, 32>}, {pipeline_mode = #tpu.pipeline_mode<synchronous>, transform_indices = @transform_2, window_bounds = array<i64: 1, 32>}, {transform_indices = @transform_3, window_bounds = array<i64: 1, 1, 32>}, {transform_indices = @transform_4, window_bounds = array<i64: 1, 1, 32>}, {transform_indices = @transform_5, window_bounds = array<i64: 1, 32, 96>}, {transform_indices = @transform_6, window_bounds = array<i64: 1, 1, 96>}, {transform_indices = @transform_7, window_bounds = array<i64: 1, 32, 32>}, {transform_indices = @transform_8, window_bounds = array<i64: 1, 1, 32>}, {transform_indices = @transform_9, window_bounds = array<i64: 1, 1, 32>}, {transform_indices = @transform_10, window_bounds = array<i64: 1, 1, 32>}, {transform_indices = @transform_11, window_bounds = array<i64: 1, 32, 128>}, {transform_indices = @transform_12, window_bounds = array<i64: 1, 1, 128>}, {transform_indices = @transform_13, window_bounds = array<i64: 1, 128, 32>}, {transform_indices = @transform_14, window_bounds = array<i64: 1, 1, 32>}, {pipeline_mode = #tpu.pipeline_mode<synchronous>, transform_indices = @transform_15, window_bounds = array<i64: 2, 8, 32>}]} {
    %c0_i32 = arith.constant 0 : i32
    %0 = arith.cmpi eq, %arg0, %c0_i32 : i32
    %1 = arith.extui %0 : i1 to i32
    %c0_i32_0 = arith.constant 0 : i32
    %2 = arith.cmpi ne, %1, %c0_i32_0 : i32
    scf.if %2 {
      %c0_83 = arith.constant 0 : index
      %c0_84 = arith.constant 0 : index
      %c0_85 = arith.constant 0 : index
      %203 = vector.load %arg1[%c0_83, %c0_84, %c0_85] : memref<2x8x32xf32, #tpu.memory_space<vmem>>, vector<2x8x32xf32>
      %c0_86 = arith.constant 0 : index
      %c0_87 = arith.constant 0 : index
      %c0_88 = arith.constant 0 : index
      %204 = vector.load %arg16[%c0_86, %c0_87, %c0_88] : memref<2x8x32xf32, #tpu.memory_space<vmem>>, vector<2x8x32xf32>
      tpu.vector_store %arg16[%c0_86, %c0_87, %c0_88], %203 {strides = array<i32>} : memref<2x8x32xf32, #tpu.memory_space<vmem>>, vector<2x8x32xf32>,
    } else {
    }
    %c0 = arith.constant 0 : index
    %c0_1 = arith.constant 0 : index
    %c0_2 = arith.constant 0 : index
    %3 = vector.load %arg16[%c0, %c0_1, %c0_2] : memref<2x8x32xf32, #tpu.memory_space<vmem>>, vector<2x8x32xf32>
    %c0_3 = arith.constant 0 : index
    %c0_4 = arith.constant 0 : index
    %c0_5 = arith.constant 0 : index
    %4 = vector.load %arg4[%c0_3, %c0_4, %c0_5] : memref<1x1x32xf32, #tpu.memory_space<vmem>>, vector<1x1x32xf32>
    %5 = vector.shape_cast %4 : vector<1x1x32xf32> to vector<1x32xf32>
    %c0_6 = arith.constant 0 : index
    %c0_7 = arith.constant 0 : index
    %c0_8 = arith.constant 0 : index
    %6 = vector.load %arg5[%c0_6, %c0_7, %c0_8] : memref<1x1x32xf32, #tpu.memory_space<vmem>>, vector<1x1x32xf32>
    %7 = vector.shape_cast %6 : vector<1x1x32xf32> to vector<1x32xf32>
    %cst = arith.constant dense<0.000000e+00> : vector<2x8xf32>
    %8 = vector.multi_reduction <add>, %3, %cst [2] : vector<2x8x32xf32> to vector<2x8xf32>
    %9 = vector.shape_cast %8 : vector<2x8xf32> to vector<2x8x1xf32>
    %cst_9 = arith.constant 3.200000e+01 : f32
    %10 = vector.broadcast %cst_9 : f32 to vector<2x8x1xf32>
    %11 = arith.divf %9, %10 : vector<2x8x1xf32>
    %12 = vector.broadcast %11 : vector<2x8x1xf32> to vector<2x8x32xf32>
    %13 = arith.subf %3, %12 : vector<2x8x32xf32>
    %14 = arith.mulf %13, %13 : vector<2x8x32xf32>
    %cst_10 = arith.constant dense<0.000000e+00> : vector<2x8xf32>
    %15 = vector.multi_reduction <add>, %14, %cst_10 [2] : vector<2x8x32xf32> to vector<2x8xf32>
    %16 = vector.shape_cast %15 : vector<2x8xf32> to vector<2x8x1xf32>
    %cst_11 = arith.constant 3.200000e+01 : f32
    %17 = vector.broadcast %cst_11 : f32 to vector<2x8x1xf32>
    %18 = arith.divf %16, %17 : vector<2x8x1xf32>
    %19 = vector.broadcast %11 : vector<2x8x1xf32> to vector<2x8x32xf32>
    %20 = arith.subf %3, %19 : vector<2x8x32xf32>
    %cst_12 = arith.constant 9.99999974E-6 : f32
    %21 = vector.broadcast %cst_12 : f32 to vector<2x8x1xf32>
    %22 = arith.addf %18, %21 : vector<2x8x1xf32>
    %23 = math.rsqrt %22 : vector<2x8x1xf32>
    %24 = vector.broadcast %23 : vector<2x8x1xf32> to vector<2x8x32xf32>
    %25 = arith.mulf %20, %24 : vector<2x8x32xf32>
    %26 = vector.shape_cast %5 : vector<1x32xf32> to vector<1x1x32xf32>
    %27 = vector.broadcast %26 : vector<1x1x32xf32> to vector<2x8x32xf32>
    %28 = arith.mulf %25, %27 : vector<2x8x32xf32>
    %29 = vector.shape_cast %7 : vector<1x32xf32> to vector<1x1x32xf32>
    %30 = vector.broadcast %29 : vector<1x1x32xf32> to vector<2x8x32xf32>
    %31 = arith.addf %28, %30 : vector<2x8x32xf32>
    %32 = vector.shape_cast %31 : vector<2x8x32xf32> to vector<16x32xf32>
    %c0_13 = arith.constant 0 : index
    %c0_14 = arith.constant 0 : index
    %c0_15 = arith.constant 0 : index
    %33 = vector.load %arg6[%c0_13, %c0_14, %c0_15] : memref<1x32x96xf32, #tpu.memory_space<vmem>>, vector<1x32x96xf32>
    %34 = vector.shape_cast %33 : vector<1x32x96xf32> to vector<32x96xf32>
    %cst_16 = arith.constant dense<0.000000e+00> : vector<16x96xf32>
    %35 = tpu.matmul %32, %34, %cst_16 {dimension_numbers = #tpu.dot_dimension_numbers<[1], [0], [0], [1], [0, 0, 1, 1], [], []>} : vector<16x32xf32>, vector<32x96xf32>, vector<16x96xf32> -> vector<16x96xf32>
    %c0_17 = arith.constant 0 : index
    %c0_18 = arith.constant 0 : index
    %c0_19 = arith.constant 0 : index
    %36 = vector.load %arg7[%c0_17, %c0_18, %c0_19] : memref<1x1x96xf32, #tpu.memory_space<vmem>>, vector<1x1x96xf32>
    %37 = vector.shape_cast %36 : vector<1x1x96xf32> to vector<1x96xf32>
    %38 = vector.broadcast %37 : vector<1x96xf32> to vector<16x96xf32>
    %39 = arith.addf %35, %38 : vector<16x96xf32>
    %40 = vector.extract_strided_slice %39 {offsets = [0, 0], sizes = [16, 32], strides = [1, 1]} : vector<16x96xf32> to vector<16x32xf32>
    %41 = vector.shape_cast %40 : vector<16x32xf32> to vector<2x8x32xf32>
    %42 = vector.extract_strided_slice %39 {offsets = [0, 32], sizes = [16, 32], strides = [1, 1]} : vector<16x96xf32> to vector<16x32xf32>
    %43 = vector.shape_cast %42 : vector<16x32xf32> to vector<2x8x32xf32>
    %44 = vector.extract_strided_slice %39 {offsets = [0, 64], sizes = [16, 32], strides = [1, 1]} : vector<16x96xf32> to vector<16x32xf32>
    %45 = vector.shape_cast %44 : vector<16x32xf32> to vector<2x8x32xf32>
    %46 = tpu.iota {dimensions = array<i32: 0>} : vector<8x8xi32>
    %47 = tpu.iota {dimensions = array<i32: 1>} : vector<8x8xi32>
    %48 = arith.cmpi sge, %46, %47 : vector<8x8xi32>
    %49 = vector.shape_cast %48 : vector<8x8xi1> to vector<1x8x8xi1>
    %50 = vector.extract_strided_slice %41 {offsets = [0, 0, 0], sizes = [2, 8, 8], strides = [1, 1, 1]} : vector<2x8x32xf32> to vector<2x8x8xf32>
    %cst_20 = arith.constant 0.353553385 : f32
    %51 = vector.broadcast %cst_20 : f32 to vector<2x8x8xf32>
    %52 = arith.mulf %50, %51 : vector<2x8x8xf32>
    %53 = vector.extract_strided_slice %43 {offsets = [0, 0, 0], sizes = [2, 8, 8], strides = [1, 1, 1]} : vector<2x8x32xf32> to vector<2x8x8xf32>
    %54 = vector.extract_strided_slice %45 {offsets = [0, 0, 0], sizes = [2, 8, 8], strides = [1, 1, 1]} : vector<2x8x32xf32> to vector<2x8x8xf32>
    "tpu.trace_start"() <{level = 10 : i32, message = "bqd,bkd->bqk"}> : () -> ()
    %cst_21 = arith.constant dense<0.000000e+00> : vector<2x8x8xf32>
    %55 = tpu.matmul %52, %53, %cst_21 {dimension_numbers = #tpu.dot_dimension_numbers<[2], [2], [1], [1], [0, 0, 0, 1, 1, 1], [0], [0]>} : vector<2x8x8xf32>, vector<2x8x8xf32>, vector<2x8x8xf32> -> vector<2x8x8xf32>
    %cst_22 = arith.constant -1.000000e+30 : f32
    "tpu.trace_stop"() : () -> ()
    %56 = vector.shape_cast %49 : vector<1x8x8xi1> to vector<1x8x8xi1>
    %57 = vector.broadcast %56 : vector<1x8x8xi1> to vector<2x8x8xi1>
    %58 = vector.broadcast %cst_22 : f32 to vector<2x8x8xf32>
    %59 = arith.select %57, %55, %58 : vector<2x8x8xi1>, vector<2x8x8xf32>
    %cst_23 = arith.constant dense<0xFF800000> : vector<2x8xf32>
    %60 = vector.multi_reduction <maximumf>, %59, %cst_23 [2] : vector<2x8x8xf32> to vector<2x8xf32>
    %61 = vector.shape_cast %60 : vector<2x8xf32> to vector<2x8x1xf32>
    %62 = vector.broadcast %61 : vector<2x8x1xf32> to vector<2x8x8xf32>
    %63 = arith.subf %59, %62 : vector<2x8x8xf32>
    %64 = math.exp %63 : vector<2x8x8xf32>
    %cst_24 = arith.constant dense<0.000000e+00> : vector<2x8xf32>
    %65 = vector.multi_reduction <add>, %64, %cst_24 [2] : vector<2x8x8xf32> to vector<2x8xf32>
    %66 = vector.shape_cast %65 : vector<2x8xf32> to vector<2x8x1xf32>
    %67 = tpu.reciprocal %66 {approx = true} : vector<2x8x1xf32> -> vector<2x8x1xf32>
    %68 = vector.broadcast %67 : vector<2x8x1xf32> to vector<2x8x8xf32>
    %69 = arith.mulf %64, %68 : vector<2x8x8xf32>
    "tpu.trace_start"() <{level = 10 : i32, message = "bqk,bkd->bqd"}> : () -> ()
    %cst_25 = arith.constant dense<0.000000e+00> : vector<2x8x8xf32>
    %70 = tpu.matmul %69, %54, %cst_25 {dimension_numbers = #tpu.dot_dimension_numbers<[2], [1], [1], [2], [0, 0, 0, 1, 1, 2], [0], [0]>} : vector<2x8x8xf32>, vector<2x8x8xf32>, vector<2x8x8xf32> -> vector<2x8x8xf32>
    "tpu.trace_stop"() : () -> ()
    %71 = vector.extract_strided_slice %41 {offsets = [0, 0, 8], sizes = [2, 8, 8], strides = [1, 1, 1]} : vector<2x8x32xf32> to vector<2x8x8xf32>
    %cst_26 = arith.constant 0.353553385 : f32
    %72 = vector.broadcast %cst_26 : f32 to vector<2x8x8xf32>
    %73 = arith.mulf %71, %72 : vector<2x8x8xf32>
    %74 = vector.extract_strided_slice %43 {offsets = [0, 0, 8], sizes = [2, 8, 8], strides = [1, 1, 1]} : vector<2x8x32xf32> to vector<2x8x8xf32>
    %75 = vector.extract_strided_slice %45 {offsets = [0, 0, 8], sizes = [2, 8, 8], strides = [1, 1, 1]} : vector<2x8x32xf32> to vector<2x8x8xf32>
    "tpu.trace_start"() <{level = 10 : i32, message = "bqd,bkd->bqk"}> : () -> ()
    %cst_27 = arith.constant dense<0.000000e+00> : vector<2x8x8xf32>
    %76 = tpu.matmul %73, %74, %cst_27 {dimension_numbers = #tpu.dot_dimension_numbers<[2], [2], [1], [1], [0, 0, 0, 1, 1, 1], [0], [0]>} : vector<2x8x8xf32>, vector<2x8x8xf32>, vector<2x8x8xf32> -> vector<2x8x8xf32>
    %cst_28 = arith.constant -1.000000e+30 : f32
    "tpu.trace_stop"() : () -> ()
    %77 = vector.shape_cast %49 : vector<1x8x8xi1> to vector<1x8x8xi1>
    %78 = vector.broadcast %77 : vector<1x8x8xi1> to vector<2x8x8xi1>
    %79 = vector.broadcast %cst_28 : f32 to vector<2x8x8xf32>
    %80 = arith.select %78, %76, %79 : vector<2x8x8xi1>, vector<2x8x8xf32>
    %cst_29 = arith.constant dense<0xFF800000> : vector<2x8xf32>
    %81 = vector.multi_reduction <maximumf>, %80, %cst_29 [2] : vector<2x8x8xf32> to vector<2x8xf32>
    %82 = vector.shape_cast %81 : vector<2x8xf32> to vector<2x8x1xf32>
    %83 = vector.broadcast %82 : vector<2x8x1xf32> to vector<2x8x8xf32>
    %84 = arith.subf %80, %83 : vector<2x8x8xf32>
    %85 = math.exp %84 : vector<2x8x8xf32>
    %cst_30 = arith.constant dense<0.000000e+00> : vector<2x8xf32>
    %86 = vector.multi_reduction <add>, %85, %cst_30 [2] : vector<2x8x8xf32> to vector<2x8xf32>
    %87 = vector.shape_cast %86 : vector<2x8xf32> to vector<2x8x1xf32>
    %88 = tpu.reciprocal %87 {approx = true} : vector<2x8x1xf32> -> vector<2x8x1xf32>
    %89 = vector.broadcast %88 : vector<2x8x1xf32> to vector<2x8x8xf32>
    %90 = arith.mulf %85, %89 : vector<2x8x8xf32>
    "tpu.trace_start"() <{level = 10 : i32, message = "bqk,bkd->bqd"}> : () -> ()
    %cst_31 = arith.constant dense<0.000000e+00> : vector<2x8x8xf32>
    %91 = tpu.matmul %90, %75, %cst_31 {dimension_numbers = #tpu.dot_dimension_numbers<[2], [1], [1], [2], [0, 0, 0, 1, 1, 2], [0], [0]>} : vector<2x8x8xf32>, vector<2x8x8xf32>, vector<2x8x8xf32> -> vector<2x8x8xf32>
    "tpu.trace_stop"() : () -> ()
    %92 = vector.extract_strided_slice %41 {offsets = [0, 0, 16], sizes = [2, 8, 8], strides = [1, 1, 1]} : vector<2x8x32xf32> to vector<2x8x8xf32>
    %cst_32 = arith.constant 0.353553385 : f32
    %93 = vector.broadcast %cst_32 : f32 to vector<2x8x8xf32>
    %94 = arith.mulf %92, %93 : vector<2x8x8xf32>
    %95 = vector.extract_strided_slice %43 {offsets = [0, 0, 16], sizes = [2, 8, 8], strides = [1, 1, 1]} : vector<2x8x32xf32> to vector<2x8x8xf32>
    %96 = vector.extract_strided_slice %45 {offsets = [0, 0, 16], sizes = [2, 8, 8], strides = [1, 1, 1]} : vector<2x8x32xf32> to vector<2x8x8xf32>
    "tpu.trace_start"() <{level = 10 : i32, message = "bqd,bkd->bqk"}> : () -> ()
    %cst_33 = arith.constant dense<0.000000e+00> : vector<2x8x8xf32>
    %97 = tpu.matmul %94, %95, %cst_33 {dimension_numbers = #tpu.dot_dimension_numbers<[2], [2], [1], [1], [0, 0, 0, 1, 1, 1], [0], [0]>} : vector<2x8x8xf32>, vector<2x8x8xf32>, vector<2x8x8xf32> -> vector<2x8x8xf32>
    %cst_34 = arith.constant -1.000000e+30 : f32
    "tpu.trace_stop"() : () -> ()
    %98 = vector.shape_cast %49 : vector<1x8x8xi1> to vector<1x8x8xi1>
    %99 = vector.broadcast %98 : vector<1x8x8xi1> to vector<2x8x8xi1>
    %100 = vector.broadcast %cst_34 : f32 to vector<2x8x8xf32>
    %101 = arith.select %99, %97, %100 : vector<2x8x8xi1>, vector<2x8x8xf32>
    %cst_35 = arith.constant dense<0xFF800000> : vector<2x8xf32>
    %102 = vector.multi_reduction <maximumf>, %101, %cst_35 [2] : vector<2x8x8xf32> to vector<2x8xf32>
    %103 = vector.shape_cast %102 : vector<2x8xf32> to vector<2x8x1xf32>
    %104 = vector.broadcast %103 : vector<2x8x1xf32> to vector<2x8x8xf32>
    %105 = arith.subf %101, %104 : vector<2x8x8xf32>
    %106 = math.exp %105 : vector<2x8x8xf32>
    %cst_36 = arith.constant dense<0.000000e+00> : vector<2x8xf32>
    %107 = vector.multi_reduction <add>, %106, %cst_36 [2] : vector<2x8x8xf32> to vector<2x8xf32>
    %108 = vector.shape_cast %107 : vector<2x8xf32> to vector<2x8x1xf32>
    %109 = tpu.reciprocal %108 {approx = true} : vector<2x8x1xf32> -> vector<2x8x1xf32>
    %110 = vector.broadcast %109 : vector<2x8x1xf32> to vector<2x8x8xf32>
    %111 = arith.mulf %106, %110 : vector<2x8x8xf32>
    "tpu.trace_start"() <{level = 10 : i32, message = "bqk,bkd->bqd"}> : () -> ()
    %cst_37 = arith.constant dense<0.000000e+00> : vector<2x8x8xf32>
    %112 = tpu.matmul %111, %96, %cst_37 {dimension_numbers = #tpu.dot_dimension_numbers<[2], [1], [1], [2], [0, 0, 0, 1, 1, 2], [0], [0]>} : vector<2x8x8xf32>, vector<2x8x8xf32>, vector<2x8x8xf32> -> vector<2x8x8xf32>
    "tpu.trace_stop"() : () -> ()
    %113 = vector.extract_strided_slice %41 {offsets = [0, 0, 24], sizes = [2, 8, 8], strides = [1, 1, 1]} : vector<2x8x32xf32> to vector<2x8x8xf32>
    %cst_38 = arith.constant 0.353553385 : f32
    %114 = vector.broadcast %cst_38 : f32 to vector<2x8x8xf32>
    %115 = arith.mulf %113, %114 : vector<2x8x8xf32>
    %116 = vector.extract_strided_slice %43 {offsets = [0, 0, 24], sizes = [2, 8, 8], strides = [1, 1, 1]} : vector<2x8x32xf32> to vector<2x8x8xf32>
    %117 = vector.extract_strided_slice %45 {offsets = [0, 0, 24], sizes = [2, 8, 8], strides = [1, 1, 1]} : vector<2x8x32xf32> to vector<2x8x8xf32>
    "tpu.trace_start"() <{level = 10 : i32, message = "bqd,bkd->bqk"}> : () -> ()
    %cst_39 = arith.constant dense<0.000000e+00> : vector<2x8x8xf32>
    %118 = tpu.matmul %115, %116, %cst_39 {dimension_numbers = #tpu.dot_dimension_numbers<[2], [2], [1], [1], [0, 0, 0, 1, 1, 1], [0], [0]>} : vector<2x8x8xf32>, vector<2x8x8xf32>, vector<2x8x8xf32> -> vector<2x8x8xf32>
    %cst_40 = arith.constant -1.000000e+30 : f32
    "tpu.trace_stop"() : () -> ()
    %119 = vector.shape_cast %49 : vector<1x8x8xi1> to vector<1x8x8xi1>
    %120 = vector.broadcast %119 : vector<1x8x8xi1> to vector<2x8x8xi1>
    %121 = vector.broadcast %cst_40 : f32 to vector<2x8x8xf32>
    %122 = arith.select %120, %118, %121 : vector<2x8x8xi1>, vector<2x8x8xf32>
    %cst_41 = arith.constant dense<0xFF800000> : vector<2x8xf32>
    %123 = vector.multi_reduction <maximumf>, %122, %cst_41 [2] : vector<2x8x8xf32> to vector<2x8xf32>
    %124 = vector.shape_cast %123 : vector<2x8xf32> to vector<2x8x1xf32>
    %125 = vector.broadcast %124 : vector<2x8x1xf32> to vector<2x8x8xf32>
    %126 = arith.subf %122, %125 : vector<2x8x8xf32>
    %127 = math.exp %126 : vector<2x8x8xf32>
    %cst_42 = arith.constant dense<0.000000e+00> : vector<2x8xf32>
    %128 = vector.multi_reduction <add>, %127, %cst_42 [2] : vector<2x8x8xf32> to vector<2x8xf32>
    %129 = vector.shape_cast %128 : vector<2x8xf32> to vector<2x8x1xf32>
    %130 = tpu.reciprocal %129 {approx = true} : vector<2x8x1xf32> -> vector<2x8x1xf32>
    %131 = vector.broadcast %130 : vector<2x8x1xf32> to vector<2x8x8xf32>
    %132 = arith.mulf %127, %131 : vector<2x8x8xf32>
    "tpu.trace_start"() <{level = 10 : i32, message = "bqk,bkd->bqd"}> : () -> ()
    %cst_43 = arith.constant dense<0.000000e+00> : vector<2x8x8xf32>
    %133 = tpu.matmul %132, %117, %cst_43 {dimension_numbers = #tpu.dot_dimension_numbers<[2], [1], [1], [2], [0, 0, 0, 1, 1, 2], [0], [0]>} : vector<2x8x8xf32>, vector<2x8x8xf32>, vector<2x8x8xf32> -> vector<2x8x8xf32>
    "tpu.trace_stop"() : () -> ()
    %134 = tpu.concatenate %70, %91, %112, %133 in 2 : vector<2x8x8xf32>, vector<2x8x8xf32>, vector<2x8x8xf32>, vector<2x8x8xf32> -> vector<2x8x32xf32>
    %135 = vector.shape_cast %134 : vector<2x8x32xf32> to vector<16x32xf32>
    %c0_44 = arith.constant 0 : index
    %c0_45 = arith.constant 0 : index
    %c0_46 = arith.constant 0 : index
    %136 = vector.load %arg8[%c0_44, %c0_45, %c0_46] : memref<1x32x32xf32, #tpu.memory_space<vmem>>, vector<1x32x32xf32>
    %137 = vector.shape_cast %136 : vector<1x32x32xf32> to vector<32x32xf32>
    %cst_47 = arith.constant dense<0.000000e+00> : vector<16x32xf32>
    %138 = tpu.matmul %135, %137, %cst_47 {dimension_numbers = #tpu.dot_dimension_numbers<[1], [0], [0], [1], [0, 0, 1, 1], [], []>} : vector<16x32xf32>, vector<32x32xf32>, vector<16x32xf32> -> vector<16x32xf32>
    %c0_48 = arith.constant 0 : index
    %c0_49 = arith.constant 0 : index
    %c0_50 = arith.constant 0 : index
    %139 = vector.load %arg9[%c0_48, %c0_49, %c0_50] : memref<1x1x32xf32, #tpu.memory_space<vmem>>, vector<1x1x32xf32>
    %140 = vector.shape_cast %139 : vector<1x1x32xf32> to vector<1x32xf32>
    %141 = vector.broadcast %140 : vector<1x32xf32> to vector<16x32xf32>
    %142 = arith.addf %138, %141 : vector<16x32xf32>
    %143 = vector.shape_cast %142 : vector<16x32xf32> to vector<2x8x32xf32>
    %144 = arith.addf %3, %143 : vector<2x8x32xf32>
    %c0_51 = arith.constant 0 : index
    %c0_52 = arith.constant 0 : index
    %c0_53 = arith.constant 0 : index
    %145 = vector.load %arg10[%c0_51, %c0_52, %c0_53] : memref<1x1x32xf32, #tpu.memory_space<vmem>>, vector<1x1x32xf32>
    %146 = vector.shape_cast %145 : vector<1x1x32xf32> to vector<1x32xf32>
    %c0_54 = arith.constant 0 : index
    %c0_55 = arith.constant 0 : index
    %c0_56 = arith.constant 0 : index
    %147 = vector.load %arg11[%c0_54, %c0_55, %c0_56] : memref<1x1x32xf32, #tpu.memory_space<vmem>>, vector<1x1x32xf32>
    %148 = vector.shape_cast %147 : vector<1x1x32xf32> to vector<1x32xf32>
    %cst_57 = arith.constant dense<0.000000e+00> : vector<2x8xf32>
    %149 = vector.multi_reduction <add>, %144, %cst_57 [2] : vector<2x8x32xf32> to vector<2x8xf32>
    %150 = vector.shape_cast %149 : vector<2x8xf32> to vector<2x8x1xf32>
    %cst_58 = arith.constant 3.200000e+01 : f32
    %151 = vector.broadcast %cst_58 : f32 to vector<2x8x1xf32>
    %152 = arith.divf %150, %151 : vector<2x8x1xf32>
    %153 = vector.broadcast %152 : vector<2x8x1xf32> to vector<2x8x32xf32>
    %154 = arith.subf %144, %153 : vector<2x8x32xf32>
    %155 = arith.mulf %154, %154 : vector<2x8x32xf32>
    %cst_59 = arith.constant dense<0.000000e+00> : vector<2x8xf32>
    %156 = vector.multi_reduction <add>, %155, %cst_59 [2] : vector<2x8x32xf32> to vector<2x8xf32>
    %157 = vector.shape_cast %156 : vector<2x8xf32> to vector<2x8x1xf32>
    %cst_60 = arith.constant 3.200000e+01 : f32
    %158 = vector.broadcast %cst_60 : f32 to vector<2x8x1xf32>
    %159 = arith.divf %157, %158 : vector<2x8x1xf32>
    %160 = vector.broadcast %152 : vector<2x8x1xf32> to vector<2x8x32xf32>
    %161 = arith.subf %144, %160 : vector<2x8x32xf32>
    %cst_61 = arith.constant 9.99999974E-6 : f32
    %162 = vector.broadcast %cst_61 : f32 to vector<2x8x1xf32>
    %163 = arith.addf %159, %162 : vector<2x8x1xf32>
    %164 = math.rsqrt %163 : vector<2x8x1xf32>
    %165 = vector.broadcast %164 : vector<2x8x1xf32> to vector<2x8x32xf32>
    %166 = arith.mulf %161, %165 : vector<2x8x32xf32>
    %167 = vector.shape_cast %146 : vector<1x32xf32> to vector<1x1x32xf32>
    %168 = vector.broadcast %167 : vector<1x1x32xf32> to vector<2x8x32xf32>
    %169 = arith.mulf %166, %168 : vector<2x8x32xf32>
    %170 = vector.shape_cast %148 : vector<1x32xf32> to vector<1x1x32xf32>
    %171 = vector.broadcast %170 : vector<1x1x32xf32> to vector<2x8x32xf32>
    %172 = arith.addf %169, %171 : vector<2x8x32xf32>
    %173 = vector.shape_cast %172 : vector<2x8x32xf32> to vector<16x32xf32>
    %c0_62 = arith.constant 0 : index
    %c0_63 = arith.constant 0 : index
    %c0_64 = arith.constant 0 : index
    %174 = vector.load %arg12[%c0_62, %c0_63, %c0_64] : memref<1x32x128xf32, #tpu.memory_space<vmem>>, vector<1x32x128xf32>
    %175 = vector.shape_cast %174 : vector<1x32x128xf32> to vector<32x128xf32>
    %cst_65 = arith.constant dense<0.000000e+00> : vector<16x128xf32>
    %176 = tpu.matmul %173, %175, %cst_65 {dimension_numbers = #tpu.dot_dimension_numbers<[1], [0], [0], [1], [0, 0, 1, 1], [], []>} : vector<16x32xf32>, vector<32x128xf32>, vector<16x128xf32> -> vector<16x128xf32>
    %c0_66 = arith.constant 0 : index
    %c0_67 = arith.constant 0 : index
    %c0_68 = arith.constant 0 : index
    %177 = vector.load %arg13[%c0_66, %c0_67, %c0_68] : memref<1x1x128xf32, #tpu.memory_space<vmem>>, vector<1x1x128xf32>
    %178 = vector.shape_cast %177 : vector<1x1x128xf32> to vector<1x128xf32>
    %179 = vector.broadcast %178 : vector<1x128xf32> to vector<16x128xf32>
    %180 = arith.addf %176, %179 : vector<16x128xf32>
    %cst_69 = arith.constant 5.000000e-01 : f32
    %181 = vector.broadcast %cst_69 : f32 to vector<16x128xf32>
    %182 = arith.mulf %181, %180 : vector<16x128xf32>
    %cst_70 = arith.constant 2.000000e+00 : f32
    %183 = math.sqrt %cst_70 : f32
    %184 = vector.broadcast %183 : f32 to vector<16x128xf32>
    %185 = arith.divf %180, %184 : vector<16x128xf32>
    %186 = math.erf %185 : vector<16x128xf32>
    %cst_71 = arith.constant 1.000000e+00 : f32
    %187 = vector.broadcast %cst_71 : f32 to vector<16x128xf32>
    %188 = arith.addf %187, %186 : vector<16x128xf32>
    %189 = arith.mulf %182, %188 : vector<16x128xf32>
    %c0_72 = arith.constant 0 : index
    %c0_73 = arith.constant 0 : index
    %c0_74 = arith.constant 0 : index
    %190 = vector.load %arg14[%c0_72, %c0_73, %c0_74] : memref<1x128x32xf32, #tpu.memory_space<vmem>>, vector<1x128x32xf32>
    %191 = vector.shape_cast %190 : vector<1x128x32xf32> to vector<128x32xf32>
    %cst_75 = arith.constant dense<0.000000e+00> : vector<16x32xf32>
    %192 = tpu.matmul %189, %191, %cst_75 {dimension_numbers = #tpu.dot_dimension_numbers<[1], [0], [0], [1], [0, 0, 1, 1], [], []>} : vector<16x128xf32>, vector<128x32xf32>, vector<16x32xf32> -> vector<16x32xf32>
    %c0_76 = arith.constant 0 : index
    %c0_77 = arith.constant 0 : index
    %c0_78 = arith.constant 0 : index
    %193 = vector.load %arg15[%c0_76, %c0_77, %c0_78] : memref<1x1x32xf32, #tpu.memory_space<vmem>>, vector<1x1x32xf32>
    %194 = vector.shape_cast %193 : vector<1x1x32xf32> to vector<1x32xf32>
    %195 = vector.broadcast %194 : vector<1x32xf32> to vector<16x32xf32>
    %196 = arith.addf %192, %195 : vector<16x32xf32>
    %197 = vector.shape_cast %196 : vector<16x32xf32> to vector<2x8x32xf32>
    %198 = arith.addf %144, %197 : vector<2x8x32xf32>
    %c0_79 = arith.constant 0 : index
    %c0_80 = arith.constant 0 : index
    %c0_81 = arith.constant 0 : index
    %199 = vector.load %arg16[%c0_79, %c0_80, %c0_81] : memref<2x8x32xf32, #tpu.memory_space<vmem>>, vector<2x8x32xf32>
    tpu.vector_store %arg16[%c0_79, %c0_80, %c0_81], %198 {strides = array<i32>} : memref<2x8x32xf32, #tpu.memory_space<vmem>>, vector<2x8x32xf32>,
    %c1_i32 = arith.constant 1 : i32
    %200 = arith.cmpi eq, %arg0, %c1_i32 : i32
    %201 = arith.extui %200 : i1 to i32
    %c0_i32_82 = arith.constant 0 : i32
    %202 = arith.cmpi ne, %201, %c0_i32_82 : i32
    scf.if %202 {
      %c0_83 = arith.constant 0 : index
      %c0_84 = arith.constant 0 : index
      %203 = vector.load %arg2[%c0_83, %c0_84] : memref<1x32xf32, #tpu.memory_space<vmem>>, vector<1x32xf32>
      %c0_85 = arith.constant 0 : index
      %c0_86 = arith.constant 0 : index
      %204 = vector.load %arg3[%c0_85, %c0_86] : memref<1x32xf32, #tpu.memory_space<vmem>>, vector<1x32xf32>
      %cst_87 = arith.constant dense<0.000000e+00> : vector<2x8xf32>
      %205 = vector.multi_reduction <add>, %198, %cst_87 [2] : vector<2x8x32xf32> to vector<2x8xf32>
      %206 = vector.shape_cast %205 : vector<2x8xf32> to vector<2x8x1xf32>
      %cst_88 = arith.constant 3.200000e+01 : f32
      %207 = vector.broadcast %cst_88 : f32 to vector<2x8x1xf32>
      %208 = arith.divf %206, %207 : vector<2x8x1xf32>
      %209 = vector.broadcast %208 : vector<2x8x1xf32> to vector<2x8x32xf32>
      %210 = arith.subf %198, %209 : vector<2x8x32xf32>
      %211 = arith.mulf %210, %210 : vector<2x8x32xf32>
      %cst_89 = arith.constant dense<0.000000e+00> : vector<2x8xf32>
      %212 = vector.multi_reduction <add>, %211, %cst_89 [2] : vector<2x8x32xf32> to vector<2x8xf32>
      %213 = vector.shape_cast %212 : vector<2x8xf32> to vector<2x8x1xf32>
      %cst_90 = arith.constant 3.200000e+01 : f32
      %214 = vector.broadcast %cst_90 : f32 to vector<2x8x1xf32>
      %215 = arith.divf %213, %214 : vector<2x8x1xf32>
      %216 = vector.broadcast %208 : vector<2x8x1xf32> to vector<2x8x32xf32>
      %217 = arith.subf %198, %216 : vector<2x8x32xf32>
      %cst_91 = arith.constant 9.99999974E-6 : f32
      %218 = vector.broadcast %cst_91 : f32 to vector<2x8x1xf32>
      %219 = arith.addf %215, %218 : vector<2x8x1xf32>
      %220 = math.rsqrt %219 : vector<2x8x1xf32>
      %221 = vector.broadcast %220 : vector<2x8x1xf32> to vector<2x8x32xf32>
      %222 = arith.mulf %217, %221 : vector<2x8x32xf32>
      %223 = vector.shape_cast %203 : vector<1x32xf32> to vector<1x1x32xf32>
      %224 = vector.broadcast %223 : vector<1x1x32xf32> to vector<2x8x32xf32>
      %225 = arith.mulf %222, %224 : vector<2x8x32xf32>
      %226 = vector.shape_cast %204 : vector<1x32xf32> to vector<1x1x32xf32>
      %227 = vector.broadcast %226 : vector<1x1x32xf32> to vector<2x8x32xf32>
      %228 = arith.addf %225, %227 : vector<2x8x32xf32>
      %c0_92 = arith.constant 0 : index
      %c0_93 = arith.constant 0 : index
      %c0_94 = arith.constant 0 : index
      %229 = vector.load %arg16[%c0_92, %c0_93, %c0_94] : memref<2x8x32xf32, #tpu.memory_space<vmem>>, vector<2x8x32xf32>
      tpu.vector_store %arg16[%c0_92, %c0_93, %c0_94], %228 {strides = array<i32>} : memref<2x8x32xf32, #tpu.memory_space<vmem>>, vector<2x8x32xf32>,
    } else {
    }
    return
  }
  func.func @transform_0(%arg0: i32) -> (i32, i32, i32) {
    %c0_i32 = arith.constant 0 : i32
    %c0_i32_0 = arith.constant 0 : i32
    %c0_i32_1 = arith.constant 0 : i32
    %c0_i32_2 = arith.constant 0 : i32
    return %c0_i32, %c0_i32_0, %c0_i32_1 : i32, i32, i32
  }
  func.func @transform_1(%arg0: i32) -> (i32, i32) {
    %c0_i32 = arith.constant 0 : i32
    %c0_i32_0 = arith.constant 0 : i32
    %c0_i32_1 = arith.constant 0 : i32
    return %c0_i32, %c0_i32_0 : i32, i32
  }
  func.func @transform_2(%arg0: i32) -> (i32, i32) {
    %c0_i32 = arith.constant 0 : i32
    %c0_i32_0 = arith.constant 0 : i32
    %c0_i32_1 = arith.constant 0 : i32
    return %c0_i32, %c0_i32_0 : i32, i32
  }
  func.func @transform_3(%arg0: i32) -> (i32, i32, i32) {
    %c0_i32 = arith.constant 0 : i32
    %c0_i32_0 = arith.constant 0 : i32
    %c0_i32_1 = arith.constant 0 : i32
    return %arg0, %c0_i32, %c0_i32_0 : i32, i32, i32
  }
  func.func @transform_4(%arg0: i32) -> (i32, i32, i32) {
    %c0_i32 = arith.constant 0 : i32
    %c0_i32_0 = arith.constant 0 : i32
    %c0_i32_1 = arith.constant 0 : i32
    return %arg0, %c0_i32, %c0_i32_0 : i32, i32, i32
  }
  func.func @transform_5(%arg0: i32) -> (i32, i32, i32) {
    %c0_i32 = arith.constant 0 : i32
    %c0_i32_0 = arith.constant 0 : i32
    %c0_i32_1 = arith.constant 0 : i32
    return %arg0, %c0_i32, %c0_i32_0 : i32, i32, i32
  }
  func.func @transform_6(%arg0: i32) -> (i32, i32, i32) {
    %c0_i32 = arith.constant 0 : i32
    %c0_i32_0 = arith.constant 0 : i32
    %c0_i32_1 = arith.constant 0 : i32
    return %arg0, %c0_i32, %c0_i32_0 : i32, i32, i32
  }
  func.func @transform_7(%arg0: i32) -> (i32, i32, i32) {
    %c0_i32 = arith.constant 0 : i32
    %c0_i32_0 = arith.constant 0 : i32
    %c0_i32_1 = arith.constant 0 : i32
    return %arg0, %c0_i32, %c0_i32_0 : i32, i32, i32
  }
  func.func @transform_8(%arg0: i32) -> (i32, i32, i32) {
    %c0_i32 = arith.constant 0 : i32
    %c0_i32_0 = arith.constant 0 : i32
    %c0_i32_1 = arith.constant 0 : i32
    return %arg0, %c0_i32, %c0_i32_0 : i32, i32, i32
  }
  func.func @transform_9(%arg0: i32) -> (i32, i32, i32) {
    %c0_i32 = arith.constant 0 : i32
    %c0_i32_0 = arith.constant 0 : i32
    %c0_i32_1 = arith.constant 0 : i32
    return %arg0, %c0_i32, %c0_i32_0 : i32, i32, i32
  }
  func.func @transform_10(%arg0: i32) -> (i32, i32, i32) {
    %c0_i32 = arith.constant 0 : i32
    %c0_i32_0 = arith.constant 0 : i32
    %c0_i32_1 = arith.constant 0 : i32
    return %arg0, %c0_i32, %c0_i32_0 : i32, i32, i32
  }
  func.func @transform_11(%arg0: i32) -> (i32, i32, i32) {
    %c0_i32 = arith.constant 0 : i32
    %c0_i32_0 = arith.constant 0 : i32
    %c0_i32_1 = arith.constant 0 : i32
    return %arg0, %c0_i32, %c0_i32_0 : i32, i32, i32
  }
  func.func @transform_12(%arg0: i32) -> (i32, i32, i32) {
    %c0_i32 = arith.constant 0 : i32
    %c0_i32_0 = arith.constant 0 : i32
    %c0_i32_1 = arith.constant 0 : i32
    return %arg0, %c0_i32, %c0_i32_0 : i32, i32, i32
  }
  func.func @transform_13(%arg0: i32) -> (i32, i32, i32) {
    %c0_i32 = arith.constant 0 : i32
    %c0_i32_0 = arith.constant 0 : i32
    %c0_i32_1 = arith.constant 0 : i32
    return %arg0, %c0_i32, %c0_i32_0 : i32, i32, i32
  }
  func.func @transform_14(%arg0: i32) -> (i32, i32, i32) {
    %c0_i32 = arith.constant 0 : i32
    %c0_i32_0 = arith.constant 0 : i32
    %c0_i32_1 = arith.constant 0 : i32
    return %arg0, %c0_i32, %c0_i32_0 : i32, i32, i32
  }
  func.func @transform_15(%arg0: i32) -> (i32, i32, i32) {
    %c0_i32 = arith.constant 0 : i32
    %c0_i32_0 = arith.constant 0 : i32
    %c0_i32_1 = arith.constant 0 : i32
    %c0_i32_2 = arith.constant 0 : i32
    return %c0_i32, %c0_i32_0, %c0_i32_1 : i32, i32, i32
  }
}

</mosaic_0001>

<llo_original>
// kernel: tpu_custom_call.1
$region0: #{tpu_custom_call.1}
  #allocation0 [shape = 'u32[]', space=smem, size = 0x4, offset = 0x4, fixed_abs, tag = 'smem constant byte address 0x4 - core index']
  #allocation1 [shape = 'u32[144,128]{1,0:T(1,128)}', space=vmem, size = 0x12000, scoped, tag = 'internal scratch']
  %s0 = inlined_call_operand.vmem [shape: f32[2,8,32], index: 0, kind: input, shape index: {}]
  %s1 = inlined_call_operand.vmem [shape: f32[1,32], index: 1, kind: input, shape index: {}]
  %s2 = inlined_call_operand.vmem [shape: f32[1,32], index: 2, kind: input, shape index: {}]
  %s3 = inlined_call_operand.vmem [shape: f32[2,1,32], index: 3, kind: input, shape index: {}]
  %s4 = inlined_call_operand.vmem [shape: f32[2,1,32], index: 4, kind: input, shape index: {}]
  %s5 = inlined_call_operand.vmem [shape: f32[2,32,96], index: 5, kind: input, shape index: {}]
  %s6 = inlined_call_operand.vmem [shape: f32[2,1,96], index: 6, kind: input, shape index: {}]
  %s7 = inlined_call_operand.vmem [shape: f32[2,32,32], index: 7, kind: input, shape index: {}]
  %s8 = inlined_call_operand.vmem [shape: f32[2,1,32], index: 8, kind: input, shape index: {}]
  %s9 = inlined_call_operand.vmem [shape: f32[2,1,32], index: 9, kind: input, shape index: {}]
  %s10 = inlined_call_operand.vmem [shape: f32[2,1,32], index: 10, kind: input, shape index: {}]
  %s11 = inlined_call_operand.vmem [shape: f32[2,32,128], index: 11, kind: input, shape index: {}]
  %s12 = inlined_call_operand.vmem [shape: f32[2,1,128], index: 12, kind: input, shape index: {}]
  %s13 = inlined_call_operand.vmem [shape: f32[2,128,32], index: 13, kind: input, shape index: {}]
  %s14 = inlined_call_operand.vmem [shape: f32[2,1,32], index: 14, kind: input, shape index: {}]
  %s15 = inlined_call_operand.hbm [shape: f32[2,8,32], index: 15, kind: output, shape index: {}]
  %s16 = sld [smem:[#allocation0]]
  $region101: #{tpu_custom_call.1} parent=0
    _
  %s18 = ssub.s32 1, %s16
  %s19 = scalar_select 0, %s18, %s16
  $region1: #{tpu_custom_call.1} parent=0
    #allocation2 [shape = 'u8[8192]{0}', space=vmem, size = 0x2000, scoped, tag = 'output window, operand 0, single buffered']
    #allocation3 [shape = 's32[2]{0}', space=sflag, size = 0x8, scoped, tag = 'scoped memory for tpu_custom_call.1']
    %20 = vsyncpa [#allocation3], 0
    loop: start=0, step=1, limit=4
    $region2: #{tpu_custom_call.1} parent=1 // loop_pre_header
      _
    $region3: #{tpu_custom_call.1} parent=1 // loop_header
      %s22 = sphi 0, %s26
      %p23 = scmp.ge.s32.totalorder %s22, 4
      %s30 = sphi 0, %s30
      %s32 = sphi 0, %s30
      %s33 = sphi 0, %s32
      %s47 = sphi 0, %s33
      %s51 = sphi 0, %s51
      %s53 = sphi 0, %s51
      %s54 = sphi 0, %s53
      %s68 = sphi 0, %s54
      %s72 = sphi 0, %s72
      %s74 = sphi 0, %s72
      %s75 = sphi 0, %s74
      %s89 = sphi 0, %s75
      %s95 = sphi 0, %s97
      %s98 = sphi 0, %s95
      %s99 = sphi 0, %s98
      %s115 = sphi 0, %s99
      %s121 = sphi 0, %s123
      %s124 = sphi 0, %s121
      %s125 = sphi 0, %s124
      %s141 = sphi 0, %s125
      %s147 = sphi 0, %s149
      %s150 = sphi 0, %s147
      %s151 = sphi 0, %s150
      %s167 = sphi 0, %s151
      %s173 = sphi 0, %s175
      %s176 = sphi 0, %s173
      %s177 = sphi 0, %s176
      %s193 = sphi 0, %s177
      %s199 = sphi 0, %s201
      %s202 = sphi 0, %s199
      %s203 = sphi 0, %s202
      %s219 = sphi 0, %s203
      %s225 = sphi 0, %s227
      %s228 = sphi 0, %s225
      %s229 = sphi 0, %s228
      %s245 = sphi 0, %s229
      %s251 = sphi 0, %s253
      %s254 = sphi 0, %s251
      %s255 = sphi 0, %s254
      %s271 = sphi 0, %s255
      %s277 = sphi 0, %s279
      %s280 = sphi 0, %s277
      %s281 = sphi 0, %s280
      %s297 = sphi 0, %s281
      %s303 = sphi 0, %s305
      %s306 = sphi 0, %s303
      %s307 = sphi 0, %s306
      %s323 = sphi 0, %s307
      %s329 = sphi 0, %s331
      %s332 = sphi 0, %s329
      %s333 = sphi 0, %s332
      %s349 = sphi 0, %s333
      %s355 = sphi 0, %s357
      %s358 = sphi 0, %s355
      %s359 = sphi 0, %s358
      %s375 = sphi 0, %s359
      %s381 = sphi 0, %s383
      %s384 = sphi 0, %s381
      %s385 = sphi 0, %s384
      %s401 = sphi 0, %s385
      %s405 = sphi 0, %s405
      %s407 = sphi 0, %s405
      %s408 = sphi 0, %s407
      %s422 = sphi 0, %s408
    $region4: #{tpu_custom_call.1} parent=1 // loop_header_branch
      %25 = sbr.rel (%p23) target = $region8
    $region5: #{tpu_custom_call.1} parent=1 // loop_body
      %s27 = ssub.s32 %s22, 1
      %s28 = ssub.s32 %s22, 2
      %s29 = sadd.s32 %s22, 1
      %s31 = sadd.s32 %s30, 1
      %p34 = scmp.eq.s32.totalorder %s22, 1
      %p35 = scmp.ne.s32.totalorder %s30, %s32
      %p36 = scmp.eq.s32.totalorder %s22, 0
      %p37 = por %p35, %p36
      %p38 = scmp.ne.s32.totalorder %s30, %s32
      %p39 = scmp.eq.s32.totalorder %s27, 1
      %p40 = por %p38, %p39
      %p41 = scmp.ne.s32.totalorder %s32, %s33
      %p42 = scmp.eq.s32.totalorder %s27, 0
      %p43 = por %p41, %p42
      %p44 = scmp.ne.s32.totalorder %s32, %s33
      %p45 = scmp.eq.s32.totalorder %s28, 1
      %p46 = por %p44, %p45
      %p48 = scmp.ne.s32.totalorder %s33, %s47
      %p49 = scmp.eq.s32.totalorder %s28, 0
      %p50 = por %p48, %p49
      %s52 = sadd.s32 %s51, 1
      %p55 = scmp.eq.s32.totalorder %s22, 1
      %p56 = scmp.ne.s32.totalorder %s51, %s53
      %p57 = scmp.eq.s32.totalorder %s22, 0
      %p58 = por %p56, %p57
      %p59 = scmp.ne.s32.totalorder %s51, %s53
      %p60 = scmp.eq.s32.totalorder %s27, 1
      %p61 = por %p59, %p60
      %p62 = scmp.ne.s32.totalorder %s53, %s54
      %p63 = scmp.eq.s32.totalorder %s27, 0
      %p64 = por %p62, %p63
      %p65 = scmp.ne.s32.totalorder %s53, %s54
      %p66 = scmp.eq.s32.totalorder %s28, 1
      %p67 = por %p65, %p66
      %p69 = scmp.ne.s32.totalorder %s54, %s68
      %p70 = scmp.eq.s32.totalorder %s28, 0
      %p71 = por %p69, %p70
      %s73 = sadd.s32 %s72, 1
      %p76 = scmp.eq.s32.totalorder %s22, 1
      %p77 = scmp.ne.s32.totalorder %s72, %s74
      %p78 = scmp.eq.s32.totalorder %s22, 0
      %p79 = por %p77, %p78
      %p80 = scmp.ne.s32.totalorder %s72, %s74
      %p81 = scmp.eq.s32.totalorder %s27, 1
      %p82 = por %p80, %p81
      %p83 = scmp.ne.s32.totalorder %s74, %s75
      %p84 = scmp.eq.s32.totalorder %s27, 0
      %p85 = por %p83, %p84
      %p86 = scmp.ne.s32.totalorder %s74, %s75
      %p87 = scmp.eq.s32.totalorder %s28, 1
      %p88 = por %p86, %p87
      %p90 = scmp.ne.s32.totalorder %s75, %s89
      %p91 = scmp.eq.s32.totalorder %s28, 0
      %p92 = por %p90, %p91
      %s93 = ssub.s32 %s22, %s29
      %p94 = scmp.eq.s32.totalorder %s93, 0
      %s96 = sadd.s32 %s95, 1
      %s97 = scalar_select %p94, %s95, %s96
      %p100 = pneg %p94
      %p101 = scmp.eq.s32.totalorder %s22, 1
      %p102 = por %p100, %p101
      %p103 = scmp.ne.s32.totalorder %s95, %s98
      %p104 = scmp.eq.s32.totalorder %s22, 0
      %p105 = por %p103, %p104
      %p106 = scmp.ne.s32.totalorder %s95, %s98
      %p107 = scmp.eq.s32.totalorder %s27, 1
      %p108 = por %p106, %p107
      %p109 = scmp.ne.s32.totalorder %s98, %s99
      %p110 = scmp.eq.s32.totalorder %s27, 0
      %p111 = por %p109, %p110
      %p112 = scmp.ne.s32.totalorder %s98, %s99
      %p113 = scmp.eq.s32.totalorder %s28, 1
      %p114 = por %p112, %p113
      %p116 = scmp.ne.s32.totalorder %s99, %s115
      %p117 = scmp.eq.s32.totalorder %s28, 0
      %p118 = por %p116, %p117
      %s119 = ssub.s32 %s22, %s29
      %p120 = scmp.eq.s32.totalorder %s119, 0
      %s122 = sadd.s32 %s121, 1
      %s123 = scalar_select %p120, %s121, %s122
      %p126 = pneg %p120
      %p127 = scmp.eq.s32.totalorder %s22, 1
      %p128 = por %p126, %p127
      %p129 = scmp.ne.s32.totalorder %s121, %s124
      %p130 = scmp.eq.s32.totalorder %s22, 0
      %p131 = por %p129, %p130
      %p132 = scmp.ne.s32.totalorder %s121, %s124
      %p133 = scmp.eq.s32.totalorder %s27, 1
      %p134 = por %p132, %p133
      %p135 = scmp.ne.s32.totalorder %s124, %s125
      %p136 = scmp.eq.s32.totalorder %s27, 0
      %p137 = por %p135, %p136
      %p138 = scmp.ne.s32.totalorder %s124, %s125
      %p139 = scmp.eq.s32.totalorder %s28, 1
      %p140 = por %p138, %p139
      %p142 = scmp.ne.s32.totalorder %s125, %s141
      %p143 = scmp.eq.s32.totalorder %s28, 0
      %p144 = por %p142, %p143
      %s145 = ssub.s32 %s22, %s29
      %p146 = scmp.eq.s32.totalorder %s145, 0
      %s148 = sadd.s32 %s147, 1
      %s149 = scalar_select %p146, %s147, %s148
      %p152 = pneg %p146
      %p153 = scmp.eq.s32.totalorder %s22, 1
      %p154 = por %p152, %p153
      %p155 = scmp.ne.s32.totalorder %s147, %s150
      %p156 = scmp.eq.s32.totalorder %s22, 0
      %p157 = por %p155, %p156
      %p158 = scmp.ne.s32.totalorder %s147, %s150
      %p159 = scmp.eq.s32.totalorder %s27, 1
      %p160 = por %p158, %p159
      %p161 = scmp.ne.s32.totalorder %s150, %s151
      %p162 = scmp.eq.s32.totalorder %s27, 0
      %p163 = por %p161, %p162
      %p164 = scmp.ne.s32.totalorder %s150, %s151
      %p165 = scmp.eq.s32.totalorder %s28, 1
      %p166 = por %p164, %p165
      %p168 = scmp.ne.s32.totalorder %s151, %s167
      %p169 = scmp.eq.s32.totalorder %s28, 0
      %p170 = por %p168, %p169
      %s171 = ssub.s32 %s22, %s29
      %p172 = scmp.eq.s32.totalorder %s171, 0
      %s174 = sadd.s32 %s173, 1
      %s175 = scalar_select %p172, %s173, %s174
      %p178 = pneg %p172
      %p179 = scmp.eq.s32.totalorder %s22, 1
      %p180 = por %p178, %p179
      %p181 = scmp.ne.s32.totalorder %s173, %s176
      %p182 = scmp.eq.s32.totalorder %s22, 0
      %p183 = por %p181, %p182
      %p184 = scmp.ne.s32.totalorder %s173, %s176
      %p185 = scmp.eq.s32.totalorder %s27, 1
      %p186 = por %p184, %p185
      %p187 = scmp.ne.s32.totalorder %s176, %s177
      %p188 = scmp.eq.s32.totalorder %s27, 0
      %p189 = por %p187, %p188
      %p190 = scmp.ne.s32.totalorder %s176, %s177
      %p191 = scmp.eq.s32.totalorder %s28, 1
      %p192 = por %p190, %p191
      %p194 = scmp.ne.s32.totalorder %s177, %s193
      %p195 = scmp.eq.s32.totalorder %s28, 0
      %p196 = por %p194, %p195
      %s197 = ssub.s32 %s22, %s29
      %p198 = scmp.eq.s32.totalorder %s197, 0
      %s200 = sadd.s32 %s199, 1
      %s201 = scalar_select %p198, %s199, %s200
      %p204 = pneg %p198
      %p205 = scmp.eq.s32.totalorder %s22, 1
      %p206 = por %p204, %p205
      %p207 = scmp.ne.s32.totalorder %s199, %s202
      %p208 = scmp.eq.s32.totalorder %s22, 0
      %p209 = por %p207, %p208
      %p210 = scmp.ne.s32.totalorder %s199, %s202
      %p211 = scmp.eq.s32.totalorder %s27, 1
      %p212 = por %p210, %p211
      %p213 = scmp.ne.s32.totalorder %s202, %s203
      %p214 = scmp.eq.s32.totalorder %s27, 0
      %p215 = por %p213, %p214
      %p216 = scmp.ne.s32.totalorder %s202, %s203
      %p217 = scmp.eq.s32.totalorder %s28, 1
      %p218 = por %p216, %p217
      %p220 = scmp.ne.s32.totalorder %s203, %s219
      %p221 = scmp.eq.s32.totalorder %s28, 0
      %p222 = por %p220, %p221
      %s223 = ssub.s32 %s22, %s29
      %p224 = scmp.eq.s32.totalorder %s223, 0
      %s226 = sadd.s32 %s225, 1
      %s227 = scalar_select %p224, %s225, %s226
      %p230 = pneg %p224
      %p231 = scmp.eq.s32.totalorder %s22, 1
      %p232 = por %p230, %p231
      %p233 = scmp.ne.s32.totalorder %s225, %s228
      %p234 = scmp.eq.s32.totalorder %s22, 0
      %p235 = por %p233, %p234
      %p236 = scmp.ne.s32.totalorder %s225, %s228
      %p237 = scmp.eq.s32.totalorder %s27, 1
      %p238 = por %p236, %p237
      %p239 = scmp.ne.s32.totalorder %s228, %s229
      %p240 = scmp.eq.s32.totalorder %s27, 0
      %p241 = por %p239, %p240
      %p242 = scmp.ne.s32.totalorder %s228, %s229
      %p243 = scmp.eq.s32.totalorder %s28, 1
      %p244 = por %p242, %p243
      %p246 = scmp.ne.s32.totalorder %s229, %s245
      %p247 = scmp.eq.s32.totalorder %s28, 0
      %p248 = por %p246, %p247
      %s249 = ssub.s32 %s22, %s29
      %p250 = scmp.eq.s32.totalorder %s249, 0
      %s252 = sadd.s32 %s251, 1
      %s253 = scalar_select %p250, %s251, %s252
      %p256 = pneg %p250
      %p257 = scmp.eq.s32.totalorder %s22, 1
      %p258 = por %p256, %p257
      %p259 = scmp.ne.s32.totalorder %s251, %s254
      %p260 = scmp.eq.s32.totalorder %s22, 0
      %p261 = por %p259, %p260
      %p262 = scmp.ne.s32.totalorder %s251, %s254
      %p263 = scmp.eq.s32.totalorder %s27, 1
      %p264 = por %p262, %p263
      %p265 = scmp.ne.s32.totalorder %s254, %s255
      %p266 = scmp.eq.s32.totalorder %s27, 0
      %p267 = por %p265, %p266
      %p268 = scmp.ne.s32.totalorder %s254, %s255
      %p269 = scmp.eq.s32.totalorder %s28, 1
      %p270 = por %p268, %p269
      %p272 = scmp.ne.s32.totalorder %s255, %s271
      %p273 = scmp.eq.s32.totalorder %s28, 0
      %p274 = por %p272, %p273
      %s275 = ssub.s32 %s22, %s29
      %p276 = scmp.eq.s32.totalorder %s275, 0
      %s278 = sadd.s32 %s277, 1
      %s279 = scalar_select %p276, %s277, %s278
      %p282 = pneg %p276
      %p283 = scmp.eq.s32.totalorder %s22, 1
      %p284 = por %p282, %p283
      %p285 = scmp.ne.s32.totalorder %s277, %s280
      %p286 = scmp.eq.s32.totalorder %s22, 0
      %p287 = por %p285, %p286
      %p288 = scmp.ne.s32.totalorder %s277, %s280
      %p289 = scmp.eq.s32.totalorder %s27, 1
      %p290 = por %p288, %p289
      %p291 = scmp.ne.s32.totalorder %s280, %s281
      %p292 = scmp.eq.s32.totalorder %s27, 0
      %p293 = por %p291, %p292
      %p294 = scmp.ne.s32.totalorder %s280, %s281
      %p295 = scmp.eq.s32.totalorder %s28, 1
      %p296 = por %p294, %p295
      %p298 = scmp.ne.s32.totalorder %s281, %s297
      %p299 = scmp.eq.s32.totalorder %s28, 0
      %p300 = por %p298, %p299
      %s301 = ssub.s32 %s22, %s29
      %p302 = scmp.eq.s32.totalorder %s301, 0
      %s304 = sadd.s32 %s303, 1
      %s305 = scalar_select %p302, %s303, %s304
      %p308 = pneg %p302
      %p309 = scmp.eq.s32.totalorder %s22, 1
      %p310 = por %p308, %p309
      %p311 = scmp.ne.s32.totalorder %s303, %s306
      %p312 = scmp.eq.s32.totalorder %s22, 0
      %p313 = por %p311, %p312
      %p314 = scmp.ne.s32.totalorder %s303, %s306
      %p315 = scmp.eq.s32.totalorder %s27, 1
      %p316 = por %p314, %p315
      %p317 = scmp.ne.s32.totalorder %s306, %s307
      %p318 = scmp.eq.s32.totalorder %s27, 0
      %p319 = por %p317, %p318
      %p320 = scmp.ne.s32.totalorder %s306, %s307
      %p321 = scmp.eq.s32.totalorder %s28, 1
      %p322 = por %p320, %p321
      %p324 = scmp.ne.s32.totalorder %s307, %s323
      %p325 = scmp.eq.s32.totalorder %s28, 0
      %p326 = por %p324, %p325
      %s327 = ssub.s32 %s22, %s29
      %p328 = scmp.eq.s32.totalorder %s327, 0
      %s330 = sadd.s32 %s329, 1
      %s331 = scalar_select %p328, %s329, %s330
      %p334 = pneg %p328
      %p335 = scmp.eq.s32.totalorder %s22, 1
      %p336 = por %p334, %p335
      %p337 = scmp.ne.s32.totalorder %s329, %s332
      %p338 = scmp.eq.s32.totalorder %s22, 0
      %p339 = por %p337, %p338
      %p340 = scmp.ne.s32.totalorder %s329, %s332
      %p341 = scmp.eq.s32.totalorder %s27, 1
      %p342 = por %p340, %p341
      %p343 = scmp.ne.s32.totalorder %s332, %s333
      %p344 = scmp.eq.s32.totalorder %s27, 0
      %p345 = por %p343, %p344
      %p346 = scmp.ne.s32.totalorder %s332, %s333
      %p347 = scmp.eq.s32.totalorder %s28, 1
      %p348 = por %p346, %p347
      %p350 = scmp.ne.s32.totalorder %s333, %s349
      %p351 = scmp.eq.s32.totalorder %s28, 0
      %p352 = por %p350, %p351
      %s353 = ssub.s32 %s22, %s29
      %p354 = scmp.eq.s32.totalorder %s353, 0
      %s356 = sadd.s32 %s355, 1
      %s357 = scalar_select %p354, %s355, %s356
      %p360 = pneg %p354
      %p361 = scmp.eq.s32.totalorder %s22, 1
      %p362 = por %p360, %p361
      %p363 = scmp.ne.s32.totalorder %s355, %s358
      %p364 = scmp.eq.s32.totalorder %s22, 0
      %p365 = por %p363, %p364
      %p366 = scmp.ne.s32.totalorder %s355, %s358
      %p367 = scmp.eq.s32.totalorder %s27, 1
      %p368 = por %p366, %p367
      %p369 = scmp.ne.s32.totalorder %s358, %s359
      %p370 = scmp.eq.s32.totalorder %s27, 0
      %p371 = por %p369, %p370
      %p372 = scmp.ne.s32.totalorder %s358, %s359
      %p373 = scmp.eq.s32.totalorder %s28, 1
      %p374 = por %p372, %p373
      %p376 = scmp.ne.s32.totalorder %s359, %s375
      %p377 = scmp.eq.s32.totalorder %s28, 0
      %p378 = por %p376, %p377
      %s379 = ssub.s32 %s22, %s29
      %p380 = scmp.eq.s32.totalorder %s379, 0
      %s382 = sadd.s32 %s381, 1
      %s383 = scalar_select %p380, %s381, %s382
      %p386 = pneg %p380
      %p387 = scmp.eq.s32.totalorder %s22, 1
      %p388 = por %p386, %p387
      %p389 = scmp.ne.s32.totalorder %s381, %s384
      %p390 = scmp.eq.s32.totalorder %s22, 0
      %p391 = por %p389, %p390
      %p392 = scmp.ne.s32.totalorder %s381, %s384
      %p393 = scmp.eq.s32.totalorder %s27, 1
      %p394 = por %p392, %p393
      %p395 = scmp.ne.s32.totalorder %s384, %s385
      %p396 = scmp.eq.s32.totalorder %s27, 0
      %p397 = por %p395, %p396
      %p398 = scmp.ne.s32.totalorder %s384, %s385
      %p399 = scmp.eq.s32.totalorder %s28, 1
      %p400 = por %p398, %p399
      %p402 = scmp.ne.s32.totalorder %s385, %s401
      %p403 = scmp.eq.s32.totalorder %s28, 0
      %p404 = por %p402, %p403
      %s406 = sadd.s32 %s405, 1
      %p409 = scmp.eq.s32.totalorder %s22, 1
      %p410 = scmp.ne.s32.totalorder %s405, %s407
      %p411 = scmp.eq.s32.totalorder %s22, 0
      %p412 = por %p410, %p411
      %p413 = scmp.ne.s32.totalorder %s405, %s407
      %p414 = scmp.eq.s32.totalorder %s27, 1
      %p415 = por %p413, %p414
      %p416 = scmp.ne.s32.totalorder %s407, %s408
      %p417 = scmp.eq.s32.totalorder %s27, 0
      %p418 = por %p416, %p417
      %p419 = scmp.ne.s32.totalorder %s407, %s408
      %p420 = scmp.eq.s32.totalorder %s28, 1
      %p421 = por %p419, %p420
      %p423 = scmp.ne.s32.totalorder %s408, %s422
      %p424 = scmp.eq.s32.totalorder %s28, 0
      %p425 = por %p423, %p424
      %p426 = scmp.le.s32.totalorder 1, %s22
      %p427 = scmp.lt.s32.totalorder %s22, 3
      %p428 = pnand %p426, %p427
      %p429 = pneg %p428
      // Predicated region
      $region9: #{tpu_custom_call.1} parent=5 // pred_check
        _
      $region10: #{tpu_custom_call.1} parent=5 // pred_check_branch
        %431 = sbr.rel (%p428) target = $region12
      $region11: #{tpu_custom_call.1} parent=5 // pred_region
        %s432 = ssub.s32 %s22, 1
        // Predicated region
        $region13: #{tpu_custom_call.1} parent=11 // pred_check
          %p433 = pneg %p43
        $region14: #{tpu_custom_call.1} parent=11 // pred_check_branch
          %435 = sbr.rel (%p433) target = $region16
        $region15: #{tpu_custom_call.1} parent=11 // pred_region
          _
        $region16: #{tpu_custom_call.1} parent=11 // pred_fallthru
          _
        // Predicated region
        $region17: #{tpu_custom_call.1} parent=11 // pred_check
          %p436 = pneg %p64
        $region18: #{tpu_custom_call.1} parent=11 // pred_check_branch
          %438 = sbr.rel (%p436) target = $region20
        $region19: #{tpu_custom_call.1} parent=11 // pred_region
          _
        $region20: #{tpu_custom_call.1} parent=11 // pred_fallthru
          _
        // Predicated region
        $region21: #{tpu_custom_call.1} parent=11 // pred_check
          %p439 = pneg %p85
        $region22: #{tpu_custom_call.1} parent=11 // pred_check_branch
          %441 = sbr.rel (%p439) target = $region24
        $region23: #{tpu_custom_call.1} parent=11 // pred_region
          _
        $region24: #{tpu_custom_call.1} parent=11 // pred_fallthru
          _
      $region12: #{tpu_custom_call.1} parent=5 // pred_fallthru
        _
      %p442 = scmp.lt.s32.totalorder %s22, 2
      // Predicated region
      $region25: #{tpu_custom_call.1} parent=5 // pred_check
        %p443 = pneg %p442
      $region26: #{tpu_custom_call.1} parent=5 // pred_check_branch
        %445 = sbr.rel (%p443) target = $region28
      $region27: #{tpu_custom_call.1} parent=5 // pred_region
        // Predicated region
        $region29: #{tpu_custom_call.1} parent=27 // pred_check
          %p446 = pneg %p105
        $region30: #{tpu_custom_call.1} parent=27 // pred_check_branch
          %448 = sbr.rel (%p446) target = $region32
        $region31: #{tpu_custom_call.1} parent=27 // pred_region
          %p449 = scmp.lt.s32.totalorder %s22, 1
          %s450 = scalar_select %p449, %s22, 1
          %s451 = scalar_lea.vmem %s3, %s450
        $region32: #{tpu_custom_call.1} parent=27 // pred_fallthru
          _
        // Predicated region
        $region33: #{tpu_custom_call.1} parent=27 // pred_check
          %p452 = pneg %p131
        $region34: #{tpu_custom_call.1} parent=27 // pred_check_branch
          %454 = sbr.rel (%p452) target = $region36
        $region35: #{tpu_custom_call.1} parent=27 // pred_region
          %p455 = scmp.lt.s32.totalorder %s22, 1
          %s456 = scalar_select %p455, %s22, 1
          %s457 = scalar_lea.vmem %s4, %s456
        $region36: #{tpu_custom_call.1} parent=27 // pred_fallthru
          _
        // Predicated region
        $region37: #{tpu_custom_call.1} parent=27 // pred_check
          %p458 = pneg %p157
        $region38: #{tpu_custom_call.1} parent=27 // pred_check_branch
          %460 = sbr.rel (%p458) target = $region40
        $region39: #{tpu_custom_call.1} parent=27 // pred_region
          %p461 = scmp.lt.s32.totalorder %s22, 1
          %s462 = scalar_select %p461, %s22, 1
          %s463 = smul.addr %s462, 4
          %s464 = smul.addr %s463, 8
          %s465 = scalar_lea.vmem %s5, %s464
        $region40: #{tpu_custom_call.1} parent=27 // pred_fallthru
          _
        // Predicated region
        $region41: #{tpu_custom_call.1} parent=27 // pred_check
          %p466 = pneg %p183
        $region42: #{tpu_custom_call.1} parent=27 // pred_check_branch
          %468 = sbr.rel (%p466) target = $region44
        $region43: #{tpu_custom_call.1} parent=27 // pred_region
          %p469 = scmp.lt.s32.totalorder %s22, 1
          %s470 = scalar_select %p469, %s22, 1
          %s471 = scalar_lea.vmem %s6, %s470
        $region44: #{tpu_custom_call.1} parent=27 // pred_fallthru
          _
        // Predicated region
        $region45: #{tpu_custom_call.1} parent=27 // pred_check
          %p472 = pneg %p209
        $region46: #{tpu_custom_call.1} parent=27 // pred_check_branch
          %474 = sbr.rel (%p472) target = $region48
        $region47: #{tpu_custom_call.1} parent=27 // pred_region
          %p475 = scmp.lt.s32.totalorder %s22, 1
          %s476 = scalar_select %p475, %s22, 1
          %s477 = smul.addr %s476, 4
          %s478 = smul.addr %s477, 8
          %s479 = scalar_lea.vmem %s7, %s478
        $region48: #{tpu_custom_call.1} parent=27 // pred_fallthru
          _
        // Predicated region
        $region49: #{tpu_custom_call.1} parent=27 // pred_check
          %p480 = pneg %p235
        $region50: #{tpu_custom_call.1} parent=27 // pred_check_branch
          %482 = sbr.rel (%p480) target = $region52
        $region51: #{tpu_custom_call.1} parent=27 // pred_region
          %p483 = scmp.lt.s32.totalorder %s22, 1
          %s484 = scalar_select %p483, %s22, 1
          %s485 = scalar_lea.vmem %s8, %s484
        $region52: #{tpu_custom_call.1} parent=27 // pred_fallthru
          _
        // Predicated region
        $region53: #{tpu_custom_call.1} parent=27 // pred_check
          %p486 = pneg %p261
        $region54: #{tpu_custom_call.1} parent=27 // pred_check_branch
          %488 = sbr.rel (%p486) target = $region56
        $region55: #{tpu_custom_call.1} parent=27 // pred_region
          %p489 = scmp.lt.s32.totalorder %s22, 1
          %s490 = scalar_select %p489, %s22, 1
          %s491 = scalar_lea.vmem %s9, %s490
        $region56: #{tpu_custom_call.1} parent=27 // pred_fallthru
          _
        // Predicated region
        $region57: #{tpu_custom_call.1} parent=27 // pred_check
          %p492 = pneg %p287
        $region58: #{tpu_custom_call.1} parent=27 // pred_check_branch
          %494 = sbr.rel (%p492) target = $region60
        $region59: #{tpu_custom_call.1} parent=27 // pred_region
          %p495 = scmp.lt.s32.totalorder %s22, 1
          %s496 = scalar_select %p495, %s22, 1
          %s497 = scalar_lea.vmem %s10, %s496
        $region60: #{tpu_custom_call.1} parent=27 // pred_fallthru
          _
        // Predicated region
        $region61: #{tpu_custom_call.1} parent=27 // pred_check
          %p498 = pneg %p313
        $region62: #{tpu_custom_call.1} parent=27 // pred_check_branch
          %500 = sbr.rel (%p498) target = $region64
        $region63: #{tpu_custom_call.1} parent=27 // pred_region
          %p501 = scmp.lt.s32.totalorder %s22, 1
          %s502 = scalar_select %p501, %s22, 1
          %s503 = smul.addr %s502, 4
          %s504 = smul.addr %s503, 8
          %s505 = scalar_lea.vmem %s11, %s504
        $region64: #{tpu_custom_call.1} parent=27 // pred_fallthru
          _
        // Predicated region
        $region65: #{tpu_custom_call.1} parent=27 // pred_check
          %p506 = pneg %p339
        $region66: #{tpu_custom_call.1} parent=27 // pred_check_branch
          %508 = sbr.rel (%p506) target = $region68
        $region67: #{tpu_custom_call.1} parent=27 // pred_region
          %p509 = scmp.lt.s32.totalorder %s22, 1
          %s510 = scalar_select %p509, %s22, 1
          %s511 = scalar_lea.vmem %s12, %s510
        $region68: #{tpu_custom_call.1} parent=27 // pred_fallthru
          _
        // Predicated region
        $region69: #{tpu_custom_call.1} parent=27 // pred_check
          %p512 = pneg %p365
        $region70: #{tpu_custom_call.1} parent=27 // pred_check_branch
          %514 = sbr.rel (%p512) target = $region72
        $region71: #{tpu_custom_call.1} parent=27 // pred_region
          %p515 = scmp.lt.s32.totalorder %s22, 1
          %s516 = scalar_select %p515, %s22, 1
          %s517 = smul.addr %s516, 16
          %s518 = smul.addr %s517, 8
          %s519 = scalar_lea.vmem %s13, %s518
        $region72: #{tpu_custom_call.1} parent=27 // pred_fallthru
          _
        // Predicated region
        $region73: #{tpu_custom_call.1} parent=27 // pred_check
          %p520 = pneg %p391
        $region74: #{tpu_custom_call.1} parent=27 // pred_check_branch
          %522 = sbr.rel (%p520) target = $region76
        $region75: #{tpu_custom_call.1} parent=27 // pred_region
          %p523 = scmp.lt.s32.totalorder %s22, 1
          %s524 = scalar_select %p523, %s22, 1
          %s525 = scalar_lea.vmem %s14, %s524
        $region76: #{tpu_custom_call.1} parent=27 // pred_fallthru
          _
      $region28: #{tpu_custom_call.1} parent=5 // pred_fallthru
        _
      %p526 = scmp.le.s32.totalorder 1, %s22
      %p527 = scmp.lt.s32.totalorder %s22, 3
      %p528 = pnand %p526, %p527
      %p529 = pneg %p528
      // Predicated region
      $region77: #{tpu_custom_call.1} parent=5 // pred_check
        _
      $region78: #{tpu_custom_call.1} parent=5 // pred_check_branch
        %531 = sbr.rel (%p528) target = $region80
      $region79: #{tpu_custom_call.1} parent=5 // pred_region
        %s532 = ssub.s32 %s22, 1
        %p533 = pneg %p43
        %p534 = pneg %p40
        %p535 = pneg %p64
        %p536 = pneg %p61
        %p537 = pneg %p85
        %p538 = pneg %p82
        %p539 = scmp.lt.s32.totalorder %s27, 1
        %s540 = scalar_select %p539, %s27, 1
        %s541 = scalar_lea.vmem %s3, %s540
        %p542 = pneg %p111
        %p543 = pneg %p108
        %p544 = scmp.lt.s32.totalorder %s27, 1
        %s545 = scalar_select %p544, %s27, 1
        %s546 = scalar_lea.vmem %s4, %s545
        %p547 = pneg %p137
        %p548 = pneg %p134
        %p549 = scmp.lt.s32.totalorder %s27, 1
        %s550 = scalar_select %p549, %s27, 1
        %s551 = smul.addr %s550, 4
        %s552 = smul.addr %s551, 8
        %s553 = scalar_lea.vmem %s5, %s552
        %p554 = pneg %p163
        %p555 = pneg %p160
        %p556 = scmp.lt.s32.totalorder %s27, 1
        %s557 = scalar_select %p556, %s27, 1
        %s558 = scalar_lea.vmem %s6, %s557
        %p559 = pneg %p189
        %p560 = pneg %p186
        %p561 = scmp.lt.s32.totalorder %s27, 1
        %s562 = scalar_select %p561, %s27, 1
        %s563 = smul.addr %s562, 4
        %s564 = smul.addr %s563, 8
        %s565 = scalar_lea.vmem %s7, %s564
        %p566 = pneg %p215
        %p567 = pneg %p212
        %p568 = scmp.lt.s32.totalorder %s27, 1
        %s569 = scalar_select %p568, %s27, 1
        %s570 = scalar_lea.vmem %s8, %s569
        %p571 = pneg %p241
        %p572 = pneg %p238
        %p573 = scmp.lt.s32.totalorder %s27, 1
        %s574 = scalar_select %p573, %s27, 1
        %s575 = scalar_lea.vmem %s9, %s574
        %p576 = pneg %p267
        %p577 = pneg %p264
        %p578 = scmp.lt.s32.totalorder %s27, 1
        %s579 = scalar_select %p578, %s27, 1
        %s580 = scalar_lea.vmem %s10, %s579
        %p581 = pneg %p293
        %p582 = pneg %p290
        %p583 = scmp.lt.s32.totalorder %s27, 1
        %s584 = scalar_select %p583, %s27, 1
        %s585 = smul.addr %s584, 4
        %s586 = smul.addr %s585, 8
        %s587 = scalar_lea.vmem %s11, %s586
        %p588 = pneg %p319
        %p589 = pneg %p316
        %p590 = scmp.lt.s32.totalorder %s27, 1
        %s591 = scalar_select %p590, %s27, 1
        %s592 = scalar_lea.vmem %s12, %s591
        %p593 = pneg %p345
        %p594 = pneg %p342
        %p595 = scmp.lt.s32.totalorder %s27, 1
        %s596 = scalar_select %p595, %s27, 1
        %s597 = smul.addr %s596, 16
        %s598 = smul.addr %s597, 8
        %s599 = scalar_lea.vmem %s13, %s598
        %p600 = pneg %p371
        %p601 = pneg %p368
        %p602 = scmp.lt.s32.totalorder %s27, 1
        %s603 = scalar_select %p602, %s27, 1
        %s604 = scalar_lea.vmem %s14, %s603
        %p605 = pneg %p397
        %p606 = pneg %p394
        %p607 = pneg %p418
        %p608 = pneg %p415
        %p609 = scmp.lt.s32.totalorder %s27, 1
        %s610 = scalar_select %p609, %s27, 1
        %s611 = scalar_lea.vmem %s3, %s610
        %p612 = scmp.lt.s32.totalorder %s27, 1
        %s613 = scalar_select %p612, %s27, 1
        %s614 = scalar_lea.vmem %s4, %s613
        %p615 = scmp.lt.s32.totalorder %s27, 1
        %s616 = scalar_select %p615, %s27, 1
        %s617 = smul.addr %s616, 4
        %s618 = smul.addr %s617, 8
        %s619 = scalar_lea.vmem %s5, %s618
        %p620 = scmp.lt.s32.totalorder %s27, 1
        %s621 = scalar_select %p620, %s27, 1
        %s622 = scalar_lea.vmem %s6, %s621
        %p623 = scmp.lt.s32.totalorder %s27, 1
        %s624 = scalar_select %p623, %s27, 1
        %s625 = smul.addr %s624, 4
        %s626 = smul.addr %s625, 8
        %s627 = scalar_lea.vmem %s7, %s626
        %p628 = scmp.lt.s32.totalorder %s27, 1
        %s629 = scalar_select %p628, %s27, 1
        %s630 = scalar_lea.vmem %s8, %s629
        %p631 = scmp.lt.s32.totalorder %s27, 1
        %s632 = scalar_select %p631, %s27, 1
        %s633 = scalar_lea.vmem %s9, %s632
        %p634 = scmp.lt.s32.totalorder %s27, 1
        %s635 = scalar_select %p634, %s27, 1
        %s636 = scalar_lea.vmem %s10, %s635
        %p637 = scmp.lt.s32.totalorder %s27, 1
        %s638 = scalar_select %p637, %s27, 1
        %s639 = smul.addr %s638, 4
        %s640 = smul.addr %s639, 8
        %s641 = scalar_lea.vmem %s11, %s640
        %p642 = scmp.lt.s32.totalorder %s27, 1
        %s643 = scalar_select %p642, %s27, 1
        %s644 = scalar_lea.vmem %s12, %s643
        %p645 = scmp.lt.s32.totalorder %s27, 1
        %s646 = scalar_select %p645, %s27, 1
        %s647 = smul.addr %s646, 16
        %s648 = smul.addr %s647, 8
        %s649 = scalar_lea.vmem %s13, %s648
        %p650 = scmp.lt.s32.totalorder %s27, 1
        %s651 = scalar_select %p650, %s27, 1
        %s652 = scalar_lea.vmem %s14, %s651
        %p653 = scmp.eq.s32.totalorder %s27, 0
        // Predicated region
        $region81: #{tpu_custom_call.1} parent=79 // pred_check
          %p654 = pneg %p653
        $region82: #{tpu_custom_call.1} parent=79 // pred_check_branch
          %656 = sbr.rel (%p654) target = $region84
        $region83: #{tpu_custom_call.1} parent=79 // pred_region
          %v657 = vld [vmem:[%s0] sm:$0xff]
          %v658 = vld [vmem:[%s0 + $0x8] sm:$0xff]
          %vm659 = vcmask 261120
          %660 = vst.msk [vmem:[#allocation2] sm:$0xff] %vm659, %v657
          %661 = vst.msk [vmem:[#allocation2 + $0x8] sm:$0xff] %vm659, %v658
        $region84: #{tpu_custom_call.1} parent=79 // pred_fallthru
          _
        %v662 = vld [vmem:[#allocation2] sm:$0xff]
        %v663 = vld [vmem:[#allocation2 + $0x8] sm:$0xff]
        %v664 = vld [vmem:[%s611] sm:$0x1]
        %v665 = vld [vmem:[%s614] sm:$0x1]
        %vm666 = vcmask 261120
        %v667 = vsel %vm666, %v662, 0.0
        %668 = vadd.xlane.f32.xlu0 %v667
        %v669 = vpop.xlane.xlu0 %668
        %v670 = vsel %vm666, %v663, 0.0
        %671 = vadd.xlane.f32.xlu0 %v670
        %v672 = vpop.xlane.xlu0 %671
        %v673 = vrcp.pop 32.0
        %v674 = vmul.f32 %v669, %v673
        %v675 = vmul.f32 %v672, %v673
        %v676 = vsub.f32 %v662, %v674
        %v677 = vsub.f32 %v663, %v675
        %v678 = vmul.f32 %v676, %v676
        %v679 = vmul.f32 %v677, %v677
        %v680 = vsel %vm666, %v678, 0.0
        %681 = vadd.xlane.f32.xlu0 %v680
        %v682 = vpop.xlane.xlu0 %681
        %v683 = vsel %vm666, %v679, 0.0
        %684 = vadd.xlane.f32.xlu0 %v683
        %v685 = vpop.xlane.xlu0 %684
        %v686 = vmul.f32 %v682, %v673
        %v687 = vmul.f32 %v685, %v673
        %v688 = vadd.f32 %v686, 1e-05
        %v689 = vadd.f32 %v687, 1e-05
        %v690 = vrsqrt.pop %v688
        %v691 = vrsqrt.pop %v689
        %v692 = vmul.f32 %v676, %v690
        %v693 = vmul.f32 %v677, %v691
        %v695 = vlaneseq
        %v696 = vshrl.u32 %v695, 7
        %v697 = vsub.s32 0, %v696
        %v698 = vrot.slane %v664, %v697
        %v700 = vmul.f32 %v692, %v698
        %v701 = vmul.f32 %v693, %v698
        %v703 = vlaneseq
        %v704 = vshrl.u32 %v703, 7
        %v705 = vsub.s32 0, %v704
        %v706 = vrot.slane %v665, %v705
        %v708 = vadd.f32 %v700, %v706
        %v709 = vadd.f32 %v701, %v706
        %v710 = vld [vmem:[%s619] sm:$0xff]
        %v711 = vld [vmem:[%s619 + $0x8] sm:$0xff]
        %v712 = vld [vmem:[%s619 + $0x10] sm:$0xff]
        %v713 = vld [vmem:[%s619 + $0x18] sm:$0xff]
        %v714 = vld [vmem:[%s622] sm:$0x1]
        %v716 = vlaneseq
        %v717 = vshrl.u32 %v716, 7
        %v718 = vsub.s32 0, %v717
        %v719 = vrot.slane %v714, %v718
        %v722 = vsel %vm666, %v708, 0
        %v725 = vsel %vm666, %v709, 0
        %727 = vmatprep.subr.mxu0 0.0
        %728 = vmatpush1.msra.mxu0 %v710
        %729 = vmatprep.subr.mxu0 0.0
        %730 = vmatpush1.msra.mxu0 %v711
        %731 = vmatprep.subr.mxu0 0.0
        %732 = vmatpush1.msra.mxu0 %v712
        %733 = vmatprep.subr.mxu0 0.0
        %734 = vmatpush1.msra.mxu0 %v713
        %735 = vmatprep.subr.mxu0 0.0
        %736 = vmatpush1.msra.mxu0 0.0
        %737 = vmatprep.subr.mxu0 0.0
        %738 = vmatpush1.msra.mxu0 0.0
        %739 = vmatprep.subr.mxu0 0.0
        %740 = vmatpush1.msra.mxu0 0.0
        %741 = vmatprep.subr.mxu0 0.0
        %742 = vmatpush1.msra.mxu0 0.0
        %743 = vmatprep.subr.mxu0 0.0
        %744 = vmatpush1.msra.mxu0 0.0
        %745 = vmatprep.subr.mxu0 0.0
        %746 = vmatpush1.msra.mxu0 0.0
        %747 = vmatprep.subr.mxu0 0.0
        %748 = vmatpush1.msra.mxu0 0.0
        %749 = vmatprep.subr.mxu0 0.0
        %750 = vmatpush1.msra.mxu0 0.0
        %751 = vmatprep.subr.mxu0 0.0
        %752 = vmatpush1.msra.mxu0 0.0
        %753 = vmatprep.subr.mxu0 0.0
        %754 = vmatpush1.msra.mxu0 0.0
        %755 = vmatprep.subr.mxu0 0.0
        %756 = vmatpush1.msra.mxu0 0.0
        %757 = vmatprep.subr.mxu0 0.0
        %758 = vmatpush1.msra.mxu0 0.0
        %759 = vmatprep.subr.mxu0 0.0
        %760 = vmatpush1.msra.mxu0 0.0
        %761 = vmatprep.subr.mxu0 0.0
        %762 = vmatpush1.msra.mxu0 0.0
        %763 = vmatprep.subr.mxu0 0.0
        %764 = vmatpush1.msra.mxu0 0.0
        %765 = vmatprep.subr.mxu0 0.0
        %766 = vmatpush1.msra.mxu0 0.0
        %767 = vmatprep.subr.mxu0 0.0
        %768 = vmatpush1.msra.mxu0 0.0
        %769 = vmatprep.subr.mxu0 0.0
        %770 = vmatpush1.msra.mxu0 0.0
        %771 = vmatprep.subr.mxu0 0.0
        %772 = vmatpush1.msra.mxu0 0.0
        %773 = vmatprep.subr.mxu0 0.0
        %774 = vmatpush1.msra.mxu0 0.0
        %775 = vmatprep.subr.mxu0 0.0
        %776 = vmatpush1.msra.mxu0 0.0
        %777 = vmatprep.subr.mxu0 0.0
        %778 = vmatpush1.msra.mxu0 0.0
        %779 = vmatprep.subr.mxu0 0.0
        %780 = vmatpush1.msra.mxu0 0.0
        %781 = vmatprep.subr.mxu0 0.0
        %782 = vmatpush1.msra.mxu0 0.0
        %783 = vmatprep.subr.mxu0 0.0
        %784 = vmatpush1.msra.mxu0 0.0
        %785 = vmatprep.subr.mxu0 0.0
        %786 = vmatpush1.msra.mxu0 0.0
        %787 = vmatprep.subr.mxu0 0.0
        %788 = vmatpush1.msra.mxu0 0.0
        %789 = vmatprep.subr.mxu0 0.0
        %790 = vmatpush1.msra.mxu0 0.0
        %791 = vmatprep.mubr.f32.mxu0 0.0
        %792 = vmatmul.mubr.f32.gmra.mrb[0].mxu0 %v722
        %v793 = vpop.f32.mrb[0].mxu0
        %v794 = vadd.f32 %v719, %v793
        %v795 = vpop.f32.mrb[0].mxu0
        %796 = vmatprep.mubr.f32.mxu0 0.0
        %797 = vmatmul.mubr.f32.gmra.mrb[0].mxu0 %v725
        %v798 = vpop.f32.mrb[0].mxu0
        %v799 = vadd.f32 %v719, %v798
        %v800 = vpop.f32.mrb[0].mxu0
        %801 = vdwg.mxu0
        %v802 = vlaneseq
        %v803 = vshrl.u32 %v802, 7
        %v804 = vlaneseq
        %v805 = vand.u32 %v804, 127
        %vm806 = vcmp.ge.s32.totalorder %v803, %v805
        %v807 = vmul.f32 %v794, 0.35355338
        %v808 = vmul.f32 %v799, 0.35355338
        %810 = vrot.lane.b32.xlu0 %v794, 96
        %v811 = vpop.permute.xlu0 %810
        %vm812 = vcmask 64512
        %v814 = vsel %vm812, %v807, 0
        %v816 = vsel %vm812, %v811, 0
        %818 = vmatprep.subr.mxu0 0.0
        %819 = vmatpush1.xpose.msra.mxu0 %v816
        %820 = vmatprep.subr.mxu0 0.0
        %821 = vmatpush1.xpose.msra.mxu0 0.0
        %822 = vmatprep.subr.mxu0 0.0
        %823 = vmatpush1.xpose.msra.mxu0 0.0
        %824 = vmatprep.subr.mxu0 0.0
        %825 = vmatpush1.xpose.msra.mxu0 0.0
        %826 = vmatprep.subr.mxu0 0.0
        %827 = vmatpush1.xpose.msra.mxu0 0.0
        %828 = vmatprep.subr.mxu0 0.0
        %829 = vmatpush1.xpose.msra.mxu0 0.0
        %830 = vmatprep.subr.mxu0 0.0
        %831 = vmatpush1.xpose.msra.mxu0 0.0
        %832 = vmatprep.subr.mxu0 0.0
        %833 = vmatpush1.xpose.msra.mxu0 0.0
        %834 = vmatprep.subr.mxu0 0.0
        %835 = vmatpush1.xpose.msra.mxu0 0.0
        %836 = vmatprep.subr.mxu0 0.0
        %837 = vmatpush1.xpose.msra.mxu0 0.0
        %838 = vmatprep.subr.mxu0 0.0
        %839 = vmatpush1.xpose.msra.mxu0 0.0
        %840 = vmatprep.subr.mxu0 0.0
        %841 = vmatpush1.xpose.msra.mxu0 0.0
        %842 = vmatprep.subr.mxu0 0.0
        %843 = vmatpush1.xpose.msra.mxu0 0.0
        %844 = vmatprep.subr.mxu0 0.0
        %845 = vmatpush1.xpose.msra.mxu0 0.0
        %846 = vmatprep.subr.mxu0 0.0
        %847 = vmatpush1.xpose.msra.mxu0 0.0
        %848 = vmatprep.subr.mxu0 0.0
        %849 = vmatpush1.xpose.msra.mxu0 0.0
        %850 = vmatprep.subr.mxu0 0.0
        %851 = vmatpush1.xpose.msra.mxu0 0.0
        %852 = vmatprep.subr.mxu0 0.0
        %853 = vmatpush1.xpose.msra.mxu0 0.0
        %854 = vmatprep.subr.mxu0 0.0
        %855 = vmatpush1.xpose.msra.mxu0 0.0
        %856 = vmatprep.subr.mxu0 0.0
        %857 = vmatpush1.xpose.msra.mxu0 0.0
        %858 = vmatprep.subr.mxu0 0.0
        %859 = vmatpush1.xpose.msra.mxu0 0.0
        %860 = vmatprep.subr.mxu0 0.0
        %861 = vmatpush1.xpose.msra.mxu0 0.0
        %862 = vmatprep.subr.mxu0 0.0
        %863 = vmatpush1.xpose.msra.mxu0 0.0
        %864 = vmatprep.subr.mxu0 0.0
        %865 = vmatpush1.xpose.msra.mxu0 0.0
        %866 = vmatprep.subr.mxu0 0.0
        %867 = vmatpush1.xpose.msra.mxu0 0.0
        %868 = vmatprep.subr.mxu0 0.0
        %869 = vmatpush1.xpose.msra.mxu0 0.0
        %870 = vmatprep.subr.mxu0 0.0
        %871 = vmatpush1.xpose.msra.mxu0 0.0
        %872 = vmatprep.subr.mxu0 0.0
        %873 = vmatpush1.xpose.msra.mxu0 0.0
        %874 = vmatprep.subr.mxu0 0.0
        %875 = vmatpush1.xpose.msra.mxu0 0.0
        %876 = vmatprep.subr.mxu0 0.0
        %877 = vmatpush1.xpose.msra.mxu0 0.0
        %878 = vmatprep.subr.mxu0 0.0
        %879 = vmatpush1.xpose.msra.mxu0 0.0
        %880 = vmatprep.subr.mxu0 0.0
        %881 = vmatpush1.xpose.msra.mxu0 0.0
        %882 = vmatprep.mubr.f32.mxu0 0.0
        %883 = vmatmul.mubr.f32.gmra.mrb[0].mxu0 %v814
        %v884 = vpop.f32.mrb[0].mxu0
        %v885 = vadd.f32 0.0, %v884
        %v886 = vpop.f32.mrb[0].mxu0
        %887 = vdwg.mxu0
        %889 = vrot.lane.b32.xlu0 %v799, 96
        %v890 = vpop.permute.xlu0 %889
        %v892 = vsel %vm812, %v808, 0
        %v894 = vsel %vm812, %v890, 0
        %896 = vmatprep.subr.mxu0 0.0
        %897 = vmatpush1.xpose.msra.mxu0 %v894
        %898 = vmatprep.subr.mxu0 0.0
        %899 = vmatpush1.xpose.msra.mxu0 0.0
        %900 = vmatprep.subr.mxu0 0.0
        %901 = vmatpush1.xpose.msra.mxu0 0.0
        %902 = vmatprep.subr.mxu0 0.0
        %903 = vmatpush1.xpose.msra.mxu0 0.0
        %904 = vmatprep.subr.mxu0 0.0
        %905 = vmatpush1.xpose.msra.mxu0 0.0
        %906 = vmatprep.subr.mxu0 0.0
        %907 = vmatpush1.xpose.msra.mxu0 0.0
        %908 = vmatprep.subr.mxu0 0.0
        %909 = vmatpush1.xpose.msra.mxu0 0.0
        %910 = vmatprep.subr.mxu0 0.0
        %911 = vmatpush1.xpose.msra.mxu0 0.0
        %912 = vmatprep.subr.mxu0 0.0
        %913 = vmatpush1.xpose.msra.mxu0 0.0
        %914 = vmatprep.subr.mxu0 0.0
        %915 = vmatpush1.xpose.msra.mxu0 0.0
        %916 = vmatprep.subr.mxu0 0.0
        %917 = vmatpush1.xpose.msra.mxu0 0.0
        %918 = vmatprep.subr.mxu0 0.0
        %919 = vmatpush1.xpose.msra.mxu0 0.0
        %920 = vmatprep.subr.mxu0 0.0
        %921 = vmatpush1.xpose.msra.mxu0 0.0
        %922 = vmatprep.subr.mxu0 0.0
        %923 = vmatpush1.xpose.msra.mxu0 0.0
        %924 = vmatprep.subr.mxu0 0.0
        %925 = vmatpush1.xpose.msra.mxu0 0.0
        %926 = vmatprep.subr.mxu0 0.0
        %927 = vmatpush1.xpose.msra.mxu0 0.0
        %928 = vmatprep.subr.mxu0 0.0
        %929 = vmatpush1.xpose.msra.mxu0 0.0
        %930 = vmatprep.subr.mxu0 0.0
        %931 = vmatpush1.xpose.msra.mxu0 0.0
        %932 = vmatprep.subr.mxu0 0.0
        %933 = vmatpush1.xpose.msra.mxu0 0.0
        %934 = vmatprep.subr.mxu0 0.0
        %935 = vmatpush1.xpose.msra.mxu0 0.0
        %936 = vmatprep.subr.mxu0 0.0
        %937 = vmatpush1.xpose.msra.mxu0 0.0
        %938 = vmatprep.subr.mxu0 0.0
        %939 = vmatpush1.xpose.msra.mxu0 0.0
        %940 = vmatprep.subr.mxu0 0.0
        %941 = vmatpush1.xpose.msra.mxu0 0.0
        %942 = vmatprep.subr.mxu0 0.0
        %943 = vmatpush1.xpose.msra.mxu0 0.0
        %944 = vmatprep.subr.mxu0 0.0
        %945 = vmatpush1.xpose.msra.mxu0 0.0
        %946 = vmatprep.subr.mxu0 0.0
        %947 = vmatpush1.xpose.msra.mxu0 0.0
        %948 = vmatprep.subr.mxu0 0.0
        %949 = vmatpush1.xpose.msra.mxu0 0.0
        %950 = vmatprep.subr.mxu0 0.0
        %951 = vmatpush1.xpose.msra.mxu0 0.0
        %952 = vmatprep.subr.mxu0 0.0
        %953 = vmatpush1.xpose.msra.mxu0 0.0
        %954 = vmatprep.subr.mxu0 0.0
        %955 = vmatpush1.xpose.msra.mxu0 0.0
        %956 = vmatprep.subr.mxu0 0.0
        %957 = vmatpush1.xpose.msra.mxu0 0.0
        %958 = vmatprep.subr.mxu0 0.0
        %959 = vmatpush1.xpose.msra.mxu0 0.0
        %960 = vmatprep.mubr.f32.mxu0 0.0
        %961 = vmatmul.mubr.f32.gmra.mrb[0].mxu0 %v892
        %v962 = vpop.f32.mrb[0].mxu0
        %v963 = vadd.f32 0.0, %v962
        %v964 = vpop.f32.mrb[0].mxu0
        %965 = vdwg.mxu0
        %v966 = vsel %vm806, 1, 0
        %vm967 = vcmp.eq.s32.totalorder %v966, 1
        %v968 = vsel %vm967, %v885, -1e+30
        %v969 = vsel %vm967, %v963, -1e+30
        %v970 = vsel %vm812, %v968, -inf
        %971 = vmax.xlane.f32.xlu0 %v970
        %v972 = vpop.xlane.xlu0 %971
        %v973 = vsel %vm812, %v969, -inf
        %974 = vmax.xlane.f32.xlu0 %v973
        %v975 = vpop.xlane.xlu0 %974
        %v976 = vsub.f32 %v968, %v972
        %v977 = vsub.f32 %v969, %v975
        %v978 = vmul.f32 %v976, 1.442695
        %v979 = vpow.pop %v978
        %v980 = vmul.f32 %v977, 1.442695
        %v981 = vpow.pop %v980
        %v982 = vsel %vm812, %v979, 0.0
        %983 = vadd.xlane.f32.xlu0 %v982
        %v984 = vpop.xlane.xlu0 %983
        %v985 = vsel %vm812, %v981, 0.0
        %986 = vadd.xlane.f32.xlu0 %v985
        %v987 = vpop.xlane.xlu0 %986
        %v988 = vrcp.pop %v984
        %v989 = vrcp.pop %v987
        %v990 = vmul.f32 %v979, %v988
        %v991 = vmul.f32 %v981, %v989
        %992 = vrot.lane.b32.xlu0 %v794, 64
        %v993 = vpop.permute.xlu0 %992
        %v996 = vsel %vm812, %v990, 0
        %998 = vmatprep.subr.mxu0 0.0
        %999 = vmatpush1.msra.mxu0 %v993
        %1000 = vmatprep.subr.mxu0 0.0
        %1001 = vmatpush1.msra.mxu0 0.0
        %1002 = vmatprep.subr.mxu0 0.0
        %1003 = vmatpush1.msra.mxu0 0.0
        %1004 = vmatprep.subr.mxu0 0.0
        %1005 = vmatpush1.msra.mxu0 0.0
        %1006 = vmatprep.subr.mxu0 0.0
        %1007 = vmatpush1.msra.mxu0 0.0
        %1008 = vmatprep.subr.mxu0 0.0
        %1009 = vmatpush1.msra.mxu0 0.0
        %1010 = vmatprep.subr.mxu0 0.0
        %1011 = vmatpush1.msra.mxu0 0.0
        %1012 = vmatprep.subr.mxu0 0.0
        %1013 = vmatpush1.msra.mxu0 0.0
        %1014 = vmatprep.subr.mxu0 0.0
        %1015 = vmatpush1.msra.mxu0 0.0
        %1016 = vmatprep.subr.mxu0 0.0
        %1017 = vmatpush1.msra.mxu0 0.0
        %1018 = vmatprep.subr.mxu0 0.0
        %1019 = vmatpush1.msra.mxu0 0.0
        %1020 = vmatprep.subr.mxu0 0.0
        %1021 = vmatpush1.msra.mxu0 0.0
        %1022 = vmatprep.subr.mxu0 0.0
        %1023 = vmatpush1.msra.mxu0 0.0
        %1024 = vmatprep.subr.mxu0 0.0
        %1025 = vmatpush1.msra.mxu0 0.0
        %1026 = vmatprep.subr.mxu0 0.0
        %1027 = vmatpush1.msra.mxu0 0.0
        %1028 = vmatprep.subr.mxu0 0.0
        %1029 = vmatpush1.msra.mxu0 0.0
        %1030 = vmatprep.subr.mxu0 0.0
        %1031 = vmatpush1.msra.mxu0 0.0
        %1032 = vmatprep.subr.mxu0 0.0
        %1033 = vmatpush1.msra.mxu0 0.0
        %1034 = vmatprep.subr.mxu0 0.0
        %1035 = vmatpush1.msra.mxu0 0.0
        %1036 = vmatprep.subr.mxu0 0.0
        %1037 = vmatpush1.msra.mxu0 0.0
        %1038 = vmatprep.subr.mxu0 0.0
        %1039 = vmatpush1.msra.mxu0 0.0
        %1040 = vmatprep.subr.mxu0 0.0
        %1041 = vmatpush1.msra.mxu0 0.0
        %1042 = vmatprep.subr.mxu0 0.0
        %1043 = vmatpush1.msra.mxu0 0.0
        %1044 = vmatprep.subr.mxu0 0.0
        %1045 = vmatpush1.msra.mxu0 0.0
        %1046 = vmatprep.subr.mxu0 0.0
        %1047 = vmatpush1.msra.mxu0 0.0
        %1048 = vmatprep.subr.mxu0 0.0
        %1049 = vmatpush1.msra.mxu0 0.0
        %1050 = vmatprep.subr.mxu0 0.0
        %1051 = vmatpush1.msra.mxu0 0.0
        %1052 = vmatprep.subr.mxu0 0.0
        %1053 = vmatpush1.msra.mxu0 0.0
        %1054 = vmatprep.subr.mxu0 0.0
        %1055 = vmatpush1.msra.mxu0 0.0
        %1056 = vmatprep.subr.mxu0 0.0
        %1057 = vmatpush1.msra.mxu0 0.0
        %1058 = vmatprep.subr.mxu0 0.0
        %1059 = vmatpush1.msra.mxu0 0.0
        %1060 = vmatprep.subr.mxu0 0.0
        %1061 = vmatpush1.msra.mxu0 0.0
        %1062 = vmatprep.mubr.f32.mxu0 0.0
        %1063 = vmatmul.mubr.f32.gmra.mrb[0].mxu0 %v996
        %v1064 = vpop.f32.mrb[0].mxu0
        %v1065 = vadd.f32 0.0, %v1064
        %v1066 = vpop.f32.mrb[0].mxu0
        %1067 = vdwg.mxu0
        %1068 = vrot.lane.b32.xlu0 %v799, 64
        %v1069 = vpop.permute.xlu0 %1068
        %v1072 = vsel %vm812, %v991, 0
        %1074 = vmatprep.subr.mxu0 0.0
        %1075 = vmatpush1.msra.mxu0 %v1069
        %1076 = vmatprep.subr.mxu0 0.0
        %1077 = vmatpush1.msra.mxu0 0.0
        %1078 = vmatprep.subr.mxu0 0.0
        %1079 = vmatpush1.msra.mxu0 0.0
        %1080 = vmatprep.subr.mxu0 0.0
        %1081 = vmatpush1.msra.mxu0 0.0
        %1082 = vmatprep.subr.mxu0 0.0
        %1083 = vmatpush1.msra.mxu0 0.0
        %1084 = vmatprep.subr.mxu0 0.0
        %1085 = vmatpush1.msra.mxu0 0.0
        %1086 = vmatprep.subr.mxu0 0.0
        %1087 = vmatpush1.msra.mxu0 0.0
        %1088 = vmatprep.subr.mxu0 0.0
        %1089 = vmatpush1.msra.mxu0 0.0
        %1090 = vmatprep.subr.mxu0 0.0
        %1091 = vmatpush1.msra.mxu0 0.0
        %1092 = vmatprep.subr.mxu0 0.0
        %1093 = vmatpush1.msra.mxu0 0.0
        %1094 = vmatprep.subr.mxu0 0.0
        %1095 = vmatpush1.msra.mxu0 0.0
        %1096 = vmatprep.subr.mxu0 0.0
        %1097 = vmatpush1.msra.mxu0 0.0
        %1098 = vmatprep.subr.mxu0 0.0
        %1099 = vmatpush1.msra.mxu0 0.0
        %1100 = vmatprep.subr.mxu0 0.0
        %1101 = vmatpush1.msra.mxu0 0.0
        %1102 = vmatprep.subr.mxu0 0.0
        %1103 = vmatpush1.msra.mxu0 0.0
        %1104 = vmatprep.subr.mxu0 0.0
        %1105 = vmatpush1.msra.mxu0 0.0
        %1106 = vmatprep.subr.mxu0 0.0
        %1107 = vmatpush1.msra.mxu0 0.0
        %1108 = vmatprep.subr.mxu0 0.0
        %1109 = vmatpush1.msra.mxu0 0.0
        %1110 = vmatprep.subr.mxu0 0.0
        %1111 = vmatpush1.msra.mxu0 0.0
        %1112 = vmatprep.subr.mxu0 0.0
        %1113 = vmatpush1.msra.mxu0 0.0
        %1114 = vmatprep.subr.mxu0 0.0
        %1115 = vmatpush1.msra.mxu0 0.0
        %1116 = vmatprep.subr.mxu0 0.0
        %1117 = vmatpush1.msra.mxu0 0.0
        %1118 = vmatprep.subr.mxu0 0.0
        %1119 = vmatpush1.msra.mxu0 0.0
        %1120 = vmatprep.subr.mxu0 0.0
        %1121 = vmatpush1.msra.mxu0 0.0
        %1122 = vmatprep.subr.mxu0 0.0
        %1123 = vmatpush1.msra.mxu0 0.0
        %1124 = vmatprep.subr.mxu0 0.0
        %1125 = vmatpush1.msra.mxu0 0.0
        %1126 = vmatprep.subr.mxu0 0.0
        %1127 = vmatpush1.msra.mxu0 0.0
        %1128 = vmatprep.subr.mxu0 0.0
        %1129 = vmatpush1.msra.mxu0 0.0
        %1130 = vmatprep.subr.mxu0 0.0
        %1131 = vmatpush1.msra.mxu0 0.0
        %1132 = vmatprep.subr.mxu0 0.0
        %1133 = vmatpush1.msra.mxu0 0.0
        %1134 = vmatprep.subr.mxu0 0.0
        %1135 = vmatpush1.msra.mxu0 0.0
        %1136 = vmatprep.subr.mxu0 0.0
        %1137 = vmatpush1.msra.mxu0 0.0
        %1138 = vmatprep.mubr.f32.mxu0 0.0
        %1139 = vmatmul.mubr.f32.gmra.mrb[0].mxu0 %v1072
        %v1140 = vpop.f32.mrb[0].mxu0
        %v1141 = vadd.f32 0.0, %v1140
        %v1142 = vpop.f32.mrb[0].mxu0
        %1143 = vdwg.mxu0
        %1144 = vrot.lane.b32.xlu0 %v807, 120
        %v1145 = vpop.permute.xlu0 %1144
        %1146 = vrot.lane.b32.xlu0 %v794, 88
        %v1147 = vpop.permute.xlu0 %1146
        %v1148 = vsel %vm812, %v1145, 0
        %v1150 = vsel %vm812, %v1147, 0
        %1152 = vmatprep.subr.mxu0 0.0
        %1153 = vmatpush1.xpose.msra.mxu0 %v1150
        %1154 = vmatprep.subr.mxu0 0.0
        %1155 = vmatpush1.xpose.msra.mxu0 0.0
        %1156 = vmatprep.subr.mxu0 0.0
        %1157 = vmatpush1.xpose.msra.mxu0 0.0
        %1158 = vmatprep.subr.mxu0 0.0
        %1159 = vmatpush1.xpose.msra.mxu0 0.0
        %1160 = vmatprep.subr.mxu0 0.0
        %1161 = vmatpush1.xpose.msra.mxu0 0.0
        %1162 = vmatprep.subr.mxu0 0.0
        %1163 = vmatpush1.xpose.msra.mxu0 0.0
        %1164 = vmatprep.subr.mxu0 0.0
        %1165 = vmatpush1.xpose.msra.mxu0 0.0
        %1166 = vmatprep.subr.mxu0 0.0
        %1167 = vmatpush1.xpose.msra.mxu0 0.0
        %1168 = vmatprep.subr.mxu0 0.0
        %1169 = vmatpush1.xpose.msra.mxu0 0.0
        %1170 = vmatprep.subr.mxu0 0.0
        %1171 = vmatpush1.xpose.msra.mxu0 0.0
        %1172 = vmatprep.subr.mxu0 0.0
        %1173 = vmatpush1.xpose.msra.mxu0 0.0
        %1174 = vmatprep.subr.mxu0 0.0
        %1175 = vmatpush1.xpose.msra.mxu0 0.0
        %1176 = vmatprep.subr.mxu0 0.0
        %1177 = vmatpush1.xpose.msra.mxu0 0.0
        %1178 = vmatprep.subr.mxu0 0.0
        %1179 = vmatpush1.xpose.msra.mxu0 0.0
        %1180 = vmatprep.subr.mxu0 0.0
        %1181 = vmatpush1.xpose.msra.mxu0 0.0
        %1182 = vmatprep.subr.mxu0 0.0
        %1183 = vmatpush1.xpose.msra.mxu0 0.0
        %1184 = vmatprep.subr.mxu0 0.0
        %1185 = vmatpush1.xpose.msra.mxu0 0.0
        %1186 = vmatprep.subr.mxu0 0.0
        %1187 = vmatpush1.xpose.msra.mxu0 0.0
        %1188 = vmatprep.subr.mxu0 0.0
        %1189 = vmatpush1.xpose.msra.mxu0 0.0
        %1190 = vmatprep.subr.mxu0 0.0
        %1191 = vmatpush1.xpose.msra.mxu0 0.0
        %1192 = vmatprep.subr.mxu0 0.0
        %1193 = vmatpush1.xpose.msra.mxu0 0.0
        %1194 = vmatprep.subr.mxu0 0.0
        %1195 = vmatpush1.xpose.msra.mxu0 0.0
        %1196 = vmatprep.subr.mxu0 0.0
        %1197 = vmatpush1.xpose.msra.mxu0 0.0
        %1198 = vmatprep.subr.mxu0 0.0
        %1199 = vmatpush1.xpose.msra.mxu0 0.0
        %1200 = vmatprep.subr.mxu0 0.0
        %1201 = vmatpush1.xpose.msra.mxu0 0.0
        %1202 = vmatprep.subr.mxu0 0.0
        %1203 = vmatpush1.xpose.msra.mxu0 0.0
        %1204 = vmatprep.subr.mxu0 0.0
        %1205 = vmatpush1.xpose.msra.mxu0 0.0
        %1206 = vmatprep.subr.mxu0 0.0
        %1207 = vmatpush1.xpose.msra.mxu0 0.0
        %1208 = vmatprep.subr.mxu0 0.0
        %1209 = vmatpush1.xpose.msra.mxu0 0.0
        %1210 = vmatprep.subr.mxu0 0.0
        %1211 = vmatpush1.xpose.msra.mxu0 0.0
        %1212 = vmatprep.subr.mxu0 0.0
        %1213 = vmatpush1.xpose.msra.mxu0 0.0
        %1214 = vmatprep.subr.mxu0 0.0
        %1215 = vmatpush1.xpose.msra.mxu0 0.0
        %1216 = vmatprep.mubr.f32.mxu0 0.0
        %1217 = vmatmul.mubr.f32.gmra.mrb[0].mxu0 %v1148
        %v1218 = vpop.f32.mrb[0].mxu0
        %v1219 = vadd.f32 0.0, %v1218
        %v1220 = vpop.f32.mrb[0].mxu0
        %1221 = vdwg.mxu0
        %1222 = vrot.lane.b32.xlu0 %v808, 120
        %v1223 = vpop.permute.xlu0 %1222
        %1224 = vrot.lane.b32.xlu0 %v799, 88
        %v1225 = vpop.permute.xlu0 %1224
        %v1226 = vsel %vm812, %v1223, 0
        %v1228 = vsel %vm812, %v1225, 0
        %1230 = vmatprep.subr.mxu0 0.0
        %1231 = vmatpush1.xpose.msra.mxu0 %v1228
        %1232 = vmatprep.subr.mxu0 0.0
        %1233 = vmatpush1.xpose.msra.mxu0 0.0
        %1234 = vmatprep.subr.mxu0 0.0
        %1235 = vmatpush1.xpose.msra.mxu0 0.0
        %1236 = vmatprep.subr.mxu0 0.0
        %1237 = vmatpush1.xpose.msra.mxu0 0.0
        %1238 = vmatprep.subr.mxu0 0.0
        %1239 = vmatpush1.xpose.msra.mxu0 0.0
        %1240 = vmatprep.subr.mxu0 0.0
        %1241 = vmatpush1.xpose.msra.mxu0 0.0
        %1242 = vmatprep.subr.mxu0 0.0
        %1243 = vmatpush1.xpose.msra.mxu0 0.0
        %1244 = vmatprep.subr.mxu0 0.0
        %1245 = vmatpush1.xpose.msra.mxu0 0.0
        %1246 = vmatprep.subr.mxu0 0.0
        %1247 = vmatpush1.xpose.msra.mxu0 0.0
        %1248 = vmatprep.subr.mxu0 0.0
        %1249 = vmatpush1.xpose.msra.mxu0 0.0
        %1250 = vmatprep.subr.mxu0 0.0
        %1251 = vmatpush1.xpose.msra.mxu0 0.0
        %1252 = vmatprep.subr.mxu0 0.0
        %1253 = vmatpush1.xpose.msra.mxu0 0.0
        %1254 = vmatprep.subr.mxu0 0.0
        %1255 = vmatpush1.xpose.msra.mxu0 0.0
        %1256 = vmatprep.subr.mxu0 0.0
        %1257 = vmatpush1.xpose.msra.mxu0 0.0
        %1258 = vmatprep.subr.mxu0 0.0
        %1259 = vmatpush1.xpose.msra.mxu0 0.0
        %1260 = vmatprep.subr.mxu0 0.0
        %1261 = vmatpush1.xpose.msra.mxu0 0.0
        %1262 = vmatprep.subr.mxu0 0.0
        %1263 = vmatpush1.xpose.msra.mxu0 0.0
        %1264 = vmatprep.subr.mxu0 0.0
        %1265 = vmatpush1.xpose.msra.mxu0 0.0
        %1266 = vmatprep.subr.mxu0 0.0
        %1267 = vmatpush1.xpose.msra.mxu0 0.0
        %1268 = vmatprep.subr.mxu0 0.0
        %1269 = vmatpush1.xpose.msra.mxu0 0.0
        %1270 = vmatprep.subr.mxu0 0.0
        %1271 = vmatpush1.xpose.msra.mxu0 0.0
        %1272 = vmatprep.subr.mxu0 0.0
        %1273 = vmatpush1.xpose.msra.mxu0 0.0
        %1274 = vmatprep.subr.mxu0 0.0
        %1275 = vmatpush1.xpose.msra.mxu0 0.0
        %1276 = vmatprep.subr.mxu0 0.0
        %1277 = vmatpush1.xpose.msra.mxu0 0.0
        %1278 = vmatprep.subr.mxu0 0.0
        %1279 = vmatpush1.xpose.msra.mxu0 0.0
        %1280 = vmatprep.subr.mxu0 0.0
        %1281 = vmatpush1.xpose.msra.mxu0 0.0
        %1282 = vmatprep.subr.mxu0 0.0
        %1283 = vmatpush1.xpose.msra.mxu0 0.0
        %1284 = vmatprep.subr.mxu0 0.0
        %1285 = vmatpush1.xpose.msra.mxu0 0.0
        %1286 = vmatprep.subr.mxu0 0.0
        %1287 = vmatpush1.xpose.msra.mxu0 0.0
        %1288 = vmatprep.subr.mxu0 0.0
        %1289 = vmatpush1.xpose.msra.mxu0 0.0
        %1290 = vmatprep.subr.mxu0 0.0
        %1291 = vmatpush1.xpose.msra.mxu0 0.0
        %1292 = vmatprep.subr.mxu0 0.0
        %1293 = vmatpush1.xpose.msra.mxu0 0.0
        %1294 = vmatprep.mubr.f32.mxu0 0.0
        %1295 = vmatmul.mubr.f32.gmra.mrb[0].mxu0 %v1226
        %v1296 = vpop.f32.mrb[0].mxu0
        %v1297 = vadd.f32 0.0, %v1296
        %v1298 = vpop.f32.mrb[0].mxu0
        %1299 = vdwg.mxu0
        %v1300 = vsel %vm967, %v1219, -1e+30
        %v1301 = vsel %vm967, %v1297, -1e+30
        %v1302 = vsel %vm812, %v1300, -inf
        %1303 = vmax.xlane.f32.xlu0 %v1302
        %v1304 = vpop.xlane.xlu0 %1303
        %v1305 = vsel %vm812, %v1301, -inf
        %1306 = vmax.xlane.f32.xlu0 %v1305
        %v1307 = vpop.xlane.xlu0 %1306
        %v1308 = vsub.f32 %v1300, %v1304
        %v1309 = vsub.f32 %v1301, %v1307
        %v1310 = vmul.f32 %v1308, 1.442695
        %v1311 = vpow.pop %v1310
        %v1312 = vmul.f32 %v1309, 1.442695
        %v1313 = vpow.pop %v1312
        %v1314 = vsel %vm812, %v1311, 0.0
        %1315 = vadd.xlane.f32.xlu0 %v1314
        %v1316 = vpop.xlane.xlu0 %1315
        %v1317 = vsel %vm812, %v1313, 0.0
        %1318 = vadd.xlane.f32.xlu0 %v1317
        %v1319 = vpop.xlane.xlu0 %1318
        %v1320 = vrcp.pop %v1316
        %v1321 = vrcp.pop %v1319
        %v1322 = vmul.f32 %v1311, %v1320
        %v1323 = vmul.f32 %v1313, %v1321
        %1324 = vrot.lane.b32.xlu0 %v794, 56
        %v1325 = vpop.permute.xlu0 %1324
        %v1328 = vsel %vm812, %v1322, 0
        %1330 = vmatprep.subr.mxu0 0.0
        %1331 = vmatpush1.msra.mxu0 %v1325
        %1332 = vmatprep.subr.mxu0 0.0
        %1333 = vmatpush1.msra.mxu0 0.0
        %1334 = vmatprep.subr.mxu0 0.0
        %1335 = vmatpush1.msra.mxu0 0.0
        %1336 = vmatprep.subr.mxu0 0.0
        %1337 = vmatpush1.msra.mxu0 0.0
        %1338 = vmatprep.subr.mxu0 0.0
        %1339 = vmatpush1.msra.mxu0 0.0
        %1340 = vmatprep.subr.mxu0 0.0
        %1341 = vmatpush1.msra.mxu0 0.0
        %1342 = vmatprep.subr.mxu0 0.0
        %1343 = vmatpush1.msra.mxu0 0.0
        %1344 = vmatprep.subr.mxu0 0.0
        %1345 = vmatpush1.msra.mxu0 0.0
        %1346 = vmatprep.subr.mxu0 0.0
        %1347 = vmatpush1.msra.mxu0 0.0
        %1348 = vmatprep.subr.mxu0 0.0
        %1349 = vmatpush1.msra.mxu0 0.0
        %1350 = vmatprep.subr.mxu0 0.0
        %1351 = vmatpush1.msra.mxu0 0.0
        %1352 = vmatprep.subr.mxu0 0.0
        %1353 = vmatpush1.msra.mxu0 0.0
        %1354 = vmatprep.subr.mxu0 0.0
        %1355 = vmatpush1.msra.mxu0 0.0
        %1356 = vmatprep.subr.mxu0 0.0
        %1357 = vmatpush1.msra.mxu0 0.0
        %1358 = vmatprep.subr.mxu0 0.0
        %1359 = vmatpush1.msra.mxu0 0.0
        %1360 = vmatprep.subr.mxu0 0.0
        %1361 = vmatpush1.msra.mxu0 0.0
        %1362 = vmatprep.subr.mxu0 0.0
        %1363 = vmatpush1.msra.mxu0 0.0
        %1364 = vmatprep.subr.mxu0 0.0
        %1365 = vmatpush1.msra.mxu0 0.0
        %1366 = vmatprep.subr.mxu0 0.0
        %1367 = vmatpush1.msra.mxu0 0.0
        %1368 = vmatprep.subr.mxu0 0.0
        %1369 = vmatpush1.msra.mxu0 0.0
        %1370 = vmatprep.subr.mxu0 0.0
        %1371 = vmatpush1.msra.mxu0 0.0
        %1372 = vmatprep.subr.mxu0 0.0
        %1373 = vmatpush1.msra.mxu0 0.0
        %1374 = vmatprep.subr.mxu0 0.0
        %1375 = vmatpush1.msra.mxu0 0.0
        %1376 = vmatprep.subr.mxu0 0.0
        %1377 = vmatpush1.msra.mxu0 0.0
        %1378 = vmatprep.subr.mxu0 0.0
        %1379 = vmatpush1.msra.mxu0 0.0
        %1380 = vmatprep.subr.mxu0 0.0
        %1381 = vmatpush1.msra.mxu0 0.0
        %1382 = vmatprep.subr.mxu0 0.0
        %1383 = vmatpush1.msra.mxu0 0.0
        %1384 = vmatprep.subr.mxu0 0.0
        %1385 = vmatpush1.msra.mxu0 0.0
        %1386 = vmatprep.subr.mxu0 0.0
        %1387 = vmatpush1.msra.mxu0 0.0
        %1388 = vmatprep.subr.mxu0 0.0
        %1389 = vmatpush1.msra.mxu0 0.0
        %1390 = vmatprep.subr.mxu0 0.0
        %1391 = vmatpush1.msra.mxu0 0.0
        %1392 = vmatprep.subr.mxu0 0.0
        %1393 = vmatpush1.msra.mxu0 0.0
        %1394 = vmatprep.mubr.f32.mxu0 0.0
        %1395 = vmatmul.mubr.f32.gmra.mrb[0].mxu0 %v1328
        %v1396 = vpop.f32.mrb[0].mxu0
        %v1397 = vadd.f32 0.0, %v1396
        %v1398 = vpop.f32.mrb[0].mxu0
        %1399 = vdwg.mxu0
        %1400 = vrot.lane.b32.xlu0 %v799, 56
        %v1401 = vpop.permute.xlu0 %1400
        %v1404 = vsel %vm812, %v1323, 0
        %1406 = vmatprep.subr.mxu0 0.0
        %1407 = vmatpush1.msra.mxu0 %v1401
        %1408 = vmatprep.subr.mxu0 0.0
        %1409 = vmatpush1.msra.mxu0 0.0
        %1410 = vmatprep.subr.mxu0 0.0
        %1411 = vmatpush1.msra.mxu0 0.0
        %1412 = vmatprep.subr.mxu0 0.0
        %1413 = vmatpush1.msra.mxu0 0.0
        %1414 = vmatprep.subr.mxu0 0.0
        %1415 = vmatpush1.msra.mxu0 0.0
        %1416 = vmatprep.subr.mxu0 0.0
        %1417 = vmatpush1.msra.mxu0 0.0
        %1418 = vmatprep.subr.mxu0 0.0
        %1419 = vmatpush1.msra.mxu0 0.0
        %1420 = vmatprep.subr.mxu0 0.0
        %1421 = vmatpush1.msra.mxu0 0.0
        %1422 = vmatprep.subr.mxu0 0.0
        %1423 = vmatpush1.msra.mxu0 0.0
        %1424 = vmatprep.subr.mxu0 0.0
        %1425 = vmatpush1.msra.mxu0 0.0
        %1426 = vmatprep.subr.mxu0 0.0
        %1427 = vmatpush1.msra.mxu0 0.0
        %1428 = vmatprep.subr.mxu0 0.0
        %1429 = vmatpush1.msra.mxu0 0.0
        %1430 = vmatprep.subr.mxu0 0.0
        %1431 = vmatpush1.msra.mxu0 0.0
        %1432 = vmatprep.subr.mxu0 0.0
        %1433 = vmatpush1.msra.mxu0 0.0
        %1434 = vmatprep.subr.mxu0 0.0
        %1435 = vmatpush1.msra.mxu0 0.0
        %1436 = vmatprep.subr.mxu0 0.0
        %1437 = vmatpush1.msra.mxu0 0.0
        %1438 = vmatprep.subr.mxu0 0.0
        %1439 = vmatpush1.msra.mxu0 0.0
        %1440 = vmatprep.subr.mxu0 0.0
        %1441 = vmatpush1.msra.mxu0 0.0
        %1442 = vmatprep.subr.mxu0 0.0
        %1443 = vmatpush1.msra.mxu0 0.0
        %1444 = vmatprep.subr.mxu0 0.0
        %1445 = vmatpush1.msra.mxu0 0.0
        %1446 = vmatprep.subr.mxu0 0.0
        %1447 = vmatpush1.msra.mxu0 0.0
        %1448 = vmatprep.subr.mxu0 0.0
        %1449 = vmatpush1.msra.mxu0 0.0
        %1450 = vmatprep.subr.mxu0 0.0
        %1451 = vmatpush1.msra.mxu0 0.0
        %1452 = vmatprep.subr.mxu0 0.0
        %1453 = vmatpush1.msra.mxu0 0.0
        %1454 = vmatprep.subr.mxu0 0.0
        %1455 = vmatpush1.msra.mxu0 0.0
        %1456 = vmatprep.subr.mxu0 0.0
        %1457 = vmatpush1.msra.mxu0 0.0
        %1458 = vmatprep.subr.mxu0 0.0
        %1459 = vmatpush1.msra.mxu0 0.0
        %1460 = vmatprep.subr.mxu0 0.0
        %1461 = vmatpush1.msra.mxu0 0.0
        %1462 = vmatprep.subr.mxu0 0.0
        %1463 = vmatpush1.msra.mxu0 0.0
        %1464 = vmatprep.subr.mxu0 0.0
        %1465 = vmatpush1.msra.mxu0 0.0
        %1466 = vmatprep.subr.mxu0 0.0
        %1467 = vmatpush1.msra.mxu0 0.0
        %1468 = vmatprep.subr.mxu0 0.0
        %1469 = vmatpush1.msra.mxu0 0.0
        %1470 = vmatprep.mubr.f32.mxu0 0.0
        %1471 = vmatmul.mubr.f32.gmra.mrb[0].mxu0 %v1404
        %v1472 = vpop.f32.mrb[0].mxu0
        %v1473 = vadd.f32 0.0, %v1472
        %v1474 = vpop.f32.mrb[0].mxu0
        %1475 = vdwg.mxu0
        %1476 = vrot.lane.b32.xlu0 %v807, 112
        %v1477 = vpop.permute.xlu0 %1476
        %1478 = vrot.lane.b32.xlu0 %v794, 80
        %v1479 = vpop.permute.xlu0 %1478
        %v1480 = vsel %vm812, %v1477, 0
        %v1482 = vsel %vm812, %v1479, 0
        %1484 = vmatprep.subr.mxu0 0.0
        %1485 = vmatpush1.xpose.msra.mxu0 %v1482
        %1486 = vmatprep.subr.mxu0 0.0
        %1487 = vmatpush1.xpose.msra.mxu0 0.0
        %1488 = vmatprep.subr.mxu0 0.0
        %1489 = vmatpush1.xpose.msra.mxu0 0.0
        %1490 = vmatprep.subr.mxu0 0.0
        %1491 = vmatpush1.xpose.msra.mxu0 0.0
        %1492 = vmatprep.subr.mxu0 0.0
        %1493 = vmatpush1.xpose.msra.mxu0 0.0
        %1494 = vmatprep.subr.mxu0 0.0
        %1495 = vmatpush1.xpose.msra.mxu0 0.0
        %1496 = vmatprep.subr.mxu0 0.0
        %1497 = vmatpush1.xpose.msra.mxu0 0.0
        %1498 = vmatprep.subr.mxu0 0.0
        %1499 = vmatpush1.xpose.msra.mxu0 0.0
        %1500 = vmatprep.subr.mxu0 0.0
        %1501 = vmatpush1.xpose.msra.mxu0 0.0
        %1502 = vmatprep.subr.mxu0 0.0
        %1503 = vmatpush1.xpose.msra.mxu0 0.0
        %1504 = vmatprep.subr.mxu0 0.0
        %1505 = vmatpush1.xpose.msra.mxu0 0.0
        %1506 = vmatprep.subr.mxu0 0.0
        %1507 = vmatpush1.xpose.msra.mxu0 0.0
        %1508 = vmatprep.subr.mxu0 0.0
        %1509 = vmatpush1.xpose.msra.mxu0 0.0
        %1510 = vmatprep.subr.mxu0 0.0
        %1511 = vmatpush1.xpose.msra.mxu0 0.0
        %1512 = vmatprep.subr.mxu0 0.0
        %1513 = vmatpush1.xpose.msra.mxu0 0.0
        %1514 = vmatprep.subr.mxu0 0.0
        %1515 = vmatpush1.xpose.msra.mxu0 0.0
        %1516 = vmatprep.subr.mxu0 0.0
        %1517 = vmatpush1.xpose.msra.mxu0 0.0
        %1518 = vmatprep.subr.mxu0 0.0
        %1519 = vmatpush1.xpose.msra.mxu0 0.0
        %1520 = vmatprep.subr.mxu0 0.0
        %1521 = vmatpush1.xpose.msra.mxu0 0.0
        %1522 = vmatprep.subr.mxu0 0.0
        %1523 = vmatpush1.xpose.msra.mxu0 0.0
        %1524 = vmatprep.subr.mxu0 0.0
        %1525 = vmatpush1.xpose.msra.mxu0 0.0
        %1526 = vmatprep.subr.mxu0 0.0
        %1527 = vmatpush1.xpose.msra.mxu0 0.0
        %1528 = vmatprep.subr.mxu0 0.0
        %1529 = vmatpush1.xpose.msra.mxu0 0.0
        %1530 = vmatprep.subr.mxu0 0.0
        %1531 = vmatpush1.xpose.msra.mxu0 0.0
        %1532 = vmatprep.subr.mxu0 0.0
        %1533 = vmatpush1.xpose.msra.mxu0 0.0
        %1534 = vmatprep.subr.mxu0 0.0
        %1535 = vmatpush1.xpose.msra.mxu0 0.0
        %1536 = vmatprep.subr.mxu0 0.0
        %1537 = vmatpush1.xpose.msra.mxu0 0.0
        %1538 = vmatprep.subr.mxu0 0.0
        %1539 = vmatpush1.xpose.msra.mxu0 0.0
        %1540 = vmatprep.subr.mxu0 0.0
        %1541 = vmatpush1.xpose.msra.mxu0 0.0
        %1542 = vmatprep.subr.mxu0 0.0
        %1543 = vmatpush1.xpose.msra.mxu0 0.0
        %1544 = vmatprep.subr.mxu0 0.0
        %1545 = vmatpush1.xpose.msra.mxu0 0.0
        %1546 = vmatprep.subr.mxu0 0.0
        %1547 = vmatpush1.xpose.msra.mxu0 0.0
        %1548 = vmatprep.mubr.f32.mxu0 0.0
        %1549 = vmatmul.mubr.f32.gmra.mrb[0].mxu0 %v1480
        %v1550 = vpop.f32.mrb[0].mxu0
        %v1551 = vadd.f32 0.0, %v1550
        %v1552 = vpop.f32.mrb[0].mxu0
        %1553 = vdwg.mxu0
        %1554 = vrot.lane.b32.xlu0 %v808, 112
        %v1555 = vpop.permute.xlu0 %1554
        %1556 = vrot.lane.b32.xlu0 %v799, 80
        %v1557 = vpop.permute.xlu0 %1556
        %v1558 = vsel %vm812, %v1555, 0
        %v1560 = vsel %vm812, %v1557, 0
        %1562 = vmatprep.subr.mxu0 0.0
        %1563 = vmatpush1.xpose.msra.mxu0 %v1560
        %1564 = vmatprep.subr.mxu0 0.0
        %1565 = vmatpush1.xpose.msra.mxu0 0.0
        %1566 = vmatprep.subr.mxu0 0.0
        %1567 = vmatpush1.xpose.msra.mxu0 0.0
        %1568 = vmatprep.subr.mxu0 0.0
        %1569 = vmatpush1.xpose.msra.mxu0 0.0
        %1570 = vmatprep.subr.mxu0 0.0
        %1571 = vmatpush1.xpose.msra.mxu0 0.0
        %1572 = vmatprep.subr.mxu0 0.0
        %1573 = vmatpush1.xpose.msra.mxu0 0.0
        %1574 = vmatprep.subr.mxu0 0.0
        %1575 = vmatpush1.xpose.msra.mxu0 0.0
        %1576 = vmatprep.subr.mxu0 0.0
        %1577 = vmatpush1.xpose.msra.mxu0 0.0
        %1578 = vmatprep.subr.mxu0 0.0
        %1579 = vmatpush1.xpose.msra.mxu0 0.0
        %1580 = vmatprep.subr.mxu0 0.0
        %1581 = vmatpush1.xpose.msra.mxu0 0.0
        %1582 = vmatprep.subr.mxu0 0.0
        %1583 = vmatpush1.xpose.msra.mxu0 0.0
        %1584 = vmatprep.subr.mxu0 0.0
        %1585 = vmatpush1.xpose.msra.mxu0 0.0
        %1586 = vmatprep.subr.mxu0 0.0
        %1587 = vmatpush1.xpose.msra.mxu0 0.0
        %1588 = vmatprep.subr.mxu0 0.0
        %1589 = vmatpush1.xpose.msra.mxu0 0.0
        %1590 = vmatprep.subr.mxu0 0.0
        %1591 = vmatpush1.xpose.msra.mxu0 0.0
        %1592 = vmatprep.subr.mxu0 0.0
        %1593 = vmatpush1.xpose.msra.mxu0 0.0
        %1594 = vmatprep.subr.mxu0 0.0
        %1595 = vmatpush1.xpose.msra.mxu0 0.0
        %1596 = vmatprep.subr.mxu0 0.0
        %1597 = vmatpush1.xpose.msra.mxu0 0.0
        %1598 = vmatprep.subr.mxu0 0.0
        %1599 = vmatpush1.xpose.msra.mxu0 0.0
        %1600 = vmatprep.subr.mxu0 0.0
        %1601 = vmatpush1.xpose.msra.mxu0 0.0
        %1602 = vmatprep.subr.mxu0 0.0
        %1603 = vmatpush1.xpose.msra.mxu0 0.0
        %1604 = vmatprep.subr.mxu0 0.0
        %1605 = vmatpush1.xpose.msra.mxu0 0.0
        %1606 = vmatprep.subr.mxu0 0.0
        %1607 = vmatpush1.xpose.msra.mxu0 0.0
        %1608 = vmatprep.subr.mxu0 0.0
        %1609 = vmatpush1.xpose.msra.mxu0 0.0
        %1610 = vmatprep.subr.mxu0 0.0
        %1611 = vmatpush1.xpose.msra.mxu0 0.0
        %1612 = vmatprep.subr.mxu0 0.0
        %1613 = vmatpush1.xpose.msra.mxu0 0.0
        %1614 = vmatprep.subr.mxu0 0.0
        %1615 = vmatpush1.xpose.msra.mxu0 0.0
        %1616 = vmatprep.subr.mxu0 0.0
        %1617 = vmatpush1.xpose.msra.mxu0 0.0
        %1618 = vmatprep.subr.mxu0 0.0
        %1619 = vmatpush1.xpose.msra.mxu0 0.0
        %1620 = vmatprep.subr.mxu0 0.0
        %1621 = vmatpush1.xpose.msra.mxu0 0.0
        %1622 = vmatprep.subr.mxu0 0.0
        %1623 = vmatpush1.xpose.msra.mxu0 0.0
        %1624 = vmatprep.subr.mxu0 0.0
        %1625 = vmatpush1.xpose.msra.mxu0 0.0
        %1626 = vmatprep.mubr.f32.mxu0 0.0
        %1627 = vmatmul.mubr.f32.gmra.mrb[0].mxu0 %v1558
        %v1628 = vpop.f32.mrb[0].mxu0
        %v1629 = vadd.f32 0.0, %v1628
        %v1630 = vpop.f32.mrb[0].mxu0
        %1631 = vdwg.mxu0
        %v1632 = vsel %vm967, %v1551, -1e+30
        %v1633 = vsel %vm967, %v1629, -1e+30
        %v1634 = vsel %vm812, %v1632, -inf
        %1635 = vmax.xlane.f32.xlu0 %v1634
        %v1636 = vpop.xlane.xlu0 %1635
        %v1637 = vsel %vm812, %v1633, -inf
        %1638 = vmax.xlane.f32.xlu0 %v1637
        %v1639 = vpop.xlane.xlu0 %1638
        %v1640 = vsub.f32 %v1632, %v1636
        %v1641 = vsub.f32 %v1633, %v1639
        %v1642 = vmul.f32 %v1640, 1.442695
        %v1643 = vpow.pop %v1642
        %v1644 = vmul.f32 %v1641, 1.442695
        %v1645 = vpow.pop %v1644
        %v1646 = vsel %vm812, %v1643, 0.0
        %1647 = vadd.xlane.f32.xlu0 %v1646
        %v1648 = vpop.xlane.xlu0 %1647
        %v1649 = vsel %vm812, %v1645, 0.0
        %1650 = vadd.xlane.f32.xlu0 %v1649
        %v1651 = vpop.xlane.xlu0 %1650
        %v1652 = vrcp.pop %v1648
        %v1653 = vrcp.pop %v1651
        %v1654 = vmul.f32 %v1643, %v1652
        %v1655 = vmul.f32 %v1645, %v1653
        %1656 = vrot.lane.b32.xlu0 %v794, 48
        %v1657 = vpop.permute.xlu0 %1656
        %v1660 = vsel %vm812, %v1654, 0
        %1662 = vmatprep.subr.mxu0 0.0
        %1663 = vmatpush1.msra.mxu0 %v1657
        %1664 = vmatprep.subr.mxu0 0.0
        %1665 = vmatpush1.msra.mxu0 0.0
        %1666 = vmatprep.subr.mxu0 0.0
        %1667 = vmatpush1.msra.mxu0 0.0
        %1668 = vmatprep.subr.mxu0 0.0
        %1669 = vmatpush1.msra.mxu0 0.0
        %1670 = vmatprep.subr.mxu0 0.0
        %1671 = vmatpush1.msra.mxu0 0.0
        %1672 = vmatprep.subr.mxu0 0.0
        %1673 = vmatpush1.msra.mxu0 0.0
        %1674 = vmatprep.subr.mxu0 0.0
        %1675 = vmatpush1.msra.mxu0 0.0
        %1676 = vmatprep.subr.mxu0 0.0
        %1677 = vmatpush1.msra.mxu0 0.0
        %1678 = vmatprep.subr.mxu0 0.0
        %1679 = vmatpush1.msra.mxu0 0.0
        %1680 = vmatprep.subr.mxu0 0.0
        %1681 = vmatpush1.msra.mxu0 0.0
        %1682 = vmatprep.subr.mxu0 0.0
        %1683 = vmatpush1.msra.mxu0 0.0
        %1684 = vmatprep.subr.mxu0 0.0
        %1685 = vmatpush1.msra.mxu0 0.0
        %1686 = vmatprep.subr.mxu0 0.0
        %1687 = vmatpush1.msra.mxu0 0.0
        %1688 = vmatprep.subr.mxu0 0.0
        %1689 = vmatpush1.msra.mxu0 0.0
        %1690 = vmatprep.subr.mxu0 0.0
        %1691 = vmatpush1.msra.mxu0 0.0
        %1692 = vmatprep.subr.mxu0 0.0
        %1693 = vmatpush1.msra.mxu0 0.0
        %1694 = vmatprep.subr.mxu0 0.0
        %1695 = vmatpush1.msra.mxu0 0.0
        %1696 = vmatprep.subr.mxu0 0.0
        %1697 = vmatpush1.msra.mxu0 0.0
        %1698 = vmatprep.subr.mxu0 0.0
        %1699 = vmatpush1.msra.mxu0 0.0
        %1700 = vmatprep.subr.mxu0 0.0
        %1701 = vmatpush1.msra.mxu0 0.0
        %1702 = vmatprep.subr.mxu0 0.0
        %1703 = vmatpush1.msra.mxu0 0.0
        %1704 = vmatprep.subr.mxu0 0.0
        %1705 = vmatpush1.msra.mxu0 0.0
        %1706 = vmatprep.subr.mxu0 0.0
        %1707 = vmatpush1.msra.mxu0 0.0
        %1708 = vmatprep.subr.mxu0 0.0
        %1709 = vmatpush1.msra.mxu0 0.0
        %1710 = vmatprep.subr.mxu0 0.0
        %1711 = vmatpush1.msra.mxu0 0.0
        %1712 = vmatprep.subr.mxu0 0.0
        %1713 = vmatpush1.msra.mxu0 0.0
        %1714 = vmatprep.subr.mxu0 0.0
        %1715 = vmatpush1.msra.mxu0 0.0
        %1716 = vmatprep.subr.mxu0 0.0
        %1717 = vmatpush1.msra.mxu0 0.0
        %1718 = vmatprep.subr.mxu0 0.0
        %1719 = vmatpush1.msra.mxu0 0.0
        %1720 = vmatprep.subr.mxu0 0.0
        %1721 = vmatpush1.msra.mxu0 0.0
        %1722 = vmatprep.subr.mxu0 0.0
        %1723 = vmatpush1.msra.mxu0 0.0
        %1724 = vmatprep.subr.mxu0 0.0
        %1725 = vmatpush1.msra.mxu0 0.0
        %1726 = vmatprep.mubr.f32.mxu0 0.0
        %1727 = vmatmul.mubr.f32.gmra.mrb[0].mxu0 %v1660
        %v1728 = vpop.f32.mrb[0].mxu0
        %v1729 = vadd.f32 0.0, %v1728
        %v1730 = vpop.f32.mrb[0].mxu0
        %1731 = vdwg.mxu0
        %1732 = vrot.lane.b32.xlu0 %v799, 48
        %v1733 = vpop.permute.xlu0 %1732
        %v1736 = vsel %vm812, %v1655, 0
        %1738 = vmatprep.subr.mxu0 0.0
        %1739 = vmatpush1.msra.mxu0 %v1733
        %1740 = vmatprep.subr.mxu0 0.0
        %1741 = vmatpush1.msra.mxu0 0.0
        %1742 = vmatprep.subr.mxu0 0.0
        %1743 = vmatpush1.msra.mxu0 0.0
        %1744 = vmatprep.subr.mxu0 0.0
        %1745 = vmatpush1.msra.mxu0 0.0
        %1746 = vmatprep.subr.mxu0 0.0
        %1747 = vmatpush1.msra.mxu0 0.0
        %1748 = vmatprep.subr.mxu0 0.0
        %1749 = vmatpush1.msra.mxu0 0.0
        %1750 = vmatprep.subr.mxu0 0.0
        %1751 = vmatpush1.msra.mxu0 0.0
        %1752 = vmatprep.subr.mxu0 0.0
        %1753 = vmatpush1.msra.mxu0 0.0
        %1754 = vmatprep.subr.mxu0 0.0
        %1755 = vmatpush1.msra.mxu0 0.0
        %1756 = vmatprep.subr.mxu0 0.0
        %1757 = vmatpush1.msra.mxu0 0.0
        %1758 = vmatprep.subr.mxu0 0.0
        %1759 = vmatpush1.msra.mxu0 0.0
        %1760 = vmatprep.subr.mxu0 0.0
        %1761 = vmatpush1.msra.mxu0 0.0
        %1762 = vmatprep.subr.mxu0 0.0
        %1763 = vmatpush1.msra.mxu0 0.0
        %1764 = vmatprep.subr.mxu0 0.0
        %1765 = vmatpush1.msra.mxu0 0.0
        %1766 = vmatprep.subr.mxu0 0.0
        %1767 = vmatpush1.msra.mxu0 0.0
        %1768 = vmatprep.subr.mxu0 0.0
        %1769 = vmatpush1.msra.mxu0 0.0
        %1770 = vmatprep.subr.mxu0 0.0
        %1771 = vmatpush1.msra.mxu0 0.0
        %1772 = vmatprep.subr.mxu0 0.0
        %1773 = vmatpush1.msra.mxu0 0.0
        %1774 = vmatprep.subr.mxu0 0.0
        %1775 = vmatpush1.msra.mxu0 0.0
        %1776 = vmatprep.subr.mxu0 0.0
        %1777 = vmatpush1.msra.mxu0 0.0
        %1778 = vmatprep.subr.mxu0 0.0
        %1779 = vmatpush1.msra.mxu0 0.0
        %1780 = vmatprep.subr.mxu0 0.0
        %1781 = vmatpush1.msra.mxu0 0.0
        %1782 = vmatprep.subr.mxu0 0.0
        %1783 = vmatpush1.msra.mxu0 0.0
        %1784 = vmatprep.subr.mxu0 0.0
        %1785 = vmatpush1.msra.mxu0 0.0
        %1786 = vmatprep.subr.mxu0 0.0
        %1787 = vmatpush1.msra.mxu0 0.0
        %1788 = vmatprep.subr.mxu0 0.0
        %1789 = vmatpush1.msra.mxu0 0.0
        %1790 = vmatprep.subr.mxu0 0.0
        %1791 = vmatpush1.msra.mxu0 0.0
        %1792 = vmatprep.subr.mxu0 0.0
        %1793 = vmatpush1.msra.mxu0 0.0
        %1794 = vmatprep.subr.mxu0 0.0
        %1795 = vmatpush1.msra.mxu0 0.0
        %1796 = vmatprep.subr.mxu0 0.0
        %1797 = vmatpush1.msra.mxu0 0.0
        %1798 = vmatprep.subr.mxu0 0.0
        %1799 = vmatpush1.msra.mxu0 0.0
        %1800 = vmatprep.subr.mxu0 0.0
        %1801 = vmatpush1.msra.mxu0 0.0
        %1802 = vmatprep.mubr.f32.mxu0 0.0
        %1803 = vmatmul.mubr.f32.gmra.mrb[0].mxu0 %v1736
        %v1804 = vpop.f32.mrb[0].mxu0
        %v1805 = vadd.f32 0.0, %v1804
        %v1806 = vpop.f32.mrb[0].mxu0
        %1807 = vdwg.mxu0
        %1808 = vrot.lane.b32.xlu0 %v807, 104
        %v1809 = vpop.permute.xlu0 %1808
        %1810 = vrot.lane.b32.xlu0 %v794, 72
        %v1811 = vpop.permute.xlu0 %1810
        %v1812 = vsel %vm812, %v1809, 0
        %v1814 = vsel %vm812, %v1811, 0
        %1816 = vmatprep.subr.mxu0 0.0
        %1817 = vmatpush1.xpose.msra.mxu0 %v1814
        %1818 = vmatprep.subr.mxu0 0.0
        %1819 = vmatpush1.xpose.msra.mxu0 0.0
        %1820 = vmatprep.subr.mxu0 0.0
        %1821 = vmatpush1.xpose.msra.mxu0 0.0
        %1822 = vmatprep.subr.mxu0 0.0
        %1823 = vmatpush1.xpose.msra.mxu0 0.0
        %1824 = vmatprep.subr.mxu0 0.0
        %1825 = vmatpush1.xpose.msra.mxu0 0.0
        %1826 = vmatprep.subr.mxu0 0.0
        %1827 = vmatpush1.xpose.msra.mxu0 0.0
        %1828 = vmatprep.subr.mxu0 0.0
        %1829 = vmatpush1.xpose.msra.mxu0 0.0
        %1830 = vmatprep.subr.mxu0 0.0
        %1831 = vmatpush1.xpose.msra.mxu0 0.0
        %1832 = vmatprep.subr.mxu0 0.0
        %1833 = vmatpush1.xpose.msra.mxu0 0.0
        %1834 = vmatprep.subr.mxu0 0.0
        %1835 = vmatpush1.xpose.msra.mxu0 0.0
        %1836 = vmatprep.subr.mxu0 0.0
        %1837 = vmatpush1.xpose.msra.mxu0 0.0
        %1838 = vmatprep.subr.mxu0 0.0
        %1839 = vmatpush1.xpose.msra.mxu0 0.0
        %1840 = vmatprep.subr.mxu0 0.0
        %1841 = vmatpush1.xpose.msra.mxu0 0.0
        %1842 = vmatprep.subr.mxu0 0.0
        %1843 = vmatpush1.xpose.msra.mxu0 0.0
        %1844 = vmatprep.subr.mxu0 0.0
        %1845 = vmatpush1.xpose.msra.mxu0 0.0
        %1846 = vmatprep.subr.mxu0 0.0
        %1847 = vmatpush1.xpose.msra.mxu0 0.0
        %1848 = vmatprep.subr.mxu0 0.0
        %1849 = vmatpush1.xpose.msra.mxu0 0.0
        %1850 = vmatprep.subr.mxu0 0.0
        %1851 = vmatpush1.xpose.msra.mxu0 0.0
        %1852 = vmatprep.subr.mxu0 0.0
        %1853 = vmatpush1.xpose.msra.mxu0 0.0
        %1854 = vmatprep.subr.mxu0 0.0
        %1855 = vmatpush1.xpose.msra.mxu0 0.0
        %1856 = vmatprep.subr.mxu0 0.0
        %1857 = vmatpush1.xpose.msra.mxu0 0.0
        %1858 = vmatprep.subr.mxu0 0.0
        %1859 = vmatpush1.xpose.msra.mxu0 0.0
        %1860 = vmatprep.subr.mxu0 0.0
        %1861 = vmatpush1.xpose.msra.mxu0 0.0
        %1862 = vmatprep.subr.mxu0 0.0
        %1863 = vmatpush1.xpose.msra.mxu0 0.0
        %1864 = vmatprep.subr.mxu0 0.0
        %1865 = vmatpush1.xpose.msra.mxu0 0.0
        %1866 = vmatprep.subr.mxu0 0.0
        %1867 = vmatpush1.xpose.msra.mxu0 0.0
        %1868 = vmatprep.subr.mxu0 0.0
        %1869 = vmatpush1.xpose.msra.mxu0 0.0
        %1870 = vmatprep.subr.mxu0 0.0
        %1871 = vmatpush1.xpose.msra.mxu0 0.0
        %1872 = vmatprep.subr.mxu0 0.0
        %1873 = vmatpush1.xpose.msra.mxu0 0.0
        %1874 = vmatprep.subr.mxu0 0.0
        %1875 = vmatpush1.xpose.msra.mxu0 0.0
        %1876 = vmatprep.subr.mxu0 0.0
        %1877 = vmatpush1.xpose.msra.mxu0 0.0
        %1878 = vmatprep.subr.mxu0 0.0
        %1879 = vmatpush1.xpose.msra.mxu0 0.0
        %1880 = vmatprep.mubr.f32.mxu0 0.0
        %1881 = vmatmul.mubr.f32.gmra.mrb[0].mxu0 %v1812
        %v1882 = vpop.f32.mrb[0].mxu0
        %v1883 = vadd.f32 0.0, %v1882
        %v1884 = vpop.f32.mrb[0].mxu0
        %1885 = vdwg.mxu0
        %1886 = vrot.lane.b32.xlu0 %v808, 104
        %v1887 = vpop.permute.xlu0 %1886
        %1888 = vrot.lane.b32.xlu0 %v799, 72
        %v1889 = vpop.permute.xlu0 %1888
        %v1890 = vsel %vm812, %v1887, 0
        %v1892 = vsel %vm812, %v1889, 0
        %1894 = vmatprep.subr.mxu0 0.0
        %1895 = vmatpush1.xpose.msra.mxu0 %v1892
        %1896 = vmatprep.subr.mxu0 0.0
        %1897 = vmatpush1.xpose.msra.mxu0 0.0
        %1898 = vmatprep.subr.mxu0 0.0
        %1899 = vmatpush1.xpose.msra.mxu0 0.0
        %1900 = vmatprep.subr.mxu0 0.0
        %1901 = vmatpush1.xpose.msra.mxu0 0.0
        %1902 = vmatprep.subr.mxu0 0.0
        %1903 = vmatpush1.xpose.msra.mxu0 0.0
        %1904 = vmatprep.subr.mxu0 0.0
        %1905 = vmatpush1.xpose.msra.mxu0 0.0
        %1906 = vmatprep.subr.mxu0 0.0
        %1907 = vmatpush1.xpose.msra.mxu0 0.0
        %1908 = vmatprep.subr.mxu0 0.0
        %1909 = vmatpush1.xpose.msra.mxu0 0.0
        %1910 = vmatprep.subr.mxu0 0.0
        %1911 = vmatpush1.xpose.msra.mxu0 0.0
        %1912 = vmatprep.subr.mxu0 0.0
        %1913 = vmatpush1.xpose.msra.mxu0 0.0
        %1914 = vmatprep.subr.mxu0 0.0
        %1915 = vmatpush1.xpose.msra.mxu0 0.0
        %1916 = vmatprep.subr.mxu0 0.0
        %1917 = vmatpush1.xpose.msra.mxu0 0.0
        %1918 = vmatprep.subr.mxu0 0.0
        %1919 = vmatpush1.xpose.msra.mxu0 0.0
        %1920 = vmatprep.subr.mxu0 0.0
        %1921 = vmatpush1.xpose.msra.mxu0 0.0
        %1922 = vmatprep.subr.mxu0 0.0
        %1923 = vmatpush1.xpose.msra.mxu0 0.0
        %1924 = vmatprep.subr.mxu0 0.0
        %1925 = vmatpush1.xpose.msra.mxu0 0.0
        %1926 = vmatprep.subr.mxu0 0.0
        %1927 = vmatpush1.xpose.msra.mxu0 0.0
        %1928 = vmatprep.subr.mxu0 0.0
        %1929 = vmatpush1.xpose.msra.mxu0 0.0
        %1930 = vmatprep.subr.mxu0 0.0
        %1931 = vmatpush1.xpose.msra.mxu0 0.0
        %1932 = vmatprep.subr.mxu0 0.0
        %1933 = vmatpush1.xpose.msra.mxu0 0.0
        %1934 = vmatprep.subr.mxu0 0.0
        %1935 = vmatpush1.xpose.msra.mxu0 0.0
        %1936 = vmatprep.subr.mxu0 0.0
        %1937 = vmatpush1.xpose.msra.mxu0 0.0
        %1938 = vmatprep.subr.mxu0 0.0
        %1939 = vmatpush1.xpose.msra.mxu0 0.0
        %1940 = vmatprep.subr.mxu0 0.0
        %1941 = vmatpush1.xpose.msra.mxu0 0.0
        %1942 = vmatprep.subr.mxu0 0.0
        %1943 = vmatpush1.xpose.msra.mxu0 0.0
        %1944 = vmatprep.subr.mxu0 0.0
        %1945 = vmatpush1.xpose.msra.mxu0 0.0
        %1946 = vmatprep.subr.mxu0 0.0
        %1947 = vmatpush1.xpose.msra.mxu0 0.0
        %1948 = vmatprep.subr.mxu0 0.0
        %1949 = vmatpush1.xpose.msra.mxu0 0.0
        %1950 = vmatprep.subr.mxu0 0.0
        %1951 = vmatpush1.xpose.msra.mxu0 0.0
        %1952 = vmatprep.subr.mxu0 0.0
        %1953 = vmatpush1.xpose.msra.mxu0 0.0
        %1954 = vmatprep.subr.mxu0 0.0
        %1955 = vmatpush1.xpose.msra.mxu0 0.0
        %1956 = vmatprep.subr.mxu0 0.0
        %1957 = vmatpush1.xpose.msra.mxu0 0.0
        %1958 = vmatprep.mubr.f32.mxu0 0.0
        %1959 = vmatmul.mubr.f32.gmra.mrb[0].mxu0 %v1890
        %v1960 = vpop.f32.mrb[0].mxu0
        %v1961 = vadd.f32 0.0, %v1960
        %v1962 = vpop.f32.mrb[0].mxu0
        %1963 = vdwg.mxu0
        %v1964 = vsel %vm967, %v1883, -1e+30
        %v1965 = vsel %vm967, %v1961, -1e+30
        %v1966 = vsel %vm812, %v1964, -inf
        %1967 = vmax.xlane.f32.xlu0 %v1966
        %v1968 = vpop.xlane.xlu0 %1967
        %v1969 = vsel %vm812, %v1965, -inf
        %1970 = vmax.xlane.f32.xlu0 %v1969
        %v1971 = vpop.xlane.xlu0 %1970
        %v1972 = vsub.f32 %v1964, %v1968
        %v1973 = vsub.f32 %v1965, %v1971
        %v1974 = vmul.f32 %v1972, 1.442695
        %v1975 = vpow.pop %v1974
        %v1976 = vmul.f32 %v1973, 1.442695
        %v1977 = vpow.pop %v1976
        %v1978 = vsel %vm812, %v1975, 0.0
        %1979 = vadd.xlane.f32.xlu0 %v1978
        %v1980 = vpop.xlane.xlu0 %1979
        %v1981 = vsel %vm812, %v1977, 0.0
        %1982 = vadd.xlane.f32.xlu0 %v1981
        %v1983 = vpop.xlane.xlu0 %1982
        %v1984 = vrcp.pop %v1980
        %v1985 = vrcp.pop %v1983
        %v1986 = vmul.f32 %v1975, %v1984
        %v1987 = vmul.f32 %v1977, %v1985
        %1988 = vrot.lane.b32.xlu0 %v794, 40
        %v1989 = vpop.permute.xlu0 %1988
        %v1992 = vsel %vm812, %v1986, 0
        %1994 = vmatprep.subr.mxu0 0.0
        %1995 = vmatpush1.msra.mxu0 %v1989
        %1996 = vmatprep.subr.mxu0 0.0
        %1997 = vmatpush1.msra.mxu0 0.0
        %1998 = vmatprep.subr.mxu0 0.0
        %1999 = vmatpush1.msra.mxu0 0.0
        %2000 = vmatprep.subr.mxu0 0.0
        %2001 = vmatpush1.msra.mxu0 0.0
        %2002 = vmatprep.subr.mxu0 0.0
        %2003 = vmatpush1.msra.mxu0 0.0
        %2004 = vmatprep.subr.mxu0 0.0
        %2005 = vmatpush1.msra.mxu0 0.0
        %2006 = vmatprep.subr.mxu0 0.0
        %2007 = vmatpush1.msra.mxu0 0.0
        %2008 = vmatprep.subr.mxu0 0.0
        %2009 = vmatpush1.msra.mxu0 0.0
        %2010 = vmatprep.subr.mxu0 0.0
        %2011 = vmatpush1.msra.mxu0 0.0
        %2012 = vmatprep.subr.mxu0 0.0
        %2013 = vmatpush1.msra.mxu0 0.0
        %2014 = vmatprep.subr.mxu0 0.0
        %2015 = vmatpush1.msra.mxu0 0.0
        %2016 = vmatprep.subr.mxu0 0.0
        %2017 = vmatpush1.msra.mxu0 0.0
        %2018 = vmatprep.subr.mxu0 0.0
        %2019 = vmatpush1.msra.mxu0 0.0
        %2020 = vmatprep.subr.mxu0 0.0
        %2021 = vmatpush1.msra.mxu0 0.0
        %2022 = vmatprep.subr.mxu0 0.0
        %2023 = vmatpush1.msra.mxu0 0.0
        %2024 = vmatprep.subr.mxu0 0.0
        %2025 = vmatpush1.msra.mxu0 0.0
        %2026 = vmatprep.subr.mxu0 0.0
        %2027 = vmatpush1.msra.mxu0 0.0
        %2028 = vmatprep.subr.mxu0 0.0
        %2029 = vmatpush1.msra.mxu0 0.0
        %2030 = vmatprep.subr.mxu0 0.0
        %2031 = vmatpush1.msra.mxu0 0.0
        %2032 = vmatprep.subr.mxu0 0.0
        %2033 = vmatpush1.msra.mxu0 0.0
        %2034 = vmatprep.subr.mxu0 0.0
        %2035 = vmatpush1.msra.mxu0 0.0
        %2036 = vmatprep.subr.mxu0 0.0
        %2037 = vmatpush1.msra.mxu0 0.0
        %2038 = vmatprep.subr.mxu0 0.0
        %2039 = vmatpush1.msra.mxu0 0.0
        %2040 = vmatprep.subr.mxu0 0.0
        %2041 = vmatpush1.msra.mxu0 0.0
        %2042 = vmatprep.subr.mxu0 0.0
        %2043 = vmatpush1.msra.mxu0 0.0
        %2044 = vmatprep.subr.mxu0 0.0
        %2045 = vmatpush1.msra.mxu0 0.0
        %2046 = vmatprep.subr.mxu0 0.0
        %2047 = vmatpush1.msra.mxu0 0.0
        %2048 = vmatprep.subr.mxu0 0.0
        %2049 = vmatpush1.msra.mxu0 0.0
        %2050 = vmatprep.subr.mxu0 0.0
        %2051 = vmatpush1.msra.mxu0 0.0
        %2052 = vmatprep.subr.mxu0 0.0
        %2053 = vmatpush1.msra.mxu0 0.0
        %2054 = vmatprep.subr.mxu0 0.0
        %2055 = vmatpush1.msra.mxu0 0.0
        %2056 = vmatprep.subr.mxu0 0.0
        %2057 = vmatpush1.msra.mxu0 0.0
        %2058 = vmatprep.mubr.f32.mxu0 0.0
        %2059 = vmatmul.mubr.f32.gmra.mrb[0].mxu0 %v1992
        %v2060 = vpop.f32.mrb[0].mxu0
        %v2061 = vadd.f32 0.0, %v2060
        %v2062 = vpop.f32.mrb[0].mxu0
        %2063 = vdwg.mxu0
        %2064 = vrot.lane.b32.xlu0 %v799, 40
        %v2065 = vpop.permute.xlu0 %2064
        %v2068 = vsel %vm812, %v1987, 0
        %2070 = vmatprep.subr.mxu0 0.0
        %2071 = vmatpush1.msra.mxu0 %v2065
        %2072 = vmatprep.subr.mxu0 0.0
        %2073 = vmatpush1.msra.mxu0 0.0
        %2074 = vmatprep.subr.mxu0 0.0
        %2075 = vmatpush1.msra.mxu0 0.0
        %2076 = vmatprep.subr.mxu0 0.0
        %2077 = vmatpush1.msra.mxu0 0.0
        %2078 = vmatprep.subr.mxu0 0.0
        %2079 = vmatpush1.msra.mxu0 0.0
        %2080 = vmatprep.subr.mxu0 0.0
        %2081 = vmatpush1.msra.mxu0 0.0
        %2082 = vmatprep.subr.mxu0 0.0
        %2083 = vmatpush1.msra.mxu0 0.0
        %2084 = vmatprep.subr.mxu0 0.0
        %2085 = vmatpush1.msra.mxu0 0.0
        %2086 = vmatprep.subr.mxu0 0.0
        %2087 = vmatpush1.msra.mxu0 0.0
        %2088 = vmatprep.subr.mxu0 0.0
        %2089 = vmatpush1.msra.mxu0 0.0
        %2090 = vmatprep.subr.mxu0 0.0
        %2091 = vmatpush1.msra.mxu0 0.0
        %2092 = vmatprep.subr.mxu0 0.0
        %2093 = vmatpush1.msra.mxu0 0.0
        %2094 = vmatprep.subr.mxu0 0.0
        %2095 = vmatpush1.msra.mxu0 0.0
        %2096 = vmatprep.subr.mxu0 0.0
        %2097 = vmatpush1.msra.mxu0 0.0
        %2098 = vmatprep.subr.mxu0 0.0
        %2099 = vmatpush1.msra.mxu0 0.0
        %2100 = vmatprep.subr.mxu0 0.0
        %2101 = vmatpush1.msra.mxu0 0.0
        %2102 = vmatprep.subr.mxu0 0.0
        %2103 = vmatpush1.msra.mxu0 0.0
        %2104 = vmatprep.subr.mxu0 0.0
        %2105 = vmatpush1.msra.mxu0 0.0
        %2106 = vmatprep.subr.mxu0 0.0
        %2107 = vmatpush1.msra.mxu0 0.0
        %2108 = vmatprep.subr.mxu0 0.0
        %2109 = vmatpush1.msra.mxu0 0.0
        %2110 = vmatprep.subr.mxu0 0.0
        %2111 = vmatpush1.msra.mxu0 0.0
        %2112 = vmatprep.subr.mxu0 0.0
        %2113 = vmatpush1.msra.mxu0 0.0
        %2114 = vmatprep.subr.mxu0 0.0
        %2115 = vmatpush1.msra.mxu0 0.0
        %2116 = vmatprep.subr.mxu0 0.0
        %2117 = vmatpush1.msra.mxu0 0.0
        %2118 = vmatprep.subr.mxu0 0.0
        %2119 = vmatpush1.msra.mxu0 0.0
        %2120 = vmatprep.subr.mxu0 0.0
        %2121 = vmatpush1.msra.mxu0 0.0
        %2122 = vmatprep.subr.mxu0 0.0
        %2123 = vmatpush1.msra.mxu0 0.0
        %2124 = vmatprep.subr.mxu0 0.0
        %2125 = vmatpush1.msra.mxu0 0.0
        %2126 = vmatprep.subr.mxu0 0.0
        %2127 = vmatpush1.msra.mxu0 0.0
        %2128 = vmatprep.subr.mxu0 0.0
        %2129 = vmatpush1.msra.mxu0 0.0
        %2130 = vmatprep.subr.mxu0 0.0
        %2131 = vmatpush1.msra.mxu0 0.0
        %2132 = vmatprep.subr.mxu0 0.0
        %2133 = vmatpush1.msra.mxu0 0.0
        %2134 = vmatprep.mubr.f32.mxu0 0.0
        %2135 = vmatmul.mubr.f32.gmra.mrb[0].mxu0 %v2068
        %v2136 = vpop.f32.mrb[0].mxu0
        %v2137 = vadd.f32 0.0, %v2136
        %v2138 = vpop.f32.mrb[0].mxu0
        %2139 = vdwg.mxu0
        %2142 = vrot.lane.b32.xlu0 %v1397, 8
        %v2143 = vpop.permute.xlu0 %2142
        %2144 = vrot.lane.b32.xlu0 %v1473, 8
        %v2145 = vpop.permute.xlu0 %2144
        %2150 = vrot.lane.b32.xlu0 %v1729, 16
        %v2151 = vpop.permute.xlu0 %2150
        %2152 = vrot.lane.b32.xlu0 %v1805, 16
        %v2153 = vpop.permute.xlu0 %2152
        %2158 = vrot.lane.b32.xlu0 %v2061, 24
        %v2159 = vpop.permute.xlu0 %2158
        %2160 = vrot.lane.b32.xlu0 %v2137, 24
        %v2161 = vpop.permute.xlu0 %2160
        %v2164 = vsel %vm812, %v1065, %v2143
        %v2165 = vsel %vm812, %v1141, %v2145
        %vm2166 = vcmask 130048
        %v2167 = vsel %vm2166, %v2164, %v2151
        %v2168 = vsel %vm2166, %v2165, %v2153
        %vm2169 = vcmask 195584
        %v2170 = vsel %vm2169, %v2167, %v2159
        %v2171 = vsel %vm2169, %v2168, %v2161
        %v2172 = vld [vmem:[%s627] sm:$0xff]
        %v2173 = vld [vmem:[%s627 + $0x8] sm:$0xff]
        %v2174 = vld [vmem:[%s627 + $0x10] sm:$0xff]
        %v2175 = vld [vmem:[%s627 + $0x18] sm:$0xff]
        %v2176 = vld [vmem:[%s630] sm:$0x1]
        %v2178 = vlaneseq
        %v2179 = vshrl.u32 %v2178, 7
        %v2180 = vsub.s32 0, %v2179
        %v2181 = vrot.slane %v2176, %v2180
        %v2184 = vsel %vm666, %v2170, 0
        %v2187 = vsel %vm666, %v2171, 0
        %2189 = vmatprep.subr.mxu0 0.0
        %2190 = vmatpush1.msra.mxu0 %v2172
        %2191 = vmatprep.subr.mxu0 0.0
        %2192 = vmatpush1.msra.mxu0 %v2173
        %2193 = vmatprep.subr.mxu0 0.0
        %2194 = vmatpush1.msra.mxu0 %v2174
        %2195 = vmatprep.subr.mxu0 0.0
        %2196 = vmatpush1.msra.mxu0 %v2175
        %2197 = vmatprep.subr.mxu0 0.0
        %2198 = vmatpush1.msra.mxu0 0.0
        %2199 = vmatprep.subr.mxu0 0.0
        %2200 = vmatpush1.msra.mxu0 0.0
        %2201 = vmatprep.subr.mxu0 0.0
        %2202 = vmatpush1.msra.mxu0 0.0
        %2203 = vmatprep.subr.mxu0 0.0
        %2204 = vmatpush1.msra.mxu0 0.0
        %2205 = vmatprep.subr.mxu0 0.0
        %2206 = vmatpush1.msra.mxu0 0.0
        %2207 = vmatprep.subr.mxu0 0.0
        %2208 = vmatpush1.msra.mxu0 0.0
        %2209 = vmatprep.subr.mxu0 0.0
        %2210 = vmatpush1.msra.mxu0 0.0
        %2211 = vmatprep.subr.mxu0 0.0
        %2212 = vmatpush1.msra.mxu0 0.0
        %2213 = vmatprep.subr.mxu0 0.0
        %2214 = vmatpush1.msra.mxu0 0.0
        %2215 = vmatprep.subr.mxu0 0.0
        %2216 = vmatpush1.msra.mxu0 0.0
        %2217 = vmatprep.subr.mxu0 0.0
        %2218 = vmatpush1.msra.mxu0 0.0
        %2219 = vmatprep.subr.mxu0 0.0
        %2220 = vmatpush1.msra.mxu0 0.0
        %2221 = vmatprep.subr.mxu0 0.0
        %2222 = vmatpush1.msra.mxu0 0.0
        %2223 = vmatprep.subr.mxu0 0.0
        %2224 = vmatpush1.msra.mxu0 0.0
        %2225 = vmatprep.subr.mxu0 0.0
        %2226 = vmatpush1.msra.mxu0 0.0
        %2227 = vmatprep.subr.mxu0 0.0
        %2228 = vmatpush1.msra.mxu0 0.0
        %2229 = vmatprep.subr.mxu0 0.0
        %2230 = vmatpush1.msra.mxu0 0.0
        %2231 = vmatprep.subr.mxu0 0.0
        %2232 = vmatpush1.msra.mxu0 0.0
        %2233 = vmatprep.subr.mxu0 0.0
        %2234 = vmatpush1.msra.mxu0 0.0
        %2235 = vmatprep.subr.mxu0 0.0
        %2236 = vmatpush1.msra.mxu0 0.0
        %2237 = vmatprep.subr.mxu0 0.0
        %2238 = vmatpush1.msra.mxu0 0.0
        %2239 = vmatprep.subr.mxu0 0.0
        %2240 = vmatpush1.msra.mxu0 0.0
        %2241 = vmatprep.subr.mxu0 0.0
        %2242 = vmatpush1.msra.mxu0 0.0
        %2243 = vmatprep.subr.mxu0 0.0
        %2244 = vmatpush1.msra.mxu0 0.0
        %2245 = vmatprep.subr.mxu0 0.0
        %2246 = vmatpush1.msra.mxu0 0.0
        %2247 = vmatprep.subr.mxu0 0.0
        %2248 = vmatpush1.msra.mxu0 0.0
        %2249 = vmatprep.subr.mxu0 0.0
        %2250 = vmatpush1.msra.mxu0 0.0
        %2251 = vmatprep.subr.mxu0 0.0
        %2252 = vmatpush1.msra.mxu0 0.0
        %2253 = vmatprep.mubr.f32.mxu0 0.0
        %2254 = vmatmul.mubr.f32.gmra.mrb[0].mxu0 %v2184
        %v2255 = vpop.f32.mrb[0].mxu0
        %v2256 = vadd.f32 %v2181, %v2255
        %v2257 = vpop.f32.mrb[0].mxu0
        %2258 = vmatprep.mubr.f32.mxu0 0.0
        %2259 = vmatmul.mubr.f32.gmra.mrb[0].mxu0 %v2187
        %v2260 = vpop.f32.mrb[0].mxu0
        %v2261 = vadd.f32 %v2181, %v2260
        %v2262 = vpop.f32.mrb[0].mxu0
        %2263 = vdwg.mxu0
        %v2264 = vadd.f32 %v662, %v2256
        %v2265 = vadd.f32 %v663, %v2261
        %v2266 = vld [vmem:[%s633] sm:$0x1]
        %v2267 = vld [vmem:[%s636] sm:$0x1]
        %v2268 = vsel %vm666, %v2264, 0.0
        %2269 = vadd.xlane.f32.xlu0 %v2268
        %v2270 = vpop.xlane.xlu0 %2269
        %v2271 = vsel %vm666, %v2265, 0.0
        %2272 = vadd.xlane.f32.xlu0 %v2271
        %v2273 = vpop.xlane.xlu0 %2272
        %v2274 = vmul.f32 %v2270, %v673
        %v2275 = vmul.f32 %v2273, %v673
        %v2276 = vsub.f32 %v2264, %v2274
        %v2277 = vsub.f32 %v2265, %v2275
        %v2278 = vmul.f32 %v2276, %v2276
        %v2279 = vmul.f32 %v2277, %v2277
        %v2280 = vsel %vm666, %v2278, 0.0
        %2281 = vadd.xlane.f32.xlu0 %v2280
        %v2282 = vpop.xlane.xlu0 %2281
        %v2283 = vsel %vm666, %v2279, 0.0
        %2284 = vadd.xlane.f32.xlu0 %v2283
        %v2285 = vpop.xlane.xlu0 %2284
        %v2286 = vmul.f32 %v2282, %v673
        %v2287 = vmul.f32 %v2285, %v673
        %v2288 = vadd.f32 %v2286, 1e-05
        %v2289 = vadd.f32 %v2287, 1e-05
        %v2290 = vrsqrt.pop %v2288
        %v2291 = vrsqrt.pop %v2289
        %v2292 = vmul.f32 %v2276, %v2290
        %v2293 = vmul.f32 %v2277, %v2291
        %v2295 = vlaneseq
        %v2296 = vshrl.u32 %v2295, 7
        %v2297 = vsub.s32 0, %v2296
        %v2298 = vrot.slane %v2266, %v2297
        %v2300 = vmul.f32 %v2292, %v2298
        %v2301 = vmul.f32 %v2293, %v2298
        %v2303 = vlaneseq
        %v2304 = vshrl.u32 %v2303, 7
        %v2305 = vsub.s32 0, %v2304
        %v2306 = vrot.slane %v2267, %v2305
        %v2308 = vadd.f32 %v2300, %v2306
        %v2309 = vadd.f32 %v2301, %v2306
        %v2310 = vld [vmem:[%s641] sm:$0xff]
        %v2311 = vld [vmem:[%s641 + $0x8] sm:$0xff]
        %v2312 = vld [vmem:[%s641 + $0x10] sm:$0xff]
        %v2313 = vld [vmem:[%s641 + $0x18] sm:$0xff]
        %v2314 = vld [vmem:[%s644] sm:$0x1]
        %v2316 = vlaneseq
        %v2317 = vshrl.u32 %v2316, 7
        %v2318 = vsub.s32 0, %v2317
        %v2319 = vrot.slane %v2314, %v2318
        %v2322 = vsel %vm666, %v2308, 0
        %v2325 = vsel %vm666, %v2309, 0
        %2327 = vmatprep.subr.mxu0 0.0
        %2328 = vmatpush1.msra.mxu0 %v2310
        %2329 = vmatprep.subr.mxu0 0.0
        %2330 = vmatpush1.msra.mxu0 %v2311
        %2331 = vmatprep.subr.mxu0 0.0
        %2332 = vmatpush1.msra.mxu0 %v2312
        %2333 = vmatprep.subr.mxu0 0.0
        %2334 = vmatpush1.msra.mxu0 %v2313
        %2335 = vmatprep.subr.mxu0 0.0
        %2336 = vmatpush1.msra.mxu0 0.0
        %2337 = vmatprep.subr.mxu0 0.0
        %2338 = vmatpush1.msra.mxu0 0.0
        %2339 = vmatprep.subr.mxu0 0.0
        %2340 = vmatpush1.msra.mxu0 0.0
        %2341 = vmatprep.subr.mxu0 0.0
        %2342 = vmatpush1.msra.mxu0 0.0
        %2343 = vmatprep.subr.mxu0 0.0
        %2344 = vmatpush1.msra.mxu0 0.0
        %2345 = vmatprep.subr.mxu0 0.0
        %2346 = vmatpush1.msra.mxu0 0.0
        %2347 = vmatprep.subr.mxu0 0.0
        %2348 = vmatpush1.msra.mxu0 0.0
        %2349 = vmatprep.subr.mxu0 0.0
        %2350 = vmatpush1.msra.mxu0 0.0
        %2351 = vmatprep.subr.mxu0 0.0
        %2352 = vmatpush1.msra.mxu0 0.0
        %2353 = vmatprep.subr.mxu0 0.0
        %2354 = vmatpush1.msra.mxu0 0.0
        %2355 = vmatprep.subr.mxu0 0.0
        %2356 = vmatpush1.msra.mxu0 0.0
        %2357 = vmatprep.subr.mxu0 0.0
        %2358 = vmatpush1.msra.mxu0 0.0
        %2359 = vmatprep.subr.mxu0 0.0
        %2360 = vmatpush1.msra.mxu0 0.0
        %2361 = vmatprep.subr.mxu0 0.0
        %2362 = vmatpush1.msra.mxu0 0.0
        %2363 = vmatprep.subr.mxu0 0.0
        %2364 = vmatpush1.msra.mxu0 0.0
        %2365 = vmatprep.subr.mxu0 0.0
        %2366 = vmatpush1.msra.mxu0 0.0
        %2367 = vmatprep.subr.mxu0 0.0
        %2368 = vmatpush1.msra.mxu0 0.0
        %2369 = vmatprep.subr.mxu0 0.0
        %2370 = vmatpush1.msra.mxu0 0.0
        %2371 = vmatprep.subr.mxu0 0.0
        %2372 = vmatpush1.msra.mxu0 0.0
        %2373 = vmatprep.subr.mxu0 0.0
        %2374 = vmatpush1.msra.mxu0 0.0
        %2375 = vmatprep.subr.mxu0 0.0
        %2376 = vmatpush1.msra.mxu0 0.0
        %2377 = vmatprep.subr.mxu0 0.0
        %2378 = vmatpush1.msra.mxu0 0.0
        %2379 = vmatprep.subr.mxu0 0.0
        %2380 = vmatpush1.msra.mxu0 0.0
        %2381 = vmatprep.subr.mxu0 0.0
        %2382 = vmatpush1.msra.mxu0 0.0
        %2383 = vmatprep.subr.mxu0 0.0
        %2384 = vmatpush1.msra.mxu0 0.0
        %2385 = vmatprep.subr.mxu0 0.0
        %2386 = vmatpush1.msra.mxu0 0.0
        %2387 = vmatprep.subr.mxu0 0.0
        %2388 = vmatpush1.msra.mxu0 0.0
        %2389 = vmatprep.subr.mxu0 0.0
        %2390 = vmatpush1.msra.mxu0 0.0
        %2391 = vmatprep.mubr.f32.mxu0 0.0
        %2392 = vmatmul.mubr.f32.gmra.mrb[0].mxu0 %v2322
        %v2393 = vpop.f32.mrb[0].mxu0
        %v2394 = vadd.f32 %v2319, %v2393
        %v2395 = vpop.f32.mrb[0].mxu0
        %2396 = vmatprep.mubr.f32.mxu0 0.0
        %2397 = vmatmul.mubr.f32.gmra.mrb[0].mxu0 %v2325
        %v2398 = vpop.f32.mrb[0].mxu0
        %v2399 = vadd.f32 %v2319, %v2398
        %v2400 = vpop.f32.mrb[0].mxu0
        %2401 = vdwg.mxu0
        %v2402 = vmul.f32 %v2394, 0.5
        %v2403 = vmul.f32 %v2399, 0.5
        %v2404 = vrcp.pop 1.4142135
        %v2405 = vmul.f32 %v2394, %v2404
        %v2406 = vmul.f32 %v2399, %v2404
        %v2407 = verf.f32.pop %v2405
        %v2408 = verf.f32.pop %v2406
        %v2409 = vadd.f32 %v2407, 1.0
        %v2410 = vadd.f32 %v2408, 1.0
        %v2411 = vmul.f32 %v2402, %v2409
        %v2412 = vmul.f32 %v2403, %v2410
        %v2413 = vld [vmem:[%s649] sm:$0xff]
        %v2414 = vld [vmem:[%s649 + $0x8] sm:$0xff]
        %v2415 = vld [vmem:[%s649 + $0x10] sm:$0xff]
        %v2416 = vld [vmem:[%s649 + $0x18] sm:$0xff]
        %v2417 = vld [vmem:[%s649 + $0x20] sm:$0xff]
        %v2418 = vld [vmem:[%s649 + $0x28] sm:$0xff]
        %v2419 = vld [vmem:[%s649 + $0x30] sm:$0xff]
        %v2420 = vld [vmem:[%s649 + $0x38] sm:$0xff]
        %v2421 = vld [vmem:[%s649 + $0x40] sm:$0xff]
        %v2422 = vld [vmem:[%s649 + $0x48] sm:$0xff]
        %v2423 = vld [vmem:[%s649 + $0x50] sm:$0xff]
        %v2424 = vld [vmem:[%s649 + $0x58] sm:$0xff]
        %v2425 = vld [vmem:[%s649 + $0x60] sm:$0xff]
        %v2426 = vld [vmem:[%s649 + $0x68] sm:$0xff]
        %v2427 = vld [vmem:[%s649 + $0x70] sm:$0xff]
        %v2428 = vld [vmem:[%s649 + $0x78] sm:$0xff]
        %v2429 = vld [vmem:[%s652] sm:$0x1]
        %v2431 = vlaneseq
        %v2432 = vshrl.u32 %v2431, 7
        %v2433 = vsub.s32 0, %v2432
        %v2434 = vrot.slane %v2429, %v2433
        %2436 = vmatprep.subr.mxu0 0.0
        %2437 = vmatpush1.msra.mxu0 %v2413
        %2438 = vmatprep.subr.mxu0 0.0
        %2439 = vmatpush1.msra.mxu0 %v2414
        %2440 = vmatprep.subr.mxu0 0.0
        %2441 = vmatpush1.msra.mxu0 %v2415
        %2442 = vmatprep.subr.mxu0 0.0
        %2443 = vmatpush1.msra.mxu0 %v2416
        %2444 = vmatprep.subr.mxu0 0.0
        %2445 = vmatpush1.msra.mxu0 %v2417
        %2446 = vmatprep.subr.mxu0 0.0
        %2447 = vmatpush1.msra.mxu0 %v2418
        %2448 = vmatprep.subr.mxu0 0.0
        %2449 = vmatpush1.msra.mxu0 %v2419
        %2450 = vmatprep.subr.mxu0 0.0
        %2451 = vmatpush1.msra.mxu0 %v2420
        %2452 = vmatprep.subr.mxu0 0.0
        %2453 = vmatpush1.msra.mxu0 %v2421
        %2454 = vmatprep.subr.mxu0 0.0
        %2455 = vmatpush1.msra.mxu0 %v2422
        %2456 = vmatprep.subr.mxu0 0.0
        %2457 = vmatpush1.msra.mxu0 %v2423
        %2458 = vmatprep.subr.mxu0 0.0
        %2459 = vmatpush1.msra.mxu0 %v2424
        %2460 = vmatprep.subr.mxu0 0.0
        %2461 = vmatpush1.msra.mxu0 %v2425
        %2462 = vmatprep.subr.mxu0 0.0
        %2463 = vmatpush1.msra.mxu0 %v2426
        %2464 = vmatprep.subr.mxu0 0.0
        %2465 = vmatpush1.msra.mxu0 %v2427
        %2466 = vmatprep.subr.mxu0 0.0
        %2467 = vmatpush1.msra.mxu0 %v2428
        %2468 = vmatprep.subr.mxu0 0.0
        %2469 = vmatpush1.msra.mxu0 0.0
        %2470 = vmatprep.subr.mxu0 0.0
        %2471 = vmatpush1.msra.mxu0 0.0
        %2472 = vmatprep.subr.mxu0 0.0
        %2473 = vmatpush1.msra.mxu0 0.0
        %2474 = vmatprep.subr.mxu0 0.0
        %2475 = vmatpush1.msra.mxu0 0.0
        %2476 = vmatprep.subr.mxu0 0.0
        %2477 = vmatpush1.msra.mxu0 0.0
        %2478 = vmatprep.subr.mxu0 0.0
        %2479 = vmatpush1.msra.mxu0 0.0
        %2480 = vmatprep.subr.mxu0 0.0
        %2481 = vmatpush1.msra.mxu0 0.0
        %2482 = vmatprep.subr.mxu0 0.0
        %2483 = vmatpush1.msra.mxu0 0.0
        %2484 = vmatprep.subr.mxu0 0.0
        %2485 = vmatpush1.msra.mxu0 0.0
        %2486 = vmatprep.subr.mxu0 0.0
        %2487 = vmatpush1.msra.mxu0 0.0
        %2488 = vmatprep.subr.mxu0 0.0
        %2489 = vmatpush1.msra.mxu0 0.0
        %2490 = vmatprep.subr.mxu0 0.0
        %2491 = vmatpush1.msra.mxu0 0.0
        %2492 = vmatprep.subr.mxu0 0.0
        %2493 = vmatpush1.msra.mxu0 0.0
        %2494 = vmatprep.subr.mxu0 0.0
        %2495 = vmatpush1.msra.mxu0 0.0
        %2496 = vmatprep.subr.mxu0 0.0
        %2497 = vmatpush1.msra.mxu0 0.0
        %2498 = vmatprep.subr.mxu0 0.0
        %2499 = vmatpush1.msra.mxu0 0.0
        %2500 = vmatprep.mubr.f32.mxu0 0.0
        %2501 = vmatmul.mubr.f32.gmra.mrb[0].mxu0 %v2411
        %v2502 = vpop.f32.mrb[0].mxu0
        %v2503 = vadd.f32 %v2434, %v2502
        %v2504 = vpop.f32.mrb[0].mxu0
        %2505 = vmatprep.mubr.f32.mxu0 0.0
        %2506 = vmatmul.mubr.f32.gmra.mrb[0].mxu0 %v2412
        %v2507 = vpop.f32.mrb[0].mxu0
        %v2508 = vadd.f32 %v2434, %v2507
        %v2509 = vpop.f32.mrb[0].mxu0
        %2510 = vdwg.mxu0
        %v2511 = vadd.f32 %v2264, %v2503
        %v2512 = vadd.f32 %v2265, %v2508
        %2513 = vst.msk [vmem:[#allocation2] sm:$0xff] %vm666, %v2511
        %2514 = vst.msk [vmem:[#allocation2 + $0x8] sm:$0xff] %vm666, %v2512
        %p2515 = scmp.eq.s32.totalorder %s27, 1
        // Predicated region
        $region85: #{tpu_custom_call.1} parent=79 // pred_check
          %p2516 = pneg %p2515
        $region86: #{tpu_custom_call.1} parent=79 // pred_check_branch
          %2518 = sbr.rel (%p2516) target = $region88
        $region87: #{tpu_custom_call.1} parent=79 // pred_region
          %v2519 = vld [vmem:[%s1] sm:$0x1]
          %v2520 = vld [vmem:[%s2] sm:$0x1]
          %v2521 = vsel %vm666, %v2511, 0.0
          %2522 = vadd.xlane.f32.xlu0 %v2521
          %v2523 = vpop.xlane.xlu0 %2522
          %v2524 = vsel %vm666, %v2512, 0.0
          %2525 = vadd.xlane.f32.xlu0 %v2524
          %v2526 = vpop.xlane.xlu0 %2525
          %v2527 = vmul.f32 %v2523, %v673
          %v2528 = vmul.f32 %v2526, %v673
          %v2529 = vsub.f32 %v2511, %v2527
          %v2530 = vsub.f32 %v2512, %v2528
          %v2531 = vmul.f32 %v2529, %v2529
          %v2532 = vmul.f32 %v2530, %v2530
          %v2533 = vsel %vm666, %v2531, 0.0
          %2534 = vadd.xlane.f32.xlu0 %v2533
          %v2535 = vpop.xlane.xlu0 %2534
          %v2536 = vsel %vm666, %v2532, 0.0
          %2537 = vadd.xlane.f32.xlu0 %v2536
          %v2538 = vpop.xlane.xlu0 %2537
          %v2539 = vmul.f32 %v2535, %v673
          %v2540 = vmul.f32 %v2538, %v673
          %v2541 = vadd.f32 %v2539, 1e-05
          %v2542 = vadd.f32 %v2540, 1e-05
          %v2543 = vrsqrt.pop %v2541
          %v2544 = vrsqrt.pop %v2542
          %v2545 = vmul.f32 %v2529, %v2543
          %v2546 = vmul.f32 %v2530, %v2544
          %v2548 = vlaneseq
          %v2549 = vshrl.u32 %v2548, 7
          %v2550 = vsub.s32 0, %v2549
          %v2551 = vrot.slane %v2519, %v2550
          %v2553 = vmul.f32 %v2545, %v2551
          %v2554 = vmul.f32 %v2546, %v2551
          %v2556 = vlaneseq
          %v2557 = vshrl.u32 %v2556, 7
          %v2558 = vsub.s32 0, %v2557
          %v2559 = vrot.slane %v2520, %v2558
          %v2561 = vadd.f32 %v2553, %v2559
          %v2562 = vadd.f32 %v2554, %v2559
          %2563 = vst.msk [vmem:[#allocation2] sm:$0xff] %vm666, %v2561
          %2564 = vst.msk [vmem:[#allocation2 + $0x8] sm:$0xff] %vm666, %v2562
        $region88: #{tpu_custom_call.1} parent=79 // pred_fallthru
          _
        // Predicated region
        $region89: #{tpu_custom_call.1} parent=79 // pred_check
          %p2565 = pneg %p415
        $region90: #{tpu_custom_call.1} parent=79 // pred_check_branch
          %2567 = sbr.rel (%p2565) target = $region92
        $region91: #{tpu_custom_call.1} parent=79 // pred_region
          %s2569 = ssub.s32 256, 256
          %2570 = vsyncadd [#allocation3], %s2569
          %s2571 = sshll.u32 [#allocation2], 4
          %s2572 = int_to_ptr.vmem [resolvable:$true] %s2571
          %2577 = dma.vmem_to_hbm [thread:$0]  %s2572, 256, %s15, [#allocation3], 128, 128, 8
        $region92: #{tpu_custom_call.1} parent=79 // pred_fallthru
          _
        // Predicated region
        $region93: #{tpu_custom_call.1} parent=79 // pred_check
          %p2578 = pneg %p415
        $region94: #{tpu_custom_call.1} parent=79 // pred_check_branch
          %2580 = sbr.rel (%p2578) target = $region96
        $region95: #{tpu_custom_call.1} parent=79 // pred_region
          %2581 = dma.done [#allocation3], 256
        $region96: #{tpu_custom_call.1} parent=79 // pred_fallthru
          _
      $region80: #{tpu_custom_call.1} parent=5 // pred_fallthru
        _
      %p2582 = scmp.le.s32.totalorder 2, %s22
      // Predicated region
      $region97: #{tpu_custom_call.1} parent=5 // pred_check
        %p2583 = pneg %p2582
      $region98: #{tpu_custom_call.1} parent=5 // pred_check_branch
        %2585 = sbr.rel (%p2583) target = $region100
      $region99: #{tpu_custom_call.1} parent=5 // pred_region
        %s2586 = ssub.s32 %s22, 2
      $region100: #{tpu_custom_call.1} parent=5 // pred_fallthru
        _
    $region6: #{tpu_custom_call.1} parent=1 // loop_footer
      %s26 = sadd.s32 1, %s22
    $region7: #{tpu_custom_call.1} parent=1 // loop_footer_branch
      %21 = sbr.rel target = $region3
    $region8: #{tpu_custom_call.1} parent=1 // loop_exit
      _
    %2587 = vsyncpa [#allocation3], 1
    %s2588 = scalar_lea.sflag [#allocation3], 1
    %2589 = vsyncpa %s2588, 1

</llo_original>
